<compile_context>
chip_gen: v5e
topology: v5e:2x2
jax: 0.10.0
libtpu: 0.0.40
codegen_flags: <defaults>
</compile_context>

<pallas_src>
import numpy as np
import jax
import jax.numpy as jnp
from jax.experimental import pallas as pl
from jax.experimental.pallas import tpu as pltpu


# ----------------------------------------------------------------------------
# Fused kernel: SpatialAttention -> gated global-avg-pool -> (BN-folded) Linear head
# One batch element per grid step.
# ----------------------------------------------------------------------------
def _trop2_fused_kernel(feat_ref, cmatT_ref, cbias_ref,
                        w1_ref, b1_ref, w2_ref, b2_ref, out_ref):
    # feat_ref : (1, HW, C)     features of one batch element (C on lanes)
    # cmatT_ref: (HW, 2*HW)     7x7 conv (2ch->1ch, pad=3) as a dense linear map (transposed)
    # cbias_ref: (1, 1)         conv bias (scalar)
    # w1_ref   : (C, C2)        Linear1 weight with BN1 folded in
    # b1_ref   : (1, C2)        Linear1 bias   with BN1 folded in
    # w2_ref   : (C2, NCpad)    Linear2 weight with BN2 folded in, zero-padded to 128 lanes
    # b2_ref   : (1, NCpad)     Linear2 bias   with BN2 folded in, zero-padded
    # out_ref  : (1, 1, NCpad)  logits for this batch element (lane-dense)
    feat = feat_ref[0]                                        # (HW, C)
    hw = feat.shape[0]

    # channel statistics per pixel (lane reductions)
    avg = jnp.mean(feat, axis=1, keepdims=True)               # (HW, 1)  == torch.mean(x, dim=1)
    mx = jnp.max(feat, axis=1, keepdims=True)                 # (HW, 1)  == torch.max(x, dim=1)[0]
    am = jnp.concatenate([avg, mx], axis=0)                   # (2*HW, 1)

    # 7x7 SAME conv on [avg; max] as a single K=2*HW MXU matmul, then sigmoid
    logits = (jnp.dot(cmatT_ref[...], am, preferred_element_type=jnp.float32)
              + cbias_ref[...])                               # (HW, 1)
    attn = jax.nn.sigmoid(logits)                             # (HW, 1)

    # attention-gated AdaptiveAvgPool2d(1): lane-dense (1, C) pooled row
    pooled = jnp.sum(feat * attn, axis=0, keepdims=True) * (1.0 / hw)   # (1, C)

    # classifier head (BN folded into the linears; Dropout = identity)
    h = jnp.maximum(jnp.dot(pooled, w1_ref[...], preferred_element_type=jnp.float32)
                    + b1_ref[...], 0.0)                       # (1, C2)
    out_ref[0] = (jnp.dot(h, w2_ref[...], preferred_element_type=jnp.float32)
                  + b2_ref[...])                              # (1, NCpad)


# ----------------------------------------------------------------------------
# Glue: conv-as-matrix construction / BN folding / pallas_call wrapper
# ----------------------------------------------------------------------------
def _conv_as_matrix_T(conv_w, H, W):
    """Dense (HW, 2*HW) operator equivalent to Conv2d(2, 1, k=7, padding=3, stride=1):
       logits[q] = sum_{c,p} MT[q, c*HW + p] * input[c, p]."""
    wc = np.asarray(conv_w, dtype=np.float32)      # (1, 2, 7, 7) PyTorch OIHW
    K = wc.shape[-1]
    pad = K // 2
    HW = H * W
    MT = np.zeros((HW, 2 * HW), dtype=np.float32)
    for c in range(2):
        for i in range(H):
            for j in range(W):
                q = i * W + j
                for di in range(K):
                    for dj in range(K):
                        ii = i + di - pad
                        jj = j + dj - pad
                        if 0 <= ii < H and 0 <= jj < W:
                            MT[q, c * HW + ii * W + jj] += wc[0, c, di, dj]
    return jnp.asarray(MT)


def trop2_classifier_forward(feat_nchw, params):
    B, C, H, W = feat_nchw.shape
    HW = H * W
    C2 = params["w1"].shape[0]
    NC = params["w2"].shape[0]
    NCpad = ((NC + 127) // 128) * 128

    # (B, C, H, W) -> (B, HW, C): channels on lanes, spatial on sublanes
    feat = jnp.transpose(feat_nchw.reshape(B, C, HW), (0, 2, 1)).astype(jnp.float32)

    cmatT = _conv_as_matrix_T(params["conv_w"], H, W)                       # (HW, 2*HW)
    cbias = jnp.asarray(params["conv_b"], jnp.float32).reshape(1, 1)        # (1, 1)

    # Fold eval-mode BatchNorms into the linears.
    eps = 1e-5
    s1 = (params["bn1_gamma"] * jax.lax.rsqrt(params["bn1_var"] + eps)).astype(jnp.float32)  # (1,C)
    t1 = params["bn1_beta"] - params["bn1_mean"] * s1                                         # (1,C)
    w1t = params["w1"].T.astype(jnp.float32)                                                  # (C,C2)
    w1f = w1t * s1.reshape(C, 1)                                                              # (C,C2)
    b1f = (params["b1"] + t1 @ w1t).astype(jnp.float32)                                       # (1,C2)

    s2 = (params["bn2_gamma"] * jax.lax.rsqrt(params["bn2_var"] + eps)).astype(jnp.float32)   # (1,C2)
    t2 = params["bn2_beta"] - params["bn2_mean"] * s2                                         # (1,C2)
    w2t = params["w2"].T.astype(jnp.float32)                                                  # (C2,NC)
    w2f = w2t * s2.reshape(C2, 1)                                                             # (C2,NC)
    b2f = (params["b2"] + t2 @ w2t).astype(jnp.float32)                                       # (1,NC)

    # Pad the final output lane dimension to a full 128-lane store.
    w2p = jnp.zeros((C2, NCpad), jnp.float32).at[:, :NC].set(w2f)
    b2p = jnp.zeros((1, NCpad), jnp.float32).at[:, :NC].set(b2f)

    out3 = pl.pallas_call(
        _trop2_fused_kernel,
        out_shape=jax.ShapeDtypeStruct((B, 1, NCpad), jnp.float32),
        grid=(B,),
        in_specs=[
            pl.BlockSpec((1, HW, C), lambda b: (b, 0, 0)),
            pl.BlockSpec((HW, 2 * HW), lambda b: (0, 0)),
            pl.BlockSpec((1, 1), lambda b: (0, 0)),
            pl.BlockSpec((C, C2), lambda b: (0, 0)),
            pl.BlockSpec((1, C2), lambda b: (0, 0)),
            pl.BlockSpec((C2, NCpad), lambda b: (0, 0)),
            pl.BlockSpec((1, NCpad), lambda b: (0, 0)),
        ],
        out_specs=pl.BlockSpec((1, 1, NCpad), lambda b: (b, 0, 0)),
        compiler_params=pltpu.CompilerParams(dimension_semantics=("parallel",)),
    )(feat, cmatT, cbias, w1f, b1f, w2p, b2p)

    return out3[:, 0, :NC]


# ----------------------------------------------------------------------------
# Pure-JAX reference (for correctness check only)
# ----------------------------------------------------------------------------
def reference_forward(feat_nchw, params):
    x = feat_nchw.astype(jnp.float32)
    avg = jnp.mean(x, axis=1, keepdims=True)
    mx = jnp.max(x, axis=1, keepdims=True)
    a_in = jnp.concatenate([avg, mx], axis=1)                            # (B, 2, H, W)
    attn = jax.lax.conv_general_dilated(
        a_in, params["conv_w"].astype(jnp.float32), window_strides=(1, 1),
        padding="SAME", dimension_numbers=("NCHW", "OIHW", "NCHW"))
    attn = jax.nn.sigmoid(attn + params["conv_b"].reshape(1, 1, 1, 1))
    x = x * attn
    pooled = jnp.mean(x, axis=(2, 3))                                    # (B, C)
    eps = 1e-5
    h = ((pooled - params["bn1_mean"]) / jnp.sqrt(params["bn1_var"] + eps)
         * params["bn1_gamma"] + params["bn1_beta"])
    h = jnp.maximum(h @ params["w1"].T + params["b1"], 0.0)
    h = ((h - params["bn2_mean"]) / jnp.sqrt(params["bn2_var"] + eps)
         * params["bn2_gamma"] + params["bn2_beta"])
    return h @ params["w2"].T + params["b2"]


if __name__ == "__main__":
    # EfficientNet-B0 features -> 1280 channels, small spatial map (8x8), batch 2, 3 classes.
    B, C, H, W = 2, 1280, 8, 8
    NUM_CLASSES = 3
    C2 = C // 2

    keys = jax.random.split(jax.random.PRNGKey(0), 12)
    params = {
        "conv_w": 0.05 * jax.random.normal(keys[0], (1, 2, 7, 7), jnp.float32),
        "conv_b": 0.05 * jax.random.normal(keys[1], (1,), jnp.float32),
        "bn1_gamma": jnp.ones((1, C), jnp.float32),
        "bn1_beta": jnp.zeros((1, C), jnp.float32),
        "bn1_mean": 0.05 * jax.random.normal(keys[2], (1, C), jnp.float32),
        "bn1_var": 1.0 + 0.1 * jax.random.uniform(keys[3], (1, C), jnp.float32),
        "w1": (1.0 / np.sqrt(C)) * jax.random.normal(keys[4], (C2, C), jnp.float32),
        "b1": 0.01 * jax.random.normal(keys[5], (1, C2), jnp.float32),
        "bn2_gamma": jnp.ones((1, C2), jnp.float32),
        "bn2_beta": jnp.zeros((1, C2), jnp.float32),
        "bn2_mean": 0.05 * jax.random.normal(keys[6], (1, C2), jnp.float32),
        "bn2_var": 1.0 + 0.1 * jax.random.uniform(keys[7], (1, C2), jnp.float32),
        "w2": (1.0 / np.sqrt(C2)) * jax.random.normal(keys[8], (NUM_CLASSES, C2), jnp.float32),
        "b2": 0.01 * jax.random.normal(keys[9], (1, NUM_CLASSES), jnp.float32),
    }
    feat = jax.random.normal(keys[10], (B, C, H, W), jnp.float32)

    out = jax.block_until_ready(trop2_classifier_forward(feat, params))
    assert out.shape == (B, NUM_CLASSES)

    ref = reference_forward(feat, params)
    np.testing.assert_allclose(np.asarray(out), np.asarray(ref), rtol=2e-2, atol=2e-2)

    print("KERNEL_OK")
</pallas_src>

<mosaic_0001>
module attributes {stable_mosaic.version = 11 : i64} {
  func.func @_trop2_fused_kernel(%arg0: i32, %arg1: memref<1x64x1280xf32, #tpu.memory_space<vmem>>, %arg2: memref<64x128xf32, #tpu.memory_space<vmem>>, %arg3: memref<1x1xf32, #tpu.memory_space<vmem>>, %arg4: memref<1280x640xf32, #tpu.memory_space<vmem>>, %arg5: memref<1x640xf32, #tpu.memory_space<vmem>>, %arg6: memref<640x128xf32, #tpu.memory_space<vmem>>, %arg7: memref<1x128xf32, #tpu.memory_space<vmem>>, %arg8: memref<1x1x128xf32, #tpu.memory_space<vmem>>) attributes {dimension_semantics = [#tpu.dimension_semantics<parallel>], iteration_bounds = array<i64: 2>, scalar_prefetch = 0 : i64, scratch_operands = 0 : i64, tpu.core_type = #tpu.core_type<tc>, window_params = [{transform_indices = @transform_0, window_bounds = array<i64: 1, 64, 1280>}, {pipeline_mode = #tpu.pipeline_mode<synchronous>, transform_indices = @transform_1, window_bounds = array<i64: 64, 128>}, {pipeline_mode = #tpu.pipeline_mode<synchronous>, transform_indices = @transform_2, window_bounds = array<i64: 1, 1>}, {pipeline_mode = #tpu.pipeline_mode<synchronous>, transform_indices = @transform_3, window_bounds = array<i64: 1280, 640>}, {pipeline_mode = #tpu.pipeline_mode<synchronous>, transform_indices = @transform_4, window_bounds = array<i64: 1, 640>}, {pipeline_mode = #tpu.pipeline_mode<synchronous>, transform_indices = @transform_5, window_bounds = array<i64: 640, 128>}, {pipeline_mode = #tpu.pipeline_mode<synchronous>, transform_indices = @transform_6, window_bounds = array<i64: 1, 128>}, {transform_indices = @transform_7, window_bounds = array<i64: 1, 1, 128>}]} {
    %c0 = arith.constant 0 : index
    %c0_0 = arith.constant 0 : index
    %c0_1 = arith.constant 0 : index
    %0 = vector.load %arg1[%c0, %c0_0, %c0_1] : memref<1x64x1280xf32, #tpu.memory_space<vmem>>, vector<1x64x1280xf32>
    %1 = vector.shape_cast %0 : vector<1x64x1280xf32> to vector<64x1280xf32>
    %cst = arith.constant dense<0.000000e+00> : vector<64xf32>
    %2 = vector.multi_reduction <add>, %1, %cst [1] : vector<64x1280xf32> to vector<64xf32>
    %3 = vector.shape_cast %2 : vector<64xf32> to vector<64x1xf32>
    %cst_2 = arith.constant 1.280000e+03 : f32
    %4 = vector.broadcast %cst_2 : f32 to vector<64x1xf32>
    %5 = arith.divf %3, %4 : vector<64x1xf32>
    %cst_3 = arith.constant dense<0xFF800000> : vector<64xf32>
    %6 = vector.multi_reduction <maximumf>, %1, %cst_3 [1] : vector<64x1280xf32> to vector<64xf32>
    %7 = vector.shape_cast %6 : vector<64xf32> to vector<64x1xf32>
    %8 = tpu.concatenate %5, %7 in 0 : vector<64x1xf32>, vector<64x1xf32> -> vector<128x1xf32>
    %c0_4 = arith.constant 0 : index
    %c0_5 = arith.constant 0 : index
    %9 = vector.load %arg2[%c0_4, %c0_5] : memref<64x128xf32, #tpu.memory_space<vmem>>, vector<64x128xf32>
    %cst_6 = arith.constant dense<0.000000e+00> : vector<64x1xf32>
    %10 = tpu.matmul %9, %8, %cst_6 {dimension_numbers = #tpu.dot_dimension_numbers<[1], [0], [0], [1], [0, 0, 1, 1], [], []>} : vector<64x128xf32>, vector<128x1xf32>, vector<64x1xf32> -> vector<64x1xf32>
    %c0_7 = arith.constant 0 : index
    %c0_8 = arith.constant 0 : index
    %11 = vector.load %arg3[%c0_7, %c0_8] : memref<1x1xf32, #tpu.memory_space<vmem>>, vector<1x1xf32>
    %12 = vector.broadcast %11 : vector<1x1xf32> to vector<64x1xf32>
    %13 = arith.addf %10, %12 : vector<64x1xf32>
    %14 = arith.negf %13 : vector<64x1xf32>
    %15 = math.exp %14 : vector<64x1xf32>
    %cst_9 = arith.constant 1.000000e+00 : f32
    %16 = vector.broadcast %cst_9 : f32 to vector<64x1xf32>
    %17 = arith.addf %16, %15 : vector<64x1xf32>
    %18 = arith.divf %16, %17 : vector<64x1xf32>
    %19 = vector.broadcast %18 : vector<64x1xf32> to vector<64x1280xf32>
    %20 = arith.mulf %1, %19 : vector<64x1280xf32>
    %cst_10 = arith.constant dense<0.000000e+00> : vector<1280xf32>
    %21 = vector.multi_reduction <add>, %20, %cst_10 [0] : vector<64x1280xf32> to vector<1280xf32>
    %22 = vector.shape_cast %21 : vector<1280xf32> to vector<1x1280xf32>
    %cst_11 = arith.constant 1.562500e-02 : f32
    %23 = vector.broadcast %cst_11 : f32 to vector<1x1280xf32>
    %24 = arith.mulf %22, %23 : vector<1x1280xf32>
    %c0_12 = arith.constant 0 : index
    %c0_13 = arith.constant 0 : index
    %25 = vector.load %arg4[%c0_12, %c0_13] : memref<1280x640xf32, #tpu.memory_space<vmem>>, vector<1280x640xf32>
    %cst_14 = arith.constant dense<0.000000e+00> : vector<1x640xf32>
    %26 = tpu.matmul %24, %25, %cst_14 {dimension_numbers = #tpu.dot_dimension_numbers<[1], [0], [0], [1], [0, 0, 1, 1], [], []>} : vector<1x1280xf32>, vector<1280x640xf32>, vector<1x640xf32> -> vector<1x640xf32>
    %c0_15 = arith.constant 0 : index
    %c0_16 = arith.constant 0 : index
    %27 = vector.load %arg5[%c0_15, %c0_16] : memref<1x640xf32, #tpu.memory_space<vmem>>, vector<1x640xf32>
    %28 = arith.addf %26, %27 : vector<1x640xf32>
    %cst_17 = arith.constant 0.000000e+00 : f32
    %29 = vector.broadcast %cst_17 : f32 to vector<1x640xf32>
    %30 = arith.maximumf %28, %29 : vector<1x640xf32>
    %c0_18 = arith.constant 0 : index
    %c0_19 = arith.constant 0 : index
    %31 = vector.load %arg6[%c0_18, %c0_19] : memref<640x128xf32, #tpu.memory_space<vmem>>, vector<640x128xf32>
    %cst_20 = arith.constant dense<0.000000e+00> : vector<1x128xf32>
    %32 = tpu.matmul %30, %31, %cst_20 {dimension_numbers = #tpu.dot_dimension_numbers<[1], [0], [0], [1], [0, 0, 1, 1], [], []>} : vector<1x640xf32>, vector<640x128xf32>, vector<1x128xf32> -> vector<1x128xf32>
    %c0_21 = arith.constant 0 : index
    %c0_22 = arith.constant 0 : index
    %33 = vector.load %arg7[%c0_21, %c0_22] : memref<1x128xf32, #tpu.memory_space<vmem>>, vector<1x128xf32>
    %34 = arith.addf %32, %33 : vector<1x128xf32>
    %c0_23 = arith.constant 0 : index
    %c0_24 = arith.constant 0 : index
    %c0_25 = arith.constant 0 : index
    %35 = vector.load %arg8[%c0_23, %c0_24, %c0_25] : memref<1x1x128xf32, #tpu.memory_space<vmem>>, vector<1x1x128xf32>
    %36 = vector.shape_cast %35 : vector<1x1x128xf32> to vector<1x128xf32>
    %37 = vector.shape_cast %34 : vector<1x128xf32> to vector<1x1x128xf32>
    tpu.vector_store %arg8[%c0_23, %c0_24, %c0_25], %37 {strides = array<i32>} : memref<1x1x128xf32, #tpu.memory_space<vmem>>, vector<1x1x128xf32>,
    return
  }
  func.func @transform_0(%arg0: i32) -> (i32, i32, i32) {
    %c0_i32 = arith.constant 0 : i32
    %c0_i32_0 = arith.constant 0 : i32
    %c0_i32_1 = arith.constant 0 : i32
    return %arg0, %c0_i32, %c0_i32_0 : i32, i32, i32
  }
  func.func @transform_1(%arg0: i32) -> (i32, i32) {
    %c0_i32 = arith.constant 0 : i32
    %c0_i32_0 = arith.constant 0 : i32
    %c0_i32_1 = arith.constant 0 : i32
    return %c0_i32, %c0_i32_0 : i32, i32
  }
  func.func @transform_2(%arg0: i32) -> (i32, i32) {
    %c0_i32 = arith.constant 0 : i32
    %c0_i32_0 = arith.constant 0 : i32
    %c0_i32_1 = arith.constant 0 : i32
    return %c0_i32, %c0_i32_0 : i32, i32
  }
  func.func @transform_3(%arg0: i32) -> (i32, i32) {
    %c0_i32 = arith.constant 0 : i32
    %c0_i32_0 = arith.constant 0 : i32
    %c0_i32_1 = arith.constant 0 : i32
    return %c0_i32, %c0_i32_0 : i32, i32
  }
  func.func @transform_4(%arg0: i32) -> (i32, i32) {
    %c0_i32 = arith.constant 0 : i32
    %c0_i32_0 = arith.constant 0 : i32
    %c0_i32_1 = arith.constant 0 : i32
    return %c0_i32, %c0_i32_0 : i32, i32
  }
  func.func @transform_5(%arg0: i32) -> (i32, i32) {
    %c0_i32 = arith.constant 0 : i32
    %c0_i32_0 = arith.constant 0 : i32
    %c0_i32_1 = arith.constant 0 : i32
    return %c0_i32, %c0_i32_0 : i32, i32
  }
  func.func @transform_6(%arg0: i32) -> (i32, i32) {
    %c0_i32 = arith.constant 0 : i32
    %c0_i32_0 = arith.constant 0 : i32
    %c0_i32_1 = arith.constant 0 : i32
    return %c0_i32, %c0_i32_0 : i32, i32
  }
  func.func @transform_7(%arg0: i32) -> (i32, i32, i32) {
    %c0_i32 = arith.constant 0 : i32
    %c0_i32_0 = arith.constant 0 : i32
    %c0_i32_1 = arith.constant 0 : i32
    return %arg0, %c0_i32, %c0_i32_0 : i32, i32, i32
  }
}

</mosaic_0001>

<llo_original>
// kernel: tpu_custom_call.1
$region0: #{tpu_custom_call.1}
  #allocation0 [shape = 'u32[]', space=smem, size = 0x4, offset = 0x4, fixed_abs, tag = 'smem constant byte address 0x4 - core index']
  #allocation1 [shape = 'u32[72,128]{1,0:T(1,128)}', space=vmem, size = 0x9000, scoped, tag = 'internal scratch']
  #allocation2 [shape = 'f32[1,1]{1,0:T(1,128)S(1)}', space=vmem, size = 0x200, scoped, tag = 'scoped memory for tpu_custom_call.1']
  %s0 = inlined_call_operand.hbm [shape: f32[2,64,1280], index: 0, kind: input, shape index: {}]
  %s1 = inlined_call_operand.hbm [shape: f32[64,128], index: 1, kind: input, shape index: {}]
  %s2 = inlined_call_operand.<no memory space> [shape: f32[1,1], index: 2, kind: input, shape index: {}]
  %s3 = inlined_call_operand.hbm [shape: f32[1280,640], index: 3, kind: input, shape index: {}]
  %s4 = inlined_call_operand.hbm [shape: f32[1,640], index: 4, kind: input, shape index: {}]
  %s5 = inlined_call_operand.hbm [shape: f32[640,128], index: 5, kind: input, shape index: {}]
  %s6 = inlined_call_operand.hbm [shape: f32[1,128], index: 6, kind: input, shape index: {}]
  %s7 = inlined_call_operand.hbm [shape: f32[2,1,128], index: 7, kind: output, shape index: {}]
  %s8 = sld [smem:[#allocation0]]
  $region85: #{tpu_custom_call.1} parent=0
    _
  %s10 = ssub.s32 1, %s8
  %s11 = scalar_select 0, %s10, %s8
  %v12 = vstv %s2
  %13 = vst [vmem:[#allocation2] sm:$0x1] %v12
  $region1: #{tpu_custom_call.1} parent=0
    #allocation3 [shape = 'u8[655360]{0}', space=vmem, size = 0xa0000, scoped, tag = 'input window, operand 0']
    #allocation4 [shape = 's32[2]{0}', space=sflag, size = 0x8, scoped, tag = 'scoped memory for tpu_custom_call.1']
    #allocation5 [shape = 's32[2]{0}', space=sflag, size = 0x8, scoped, tag = 'scoped memory for tpu_custom_call.1']
    #allocation6 [shape = 'u8[32768]{0}', space=vmem, size = 0x8000, scoped, tag = 'input window, operand 1, single buffered']
    #allocation7 [shape = 's32[1]{0}', space=sflag, size = 0x4, scoped, tag = 'scoped memory for tpu_custom_call.1']
    #allocation8 [shape = 'u8[3276800]{0}', space=vmem, size = 0x320000, scoped, tag = 'input window, operand 3, single buffered']
    #allocation9 [shape = 'u8[2560]{0}', space=vmem, size = 0xc00, scoped, tag = 'input window, operand 4, single buffered']
    #allocation10 [shape = 's32[1]{0}', space=sflag, size = 0x4, scoped, tag = 'scoped memory for tpu_custom_call.1']
    #allocation11 [shape = 'u8[327680]{0}', space=vmem, size = 0x50000, scoped, tag = 'input window, operand 5, single buffered']
    #allocation12 [shape = 'u8[512]{0}', space=vmem, size = 0x400, scoped, tag = 'input window, operand 6, single buffered']
    #allocation13 [shape = 's32[1]{0}', space=sflag, size = 0x4, scoped, tag = 'scoped memory for tpu_custom_call.1']
    #allocation14 [shape = 'u8[1024]{0}', space=vmem, size = 0x400, scoped, tag = 'output window, operand 0']
    %14 = vsyncpa [#allocation4], 0
    %s15 = scalar_lea.sflag [#allocation4], 1
    %16 = vsyncpa %s15, 0
    %17 = vsyncpa [#allocation7], 0
    %18 = vsyncpa [#allocation10], 0
    %19 = vsyncpa [#allocation13], 0
    %20 = vsyncpa [#allocation5], 0
    %s21 = scalar_lea.sflag [#allocation5], 1
    %22 = vsyncpa %s21, 0
    loop: start=0, step=1, limit=4
    $region2: #{tpu_custom_call.1} parent=1 // loop_pre_header
      _
    $region3: #{tpu_custom_call.1} parent=1 // loop_header
      %s24 = sphi 0, %s28
      %p25 = scmp.ge.s32.totalorder %s24, 4
      %s34 = sphi 0, %s36
      %s37 = sphi 0, %s34
      %s38 = sphi 0, %s37
      %s54 = sphi 0, %s38
      %s58 = sphi 0, %s58
      %s60 = sphi 0, %s58
      %s61 = sphi 0, %s60
      %s75 = sphi 0, %s61
      %s79 = sphi 0, %s79
      %s81 = sphi 0, %s79
      %s82 = sphi 0, %s81
      %s96 = sphi 0, %s82
      %s100 = sphi 0, %s100
      %s102 = sphi 0, %s100
      %s103 = sphi 0, %s102
      %s117 = sphi 0, %s103
      %s121 = sphi 0, %s121
      %s123 = sphi 0, %s121
      %s124 = sphi 0, %s123
      %s138 = sphi 0, %s124
      %s142 = sphi 0, %s142
      %s144 = sphi 0, %s142
      %s145 = sphi 0, %s144
      %s159 = sphi 0, %s145
      %s163 = sphi 0, %s163
      %s165 = sphi 0, %s163
      %s166 = sphi 0, %s165
      %s180 = sphi 0, %s166
      %s186 = sphi 0, %s188
      %s189 = sphi 0, %s186
      %s190 = sphi 0, %s189
      %s206 = sphi 0, %s190
    $region4: #{tpu_custom_call.1} parent=1 // loop_header_branch
      %27 = sbr.rel (%p25) target = $region8
    $region5: #{tpu_custom_call.1} parent=1 // loop_body
      %s29 = ssub.s32 %s24, 1
      %s30 = ssub.s32 %s24, 2
      %s31 = sadd.s32 %s24, 1
      %s32 = ssub.s32 %s24, %s31
      %p33 = scmp.eq.s32.totalorder %s32, 0
      %s35 = sadd.s32 %s34, 1
      %s36 = scalar_select %p33, %s34, %s35
      %p39 = pneg %p33
      %p40 = scmp.eq.s32.totalorder %s24, 1
      %p41 = por %p39, %p40
      %p42 = scmp.ne.s32.totalorder %s34, %s37
      %p43 = scmp.eq.s32.totalorder %s24, 0
      %p44 = por %p42, %p43
      %p45 = scmp.ne.s32.totalorder %s34, %s37
      %p46 = scmp.eq.s32.totalorder %s29, 1
      %p47 = por %p45, %p46
      %p48 = scmp.ne.s32.totalorder %s37, %s38
      %p49 = scmp.eq.s32.totalorder %s29, 0
      %p50 = por %p48, %p49
      %p51 = scmp.ne.s32.totalorder %s37, %s38
      %p52 = scmp.eq.s32.totalorder %s30, 1
      %p53 = por %p51, %p52
      %p55 = scmp.ne.s32.totalorder %s38, %s54
      %p56 = scmp.eq.s32.totalorder %s30, 0
      %p57 = por %p55, %p56
      %s59 = sadd.s32 %s58, 1
      %p62 = scmp.eq.s32.totalorder %s24, 1
      %p63 = scmp.ne.s32.totalorder %s58, %s60
      %p64 = scmp.eq.s32.totalorder %s24, 0
      %p65 = por %p63, %p64
      %p66 = scmp.ne.s32.totalorder %s58, %s60
      %p67 = scmp.eq.s32.totalorder %s29, 1
      %p68 = por %p66, %p67
      %p69 = scmp.ne.s32.totalorder %s60, %s61
      %p70 = scmp.eq.s32.totalorder %s29, 0
      %p71 = por %p69, %p70
      %p72 = scmp.ne.s32.totalorder %s60, %s61
      %p73 = scmp.eq.s32.totalorder %s30, 1
      %p74 = por %p72, %p73
      %p76 = scmp.ne.s32.totalorder %s61, %s75
      %p77 = scmp.eq.s32.totalorder %s30, 0
      %p78 = por %p76, %p77
      %s80 = sadd.s32 %s79, 1
      %p83 = scmp.eq.s32.totalorder %s24, 1
      %p84 = scmp.ne.s32.totalorder %s79, %s81
      %p85 = scmp.eq.s32.totalorder %s24, 0
      %p86 = por %p84, %p85
      %p87 = scmp.ne.s32.totalorder %s79, %s81
      %p88 = scmp.eq.s32.totalorder %s29, 1
      %p89 = por %p87, %p88
      %p90 = scmp.ne.s32.totalorder %s81, %s82
      %p91 = scmp.eq.s32.totalorder %s29, 0
      %p92 = por %p90, %p91
      %p93 = scmp.ne.s32.totalorder %s81, %s82
      %p94 = scmp.eq.s32.totalorder %s30, 1
      %p95 = por %p93, %p94
      %p97 = scmp.ne.s32.totalorder %s82, %s96
      %p98 = scmp.eq.s32.totalorder %s30, 0
      %p99 = por %p97, %p98
      %s101 = sadd.s32 %s100, 1
      %p104 = scmp.eq.s32.totalorder %s24, 1
      %p105 = scmp.ne.s32.totalorder %s100, %s102
      %p106 = scmp.eq.s32.totalorder %s24, 0
      %p107 = por %p105, %p106
      %p108 = scmp.ne.s32.totalorder %s100, %s102
      %p109 = scmp.eq.s32.totalorder %s29, 1
      %p110 = por %p108, %p109
      %p111 = scmp.ne.s32.totalorder %s102, %s103
      %p112 = scmp.eq.s32.totalorder %s29, 0
      %p113 = por %p111, %p112
      %p114 = scmp.ne.s32.totalorder %s102, %s103
      %p115 = scmp.eq.s32.totalorder %s30, 1
      %p116 = por %p114, %p115
      %p118 = scmp.ne.s32.totalorder %s103, %s117
      %p119 = scmp.eq.s32.totalorder %s30, 0
      %p120 = por %p118, %p119
      %s122 = sadd.s32 %s121, 1
      %p125 = scmp.eq.s32.totalorder %s24, 1
      %p126 = scmp.ne.s32.totalorder %s121, %s123
      %p127 = scmp.eq.s32.totalorder %s24, 0
      %p128 = por %p126, %p127
      %p129 = scmp.ne.s32.totalorder %s121, %s123
      %p130 = scmp.eq.s32.totalorder %s29, 1
      %p131 = por %p129, %p130
      %p132 = scmp.ne.s32.totalorder %s123, %s124
      %p133 = scmp.eq.s32.totalorder %s29, 0
      %p134 = por %p132, %p133
      %p135 = scmp.ne.s32.totalorder %s123, %s124
      %p136 = scmp.eq.s32.totalorder %s30, 1
      %p137 = por %p135, %p136
      %p139 = scmp.ne.s32.totalorder %s124, %s138
      %p140 = scmp.eq.s32.totalorder %s30, 0
      %p141 = por %p139, %p140
      %s143 = sadd.s32 %s142, 1
      %p146 = scmp.eq.s32.totalorder %s24, 1
      %p147 = scmp.ne.s32.totalorder %s142, %s144
      %p148 = scmp.eq.s32.totalorder %s24, 0
      %p149 = por %p147, %p148
      %p150 = scmp.ne.s32.totalorder %s142, %s144
      %p151 = scmp.eq.s32.totalorder %s29, 1
      %p152 = por %p150, %p151
      %p153 = scmp.ne.s32.totalorder %s144, %s145
      %p154 = scmp.eq.s32.totalorder %s29, 0
      %p155 = por %p153, %p154
      %p156 = scmp.ne.s32.totalorder %s144, %s145
      %p157 = scmp.eq.s32.totalorder %s30, 1
      %p158 = por %p156, %p157
      %p160 = scmp.ne.s32.totalorder %s145, %s159
      %p161 = scmp.eq.s32.totalorder %s30, 0
      %p162 = por %p160, %p161
      %s164 = sadd.s32 %s163, 1
      %p167 = scmp.eq.s32.totalorder %s24, 1
      %p168 = scmp.ne.s32.totalorder %s163, %s165
      %p169 = scmp.eq.s32.totalorder %s24, 0
      %p170 = por %p168, %p169
      %p171 = scmp.ne.s32.totalorder %s163, %s165
      %p172 = scmp.eq.s32.totalorder %s29, 1
      %p173 = por %p171, %p172
      %p174 = scmp.ne.s32.totalorder %s165, %s166
      %p175 = scmp.eq.s32.totalorder %s29, 0
      %p176 = por %p174, %p175
      %p177 = scmp.ne.s32.totalorder %s165, %s166
      %p178 = scmp.eq.s32.totalorder %s30, 1
      %p179 = por %p177, %p178
      %p181 = scmp.ne.s32.totalorder %s166, %s180
      %p182 = scmp.eq.s32.totalorder %s30, 0
      %p183 = por %p181, %p182
      %s184 = ssub.s32 %s24, %s31
      %p185 = scmp.eq.s32.totalorder %s184, 0
      %s187 = sadd.s32 %s186, 1
      %s188 = scalar_select %p185, %s186, %s187
      %p191 = pneg %p185
      %p192 = scmp.eq.s32.totalorder %s24, 1
      %p193 = por %p191, %p192
      %p194 = scmp.ne.s32.totalorder %s186, %s189
      %p195 = scmp.eq.s32.totalorder %s24, 0
      %p196 = por %p194, %p195
      %p197 = scmp.ne.s32.totalorder %s186, %s189
      %p198 = scmp.eq.s32.totalorder %s29, 1
      %p199 = por %p197, %p198
      %p200 = scmp.ne.s32.totalorder %s189, %s190
      %p201 = scmp.eq.s32.totalorder %s29, 0
      %p202 = por %p200, %p201
      %p203 = scmp.ne.s32.totalorder %s189, %s190
      %p204 = scmp.eq.s32.totalorder %s30, 1
      %p205 = por %p203, %p204
      %p207 = scmp.ne.s32.totalorder %s190, %s206
      %p208 = scmp.eq.s32.totalorder %s30, 0
      %p209 = por %p207, %p208
      %p210 = scmp.le.s32.totalorder 1, %s24
      %p211 = scmp.lt.s32.totalorder %s24, 3
      %p212 = pnand %p210, %p211
      %p213 = pneg %p212
      // Predicated region
      $region9: #{tpu_custom_call.1} parent=5 // pred_check
        _
      $region10: #{tpu_custom_call.1} parent=5 // pred_check_branch
        %215 = sbr.rel (%p212) target = $region12
      $region11: #{tpu_custom_call.1} parent=5 // pred_region
        %s216 = ssub.s32 %s24, 1
        // Predicated region
        $region13: #{tpu_custom_call.1} parent=11 // pred_check
          %p217 = pneg %p71
        $region14: #{tpu_custom_call.1} parent=11 // pred_check_branch
          %219 = sbr.rel (%p217) target = $region16
        $region15: #{tpu_custom_call.1} parent=11 // pred_region
          %221 = vsyncadd [#allocation7], 0
          %s222 = sshll.u32 %s1, 4
          %s223 = int_to_ptr.hbm [resolvable:$true] %s222
          %s224 = sshll.u32 [#allocation6], 4
          %s225 = int_to_ptr.vmem [resolvable:$true] %s224
          %230 = dma.hbm_to_vmem [thread:$0]  %s223, 1024, %s225, [#allocation7], 128, 128, 8
        $region16: #{tpu_custom_call.1} parent=11 // pred_fallthru
          _
        // Predicated region
        $region17: #{tpu_custom_call.1} parent=11 // pred_check
          %p231 = pneg %p92
        $region18: #{tpu_custom_call.1} parent=11 // pred_check_branch
          %233 = sbr.rel (%p231) target = $region20
        $region19: #{tpu_custom_call.1} parent=11 // pred_region
          _
        $region20: #{tpu_custom_call.1} parent=11 // pred_fallthru
          _
        // Predicated region
        $region21: #{tpu_custom_call.1} parent=11 // pred_check
          %p234 = pneg %p113
        $region22: #{tpu_custom_call.1} parent=11 // pred_check_branch
          %236 = sbr.rel (%p234) target = $region24
        $region23: #{tpu_custom_call.1} parent=11 // pred_region
          %238 = vsyncadd [#allocation7], 0
          %s239 = sshll.u32 %s3, 4
          %s240 = int_to_ptr.hbm [resolvable:$true] %s239
          %s241 = sshll.u32 [#allocation8], 4
          %s242 = int_to_ptr.vmem [resolvable:$true] %s241
          %247 = dma.hbm_to_vmem [thread:$0]  %s240, 102400, %s242, [#allocation7], 640, 640, 40
        $region24: #{tpu_custom_call.1} parent=11 // pred_fallthru
          _
        // Predicated region
        $region25: #{tpu_custom_call.1} parent=11 // pred_check
          %p248 = pneg %p134
        $region26: #{tpu_custom_call.1} parent=11 // pred_check_branch
          %250 = sbr.rel (%p248) target = $region28
        $region27: #{tpu_custom_call.1} parent=11 // pred_region
          %252 = vsyncadd [#allocation10], 0
          %s254 = sshll.u32 %s4, 4
          %s255 = int_to_ptr.hbm [resolvable:$true] %s254
          %s256 = sshll.u32 [#allocation9], 4
          %s257 = int_to_ptr.vmem [resolvable:$true] %s256
          %259 = dma.hbm_to_vmem [thread:$0]  %s255, 80, %s257, [#allocation10]
        $region28: #{tpu_custom_call.1} parent=11 // pred_fallthru
          _
        // Predicated region
        $region29: #{tpu_custom_call.1} parent=11 // pred_check
          %p260 = pneg %p155
        $region30: #{tpu_custom_call.1} parent=11 // pred_check_branch
          %262 = sbr.rel (%p260) target = $region32
        $region31: #{tpu_custom_call.1} parent=11 // pred_region
          %264 = vsyncadd [#allocation10], 0
          %s265 = sshll.u32 %s5, 4
          %s266 = int_to_ptr.hbm [resolvable:$true] %s265
          %s267 = sshll.u32 [#allocation11], 4
          %s268 = int_to_ptr.vmem [resolvable:$true] %s267
          %273 = dma.hbm_to_vmem [thread:$0]  %s266, 10240, %s268, [#allocation10], 128, 128, 8
        $region32: #{tpu_custom_call.1} parent=11 // pred_fallthru
          _
        // Predicated region
        $region33: #{tpu_custom_call.1} parent=11 // pred_check
          %p274 = pneg %p176
        $region34: #{tpu_custom_call.1} parent=11 // pred_check_branch
          %276 = sbr.rel (%p274) target = $region36
        $region35: #{tpu_custom_call.1} parent=11 // pred_region
          %278 = vsyncadd [#allocation13], 0
          %s280 = sshll.u32 %s6, 4
          %s281 = int_to_ptr.hbm [resolvable:$true] %s280
          %s282 = sshll.u32 [#allocation12], 4
          %s283 = int_to_ptr.vmem [resolvable:$true] %s282
          %285 = dma.hbm_to_vmem [thread:$0]  %s281, 16, %s283, [#allocation13]
        $region36: #{tpu_custom_call.1} parent=11 // pred_fallthru
          _
      $region12: #{tpu_custom_call.1} parent=5 // pred_fallthru
        _
      %p286 = scmp.lt.s32.totalorder %s24, 2
      // Predicated region
      $region37: #{tpu_custom_call.1} parent=5 // pred_check
        %p287 = pneg %p286
      $region38: #{tpu_custom_call.1} parent=5 // pred_check_branch
        %289 = sbr.rel (%p287) target = $region40
      $region39: #{tpu_custom_call.1} parent=5 // pred_region
        // Predicated region
        $region41: #{tpu_custom_call.1} parent=39 // pred_check
          %p290 = pneg %p44
        $region42: #{tpu_custom_call.1} parent=39 // pred_check_branch
          %292 = sbr.rel (%p290) target = $region44
        $region43: #{tpu_custom_call.1} parent=39 // pred_region
          %s293 = sand.u32 %s34, 1
          %s294 = scalar_lea.sflag [#allocation4], %s293
          %s295 = sand.u32 %s34, 1
          %s296 = smul.addr %s295, 640
          %s297 = scalar_lea.vmem [#allocation3], %s296
          %299 = vsyncadd %s294, 0
          %s300 = smul.addr %s24, 80
          %s301 = smul.addr %s300, 8
          %s302 = scalar_lea.hbm %s0, %s301
          %s303 = sshll.u32 %s302, 4
          %s304 = int_to_ptr.hbm [resolvable:$true] %s303
          %s305 = sshll.u32 %s297, 4
          %s306 = int_to_ptr.vmem [resolvable:$true] %s305
          %311 = dma.hbm_to_vmem [thread:$0]  %s304, 10240, %s306, %s294, 1280, 1280, 80
        $region44: #{tpu_custom_call.1} parent=39 // pred_fallthru
          _
      $region40: #{tpu_custom_call.1} parent=5 // pred_fallthru
        _
      %p312 = scmp.le.s32.totalorder 1, %s24
      %p313 = scmp.lt.s32.totalorder %s24, 3
      %p314 = pnand %p312, %p313
      %p315 = pneg %p314
      // Predicated region
      $region45: #{tpu_custom_call.1} parent=5 // pred_check
        _
      $region46: #{tpu_custom_call.1} parent=5 // pred_check_branch
        %317 = sbr.rel (%p314) target = $region48
      $region47: #{tpu_custom_call.1} parent=5 // pred_region
        %s318 = ssub.s32 %s24, 1
        %s319 = sand.u32 %s37, 1
        %s320 = scalar_lea.sflag [#allocation4], %s319
        %s321 = sand.u32 %s37, 1
        %s322 = smul.addr %s321, 640
        %s323 = scalar_lea.vmem [#allocation3], %s322
        // Predicated region
        $region49: #{tpu_custom_call.1} parent=47 // pred_check
          %p324 = pneg %p50
        $region50: #{tpu_custom_call.1} parent=47 // pred_check_branch
          %326 = sbr.rel (%p324) target = $region52
        $region51: #{tpu_custom_call.1} parent=47 // pred_region
          %328 = dma.done %s320, 10240
        $region52: #{tpu_custom_call.1} parent=47 // pred_fallthru
          _
        // Predicated region
        $region53: #{tpu_custom_call.1} parent=47 // pred_check
          %p329 = pneg %p71
        $region54: #{tpu_custom_call.1} parent=47 // pred_check_branch
          %331 = sbr.rel (%p329) target = $region56
        $region55: #{tpu_custom_call.1} parent=47 // pred_region
          %333 = dma.done [#allocation7], 1024
        $region56: #{tpu_custom_call.1} parent=47 // pred_fallthru
          _
        // Predicated region
        $region57: #{tpu_custom_call.1} parent=47 // pred_check
          %p334 = pneg %p113
        $region58: #{tpu_custom_call.1} parent=47 // pred_check_branch
          %336 = sbr.rel (%p334) target = $region60
        $region59: #{tpu_custom_call.1} parent=47 // pred_region
          %338 = dma.done [#allocation7], 102400
        $region60: #{tpu_custom_call.1} parent=47 // pred_fallthru
          _
        // Predicated region
        $region61: #{tpu_custom_call.1} parent=47 // pred_check
          %p339 = pneg %p134
        $region62: #{tpu_custom_call.1} parent=47 // pred_check_branch
          %341 = sbr.rel (%p339) target = $region64
        $region63: #{tpu_custom_call.1} parent=47 // pred_region
          %343 = dma.done [#allocation10], 80
        $region64: #{tpu_custom_call.1} parent=47 // pred_fallthru
          _
        // Predicated region
        $region65: #{tpu_custom_call.1} parent=47 // pred_check
          %p344 = pneg %p155
        $region66: #{tpu_custom_call.1} parent=47 // pred_check_branch
          %346 = sbr.rel (%p344) target = $region68
        $region67: #{tpu_custom_call.1} parent=47 // pred_region
          %348 = dma.done [#allocation10], 10240
        $region68: #{tpu_custom_call.1} parent=47 // pred_fallthru
          _
        // Predicated region
        $region69: #{tpu_custom_call.1} parent=47 // pred_check
          %p349 = pneg %p176
        $region70: #{tpu_custom_call.1} parent=47 // pred_check_branch
          %351 = sbr.rel (%p349) target = $region72
        $region71: #{tpu_custom_call.1} parent=47 // pred_region
          %353 = dma.done [#allocation13], 16
        $region72: #{tpu_custom_call.1} parent=47 // pred_fallthru
          _
        %s354 = sand.u32 %s37, 1
        %s355 = scalar_lea.sflag [#allocation4], %s354
        %s356 = sand.u32 %s37, 1
        %s357 = smul.addr %s356, 640
        %s358 = scalar_lea.vmem [#allocation3], %s357
        %p359 = pneg %p50
        %p360 = pneg %p47
        %p361 = pneg %p71
        %p362 = pneg %p68
        %p363 = pneg %p92
        %p364 = pneg %p89
        %p365 = pneg %p113
        %p366 = pneg %p110
        %p367 = pneg %p134
        %p368 = pneg %p131
        %p369 = pneg %p155
        %p370 = pneg %p152
        %p371 = pneg %p176
        %p372 = pneg %p173
        %p373 = pneg %p202
        %p374 = pneg %p199
        %s375 = sand.u32 %s189, 1
        %s376 = scalar_lea.sflag [#allocation5], %s375
        %s377 = sand.u32 %s189, 1
        %s378 = scalar_lea.vmem [#allocation14], %s377
        %v379 = vld [vmem:[%s323] sm:$0xff]
        %v380 = vld [vmem:[%s323 + $0x8] sm:$0xff]
        %v381 = vld [vmem:[%s323 + $0x10] sm:$0xff]
        %v382 = vld [vmem:[%s323 + $0x18] sm:$0xff]
        %v383 = vld [vmem:[%s323 + $0x20] sm:$0xff]
        %v384 = vld [vmem:[%s323 + $0x28] sm:$0xff]
        %v385 = vld [vmem:[%s323 + $0x30] sm:$0xff]
        %v386 = vld [vmem:[%s323 + $0x38] sm:$0xff]
        %v387 = vld [vmem:[%s323 + $0x40] sm:$0xff]
        %v388 = vld [vmem:[%s323 + $0x48] sm:$0xff]
        %v389 = vld [vmem:[%s323 + $0x50] sm:$0xff]
        %v390 = vld [vmem:[%s323 + $0x58] sm:$0xff]
        %v391 = vld [vmem:[%s323 + $0x60] sm:$0xff]
        %v392 = vld [vmem:[%s323 + $0x68] sm:$0xff]
        %v393 = vld [vmem:[%s323 + $0x70] sm:$0xff]
        %v394 = vld [vmem:[%s323 + $0x78] sm:$0xff]
        %v395 = vld [vmem:[%s323 + $0x80] sm:$0xff]
        %v396 = vld [vmem:[%s323 + $0x88] sm:$0xff]
        %v397 = vld [vmem:[%s323 + $0x90] sm:$0xff]
        %v398 = vld [vmem:[%s323 + $0x98] sm:$0xff]
        %v399 = vld [vmem:[%s323 + $0xa0] sm:$0xff]
        %v400 = vld [vmem:[%s323 + $0xa8] sm:$0xff]
        %v401 = vld [vmem:[%s323 + $0xb0] sm:$0xff]
        %v402 = vld [vmem:[%s323 + $0xb8] sm:$0xff]
        %v403 = vld [vmem:[%s323 + $0xc0] sm:$0xff]
        %v404 = vld [vmem:[%s323 + $0xc8] sm:$0xff]
        %v405 = vld [vmem:[%s323 + $0xd0] sm:$0xff]
        %v406 = vld [vmem:[%s323 + $0xd8] sm:$0xff]
        %v407 = vld [vmem:[%s323 + $0xe0] sm:$0xff]
        %v408 = vld [vmem:[%s323 + $0xe8] sm:$0xff]
        %v409 = vld [vmem:[%s323 + $0xf0] sm:$0xff]
        %v410 = vld [vmem:[%s323 + $0xf8] sm:$0xff]
        %v411 = vld [vmem:[%s323 + $0x100] sm:$0xff]
        %v412 = vld [vmem:[%s323 + $0x108] sm:$0xff]
        %v413 = vld [vmem:[%s323 + $0x110] sm:$0xff]
        %v414 = vld [vmem:[%s323 + $0x118] sm:$0xff]
        %v415 = vld [vmem:[%s323 + $0x120] sm:$0xff]
        %v416 = vld [vmem:[%s323 + $0x128] sm:$0xff]
        %v417 = vld [vmem:[%s323 + $0x130] sm:$0xff]
        %v418 = vld [vmem:[%s323 + $0x138] sm:$0xff]
        %v419 = vld [vmem:[%s323 + $0x140] sm:$0xff]
        %v420 = vld [vmem:[%s323 + $0x148] sm:$0xff]
        %v421 = vld [vmem:[%s323 + $0x150] sm:$0xff]
        %v422 = vld [vmem:[%s323 + $0x158] sm:$0xff]
        %v423 = vld [vmem:[%s323 + $0x160] sm:$0xff]
        %v424 = vld [vmem:[%s323 + $0x168] sm:$0xff]
        %v425 = vld [vmem:[%s323 + $0x170] sm:$0xff]
        %v426 = vld [vmem:[%s323 + $0x178] sm:$0xff]
        %v427 = vld [vmem:[%s323 + $0x180] sm:$0xff]
        %v428 = vld [vmem:[%s323 + $0x188] sm:$0xff]
        %v429 = vld [vmem:[%s323 + $0x190] sm:$0xff]
        %v430 = vld [vmem:[%s323 + $0x198] sm:$0xff]
        %v431 = vld [vmem:[%s323 + $0x1a0] sm:$0xff]
        %v432 = vld [vmem:[%s323 + $0x1a8] sm:$0xff]
        %v433 = vld [vmem:[%s323 + $0x1b0] sm:$0xff]
        %v434 = vld [vmem:[%s323 + $0x1b8] sm:$0xff]
        %v435 = vld [vmem:[%s323 + $0x1c0] sm:$0xff]
        %v436 = vld [vmem:[%s323 + $0x1c8] sm:$0xff]
        %v437 = vld [vmem:[%s323 + $0x1d0] sm:$0xff]
        %v438 = vld [vmem:[%s323 + $0x1d8] sm:$0xff]
        %v439 = vld [vmem:[%s323 + $0x1e0] sm:$0xff]
        %v440 = vld [vmem:[%s323 + $0x1e8] sm:$0xff]
        %v441 = vld [vmem:[%s323 + $0x1f0] sm:$0xff]
        %v442 = vld [vmem:[%s323 + $0x1f8] sm:$0xff]
        %v443 = vld [vmem:[%s323 + $0x200] sm:$0xff]
        %v444 = vld [vmem:[%s323 + $0x208] sm:$0xff]
        %v445 = vld [vmem:[%s323 + $0x210] sm:$0xff]
        %v446 = vld [vmem:[%s323 + $0x218] sm:$0xff]
        %v447 = vld [vmem:[%s323 + $0x220] sm:$0xff]
        %v448 = vld [vmem:[%s323 + $0x228] sm:$0xff]
        %v449 = vld [vmem:[%s323 + $0x230] sm:$0xff]
        %v450 = vld [vmem:[%s323 + $0x238] sm:$0xff]
        %v451 = vld [vmem:[%s323 + $0x240] sm:$0xff]
        %v452 = vld [vmem:[%s323 + $0x248] sm:$0xff]
        %v453 = vld [vmem:[%s323 + $0x250] sm:$0xff]
        %v454 = vld [vmem:[%s323 + $0x258] sm:$0xff]
        %v455 = vld [vmem:[%s323 + $0x260] sm:$0xff]
        %v456 = vld [vmem:[%s323 + $0x268] sm:$0xff]
        %v457 = vld [vmem:[%s323 + $0x270] sm:$0xff]
        %v458 = vld [vmem:[%s323 + $0x278] sm:$0xff]
        %v459 = vadd.f32 %v379, %v380
        %v460 = vadd.f32 %v459, %v381
        %v461 = vadd.f32 %v460, %v382
        %v462 = vadd.f32 %v461, %v383
        %v463 = vadd.f32 %v462, %v384
        %v464 = vadd.f32 %v463, %v385
        %v465 = vadd.f32 %v464, %v386
        %v466 = vadd.f32 %v465, %v387
        %v467 = vadd.f32 %v466, %v388
        %468 = vadd.xlane.f32.xlu0 %v467
        %v469 = vpop.xlane.xlu0 %468
        %v470 = vadd.f32 %v389, %v390
        %v471 = vadd.f32 %v470, %v391
        %v472 = vadd.f32 %v471, %v392
        %v473 = vadd.f32 %v472, %v393
        %v474 = vadd.f32 %v473, %v394
        %v475 = vadd.f32 %v474, %v395
        %v476 = vadd.f32 %v475, %v396
        %v477 = vadd.f32 %v476, %v397
        %v478 = vadd.f32 %v477, %v398
        %479 = vadd.xlane.f32.xlu0 %v478
        %v480 = vpop.xlane.xlu0 %479
        %v481 = vadd.f32 %v399, %v400
        %v482 = vadd.f32 %v481, %v401
        %v483 = vadd.f32 %v482, %v402
        %v484 = vadd.f32 %v483, %v403
        %v485 = vadd.f32 %v484, %v404
        %v486 = vadd.f32 %v485, %v405
        %v487 = vadd.f32 %v486, %v406
        %v488 = vadd.f32 %v487, %v407
        %v489 = vadd.f32 %v488, %v408
        %490 = vadd.xlane.f32.xlu0 %v489
        %v491 = vpop.xlane.xlu0 %490
        %v492 = vadd.f32 %v409, %v410
        %v493 = vadd.f32 %v492, %v411
        %v494 = vadd.f32 %v493, %v412
        %v495 = vadd.f32 %v494, %v413
        %v496 = vadd.f32 %v495, %v414
        %v497 = vadd.f32 %v496, %v415
        %v498 = vadd.f32 %v497, %v416
        %v499 = vadd.f32 %v498, %v417
        %v500 = vadd.f32 %v499, %v418
        %501 = vadd.xlane.f32.xlu0 %v500
        %v502 = vpop.xlane.xlu0 %501
        %v503 = vadd.f32 %v419, %v420
        %v504 = vadd.f32 %v503, %v421
        %v505 = vadd.f32 %v504, %v422
        %v506 = vadd.f32 %v505, %v423
        %v507 = vadd.f32 %v506, %v424
        %v508 = vadd.f32 %v507, %v425
        %v509 = vadd.f32 %v508, %v426
        %v510 = vadd.f32 %v509, %v427
        %v511 = vadd.f32 %v510, %v428
        %512 = vadd.xlane.f32.xlu0 %v511
        %v513 = vpop.xlane.xlu0 %512
        %v514 = vadd.f32 %v429, %v430
        %v515 = vadd.f32 %v514, %v431
        %v516 = vadd.f32 %v515, %v432
        %v517 = vadd.f32 %v516, %v433
        %v518 = vadd.f32 %v517, %v434
        %v519 = vadd.f32 %v518, %v435
        %v520 = vadd.f32 %v519, %v436
        %v521 = vadd.f32 %v520, %v437
        %v522 = vadd.f32 %v521, %v438
        %523 = vadd.xlane.f32.xlu0 %v522
        %v524 = vpop.xlane.xlu0 %523
        %v525 = vadd.f32 %v439, %v440
        %v526 = vadd.f32 %v525, %v441
        %v527 = vadd.f32 %v526, %v442
        %v528 = vadd.f32 %v527, %v443
        %v529 = vadd.f32 %v528, %v444
        %v530 = vadd.f32 %v529, %v445
        %v531 = vadd.f32 %v530, %v446
        %v532 = vadd.f32 %v531, %v447
        %v533 = vadd.f32 %v532, %v448
        %534 = vadd.xlane.f32.xlu0 %v533
        %v535 = vpop.xlane.xlu0 %534
        %v536 = vadd.f32 %v449, %v450
        %v537 = vadd.f32 %v536, %v451
        %v538 = vadd.f32 %v537, %v452
        %v539 = vadd.f32 %v538, %v453
        %v540 = vadd.f32 %v539, %v454
        %v541 = vadd.f32 %v540, %v455
        %v542 = vadd.f32 %v541, %v456
        %v543 = vadd.f32 %v542, %v457
        %v544 = vadd.f32 %v543, %v458
        %545 = vadd.xlane.f32.xlu0 %v544
        %v546 = vpop.xlane.xlu0 %545
        %v547 = vrcp.pop 1280.0
        %v548 = vmul.f32 1280.0, %v547
        %v549 = vsub.f32 1.0, %v548
        %v550 = vmul.f32 %v547, %v549
        %v551 = vadd.f32 %v547, %v550
        %vm552 = vweird.f32 %v547
        %v553 = vsel %vm552, %v547, %v551
        %v554 = vmul.f32 %v469, %v553
        %v555 = vmul.f32 %v480, %v553
        %v556 = vmul.f32 %v491, %v553
        %v557 = vmul.f32 %v502, %v553
        %v558 = vmul.f32 %v513, %v553
        %v559 = vmul.f32 %v524, %v553
        %v560 = vmul.f32 %v535, %v553
        %v561 = vmul.f32 %v546, %v553
        %v562 = vmax.f32 %v379, %v380
        %v563 = vmax.f32 %v562, %v381
        %v564 = vmax.f32 %v563, %v382
        %v565 = vmax.f32 %v564, %v383
        %v566 = vmax.f32 %v565, %v384
        %v567 = vmax.f32 %v566, %v385
        %v568 = vmax.f32 %v567, %v386
        %v569 = vmax.f32 %v568, %v387
        %v570 = vmax.f32 %v569, %v388
        %571 = vmax.xlane.f32.xlu0 %v570
        %v572 = vpop.xlane.xlu0 %571
        %v573 = vmax.f32 %v389, %v390
        %v574 = vmax.f32 %v573, %v391
        %v575 = vmax.f32 %v574, %v392
        %v576 = vmax.f32 %v575, %v393
        %v577 = vmax.f32 %v576, %v394
        %v578 = vmax.f32 %v577, %v395
        %v579 = vmax.f32 %v578, %v396
        %v580 = vmax.f32 %v579, %v397
        %v581 = vmax.f32 %v580, %v398
        %582 = vmax.xlane.f32.xlu0 %v581
        %v583 = vpop.xlane.xlu0 %582
        %v584 = vmax.f32 %v399, %v400
        %v585 = vmax.f32 %v584, %v401
        %v586 = vmax.f32 %v585, %v402
        %v587 = vmax.f32 %v586, %v403
        %v588 = vmax.f32 %v587, %v404
        %v589 = vmax.f32 %v588, %v405
        %v590 = vmax.f32 %v589, %v406
        %v591 = vmax.f32 %v590, %v407
        %v592 = vmax.f32 %v591, %v408
        %593 = vmax.xlane.f32.xlu0 %v592
        %v594 = vpop.xlane.xlu0 %593
        %v595 = vmax.f32 %v409, %v410
        %v596 = vmax.f32 %v595, %v411
        %v597 = vmax.f32 %v596, %v412
        %v598 = vmax.f32 %v597, %v413
        %v599 = vmax.f32 %v598, %v414
        %v600 = vmax.f32 %v599, %v415
        %v601 = vmax.f32 %v600, %v416
        %v602 = vmax.f32 %v601, %v417
        %v603 = vmax.f32 %v602, %v418
        %604 = vmax.xlane.f32.xlu0 %v603
        %v605 = vpop.xlane.xlu0 %604
        %v606 = vmax.f32 %v419, %v420
        %v607 = vmax.f32 %v606, %v421
        %v608 = vmax.f32 %v607, %v422
        %v609 = vmax.f32 %v608, %v423
        %v610 = vmax.f32 %v609, %v424
        %v611 = vmax.f32 %v610, %v425
        %v612 = vmax.f32 %v611, %v426
        %v613 = vmax.f32 %v612, %v427
        %v614 = vmax.f32 %v613, %v428
        %615 = vmax.xlane.f32.xlu0 %v614
        %v616 = vpop.xlane.xlu0 %615
        %v617 = vmax.f32 %v429, %v430
        %v618 = vmax.f32 %v617, %v431
        %v619 = vmax.f32 %v618, %v432
        %v620 = vmax.f32 %v619, %v433
        %v621 = vmax.f32 %v620, %v434
        %v622 = vmax.f32 %v621, %v435
        %v623 = vmax.f32 %v622, %v436
        %v624 = vmax.f32 %v623, %v437
        %v625 = vmax.f32 %v624, %v438
        %626 = vmax.xlane.f32.xlu0 %v625
        %v627 = vpop.xlane.xlu0 %626
        %v628 = vmax.f32 %v439, %v440
        %v629 = vmax.f32 %v628, %v441
        %v630 = vmax.f32 %v629, %v442
        %v631 = vmax.f32 %v630, %v443
        %v632 = vmax.f32 %v631, %v444
        %v633 = vmax.f32 %v632, %v445
        %v634 = vmax.f32 %v633, %v446
        %v635 = vmax.f32 %v634, %v447
        %v636 = vmax.f32 %v635, %v448
        %637 = vmax.xlane.f32.xlu0 %v636
        %v638 = vpop.xlane.xlu0 %637
        %v639 = vmax.f32 %v449, %v450
        %v640 = vmax.f32 %v639, %v451
        %v641 = vmax.f32 %v640, %v452
        %v642 = vmax.f32 %v641, %v453
        %v643 = vmax.f32 %v642, %v454
        %v644 = vmax.f32 %v643, %v455
        %v645 = vmax.f32 %v644, %v456
        %v646 = vmax.f32 %v645, %v457
        %v647 = vmax.f32 %v646, %v458
        %648 = vmax.xlane.f32.xlu0 %v647
        %v649 = vpop.xlane.xlu0 %648
        %v650 = vld [vmem:[#allocation6] sm:$0xff]
        %v651 = vld [vmem:[#allocation6 + $0x8] sm:$0xff]
        %v652 = vld [vmem:[#allocation6 + $0x10] sm:$0xff]
        %v653 = vld [vmem:[#allocation6 + $0x18] sm:$0xff]
        %v654 = vld [vmem:[#allocation6 + $0x20] sm:$0xff]
        %v655 = vld [vmem:[#allocation6 + $0x28] sm:$0xff]
        %v656 = vld [vmem:[#allocation6 + $0x30] sm:$0xff]
        %v657 = vld [vmem:[#allocation6 + $0x38] sm:$0xff]
        %v658 = vld [vmem:[#allocation2] sm:$0x1]
        %v660 = vperm.slane %v658, 0
        %662 = vmatpush.msra.mxu0 %v649
        %663 = vmatpush.msra.mxu0 %v638
        %664 = vmatpush.msra.mxu0 %v627
        %665 = vmatpush.msra.mxu0 %v616
        %666 = vmatpush.msra.mxu0 %v605
        %667 = vmatpush.msra.mxu0 %v594
        %668 = vmatpush.msra.mxu0 %v583
        %669 = vmatpush.msra.mxu0 %v572
        %670 = vmatpush.msra.mxu0 %v561
        %671 = vmatpush.msra.mxu0 %v560
        %672 = vmatpush.msra.mxu0 %v559
        %673 = vmatpush.msra.mxu0 %v558
        %674 = vmatpush.msra.mxu0 %v557
        %675 = vmatpush.msra.mxu0 %v556
        %676 = vmatpush.msra.mxu0 %v555
        %677 = vmatpush.msra.mxu0 %v554
        %678 = vmatmul.f32.gmra.mxu0 %v650
        %v679 = vpop.f32.mrf.mxu0
        %v680 = vadd.f32 %v660, %v679
        %681 = vmatmul.f32.gmra.mxu0 %v651
        %v682 = vpop.f32.mrf.mxu0
        %v683 = vadd.f32 %v660, %v682
        %684 = vmatmul.f32.gmra.mxu0 %v652
        %v685 = vpop.f32.mrf.mxu0
        %v686 = vadd.f32 %v660, %v685
        %687 = vmatmul.f32.gmra.mxu0 %v653
        %v688 = vpop.f32.mrf.mxu0
        %v689 = vadd.f32 %v660, %v688
        %690 = vmatmul.f32.gmra.mxu0 %v654
        %v691 = vpop.f32.mrf.mxu0
        %v692 = vadd.f32 %v660, %v691
        %693 = vmatmul.f32.gmra.mxu0 %v655
        %v694 = vpop.f32.mrf.mxu0
        %v695 = vadd.f32 %v660, %v694
        %696 = vmatmul.f32.gmra.mxu0 %v656
        %v697 = vpop.f32.mrf.mxu0
        %v698 = vadd.f32 %v660, %v697
        %699 = vmatmul.f32.gmra.mxu0 %v657
        %v700 = vpop.f32.mrf.mxu0
        %v701 = vadd.f32 %v660, %v700
        %702 = vdwg.mxu0
        %v703 = vxor.u32 %v680, 2147483648
        %v704 = vxor.u32 %v683, 2147483648
        %v705 = vxor.u32 %v686, 2147483648
        %v706 = vxor.u32 %v689, 2147483648
        %v707 = vxor.u32 %v692, 2147483648
        %v708 = vxor.u32 %v695, 2147483648
        %v709 = vxor.u32 %v698, 2147483648
        %v710 = vxor.u32 %v701, 2147483648
        %v711 = vmul.f32 %v703, 1.442695
        %v712 = vpow.pop %v711
        %v713 = vmul.f32 %v704, 1.442695
        %v714 = vpow.pop %v713
        %v715 = vmul.f32 %v705, 1.442695
        %v716 = vpow.pop %v715
        %v717 = vmul.f32 %v706, 1.442695
        %v718 = vpow.pop %v717
        %v719 = vmul.f32 %v707, 1.442695
        %v720 = vpow.pop %v719
        %v721 = vmul.f32 %v708, 1.442695
        %v722 = vpow.pop %v721
        %v723 = vmul.f32 %v709, 1.442695
        %v724 = vpow.pop %v723
        %v725 = vmul.f32 %v710, 1.442695
        %v726 = vpow.pop %v725
        %v727 = vadd.f32 %v712, 1.0
        %v728 = vadd.f32 %v714, 1.0
        %v729 = vadd.f32 %v716, 1.0
        %v730 = vadd.f32 %v718, 1.0
        %v731 = vadd.f32 %v720, 1.0
        %v732 = vadd.f32 %v722, 1.0
        %v733 = vadd.f32 %v724, 1.0
        %v734 = vadd.f32 %v726, 1.0
        %v735 = vrcp.pop %v727
        %v736 = vmul.f32 %v727, %v735
        %v737 = vsub.f32 1.0, %v736
        %v738 = vmul.f32 %v735, %v737
        %v739 = vadd.f32 %v735, %v738
        %vm740 = vweird.f32 %v727
        %vm741 = vweird.f32 %v735
        %vm742 = vmor %vm740, %vm741
        %v743 = vsel %vm742, %v735, %v739
        %v744 = vand.u32 2147483647, %v727
        %vm745 = vcmp.eq.f32.partialorder %v744, 8.507059e+37
        %v746 = vand.u32 %v727, 2147483648
        %v747 = vor.u32 1.1754944e-38, %v746
        %v748 = vsel %vm745, %v747, %v743
        %v749 = vmul.f32 1.0, %v748
        %v750 = vrcp.pop %v728
        %v751 = vmul.f32 %v728, %v750
        %v752 = vsub.f32 1.0, %v751
        %v753 = vmul.f32 %v750, %v752
        %v754 = vadd.f32 %v750, %v753
        %vm755 = vweird.f32 %v728
        %vm756 = vweird.f32 %v750
        %vm757 = vmor %vm755, %vm756
        %v758 = vsel %vm757, %v750, %v754
        %v759 = vand.u32 2147483647, %v728
        %vm760 = vcmp.eq.f32.partialorder %v759, 8.507059e+37
        %v761 = vand.u32 %v728, 2147483648
        %v762 = vor.u32 1.1754944e-38, %v761
        %v763 = vsel %vm760, %v762, %v758
        %v764 = vmul.f32 1.0, %v763
        %v765 = vrcp.pop %v729
        %v766 = vmul.f32 %v729, %v765
        %v767 = vsub.f32 1.0, %v766
        %v768 = vmul.f32 %v765, %v767
        %v769 = vadd.f32 %v765, %v768
        %vm770 = vweird.f32 %v729
        %vm771 = vweird.f32 %v765
        %vm772 = vmor %vm770, %vm771
        %v773 = vsel %vm772, %v765, %v769
        %v774 = vand.u32 2147483647, %v729
        %vm775 = vcmp.eq.f32.partialorder %v774, 8.507059e+37
        %v776 = vand.u32 %v729, 2147483648
        %v777 = vor.u32 1.1754944e-38, %v776
        %v778 = vsel %vm775, %v777, %v773
        %v779 = vmul.f32 1.0, %v778
        %v780 = vrcp.pop %v730
        %v781 = vmul.f32 %v730, %v780
        %v782 = vsub.f32 1.0, %v781
        %v783 = vmul.f32 %v780, %v782
        %v784 = vadd.f32 %v780, %v783
        %vm785 = vweird.f32 %v730
        %vm786 = vweird.f32 %v780
        %vm787 = vmor %vm785, %vm786
        %v788 = vsel %vm787, %v780, %v784
        %v789 = vand.u32 2147483647, %v730
        %vm790 = vcmp.eq.f32.partialorder %v789, 8.507059e+37
        %v791 = vand.u32 %v730, 2147483648
        %v792 = vor.u32 1.1754944e-38, %v791
        %v793 = vsel %vm790, %v792, %v788
        %v794 = vmul.f32 1.0, %v793
        %v795 = vrcp.pop %v731
        %v796 = vmul.f32 %v731, %v795
        %v797 = vsub.f32 1.0, %v796
        %v798 = vmul.f32 %v795, %v797
        %v799 = vadd.f32 %v795, %v798
        %vm800 = vweird.f32 %v731
        %vm801 = vweird.f32 %v795
        %vm802 = vmor %vm800, %vm801
        %v803 = vsel %vm802, %v795, %v799
        %v804 = vand.u32 2147483647, %v731
        %vm805 = vcmp.eq.f32.partialorder %v804, 8.507059e+37
        %v806 = vand.u32 %v731, 2147483648
        %v807 = vor.u32 1.1754944e-38, %v806
        %v808 = vsel %vm805, %v807, %v803
        %v809 = vmul.f32 1.0, %v808
        %v810 = vrcp.pop %v732
        %v811 = vmul.f32 %v732, %v810
        %v812 = vsub.f32 1.0, %v811
        %v813 = vmul.f32 %v810, %v812
        %v814 = vadd.f32 %v810, %v813
        %vm815 = vweird.f32 %v732
        %vm816 = vweird.f32 %v810
        %vm817 = vmor %vm815, %vm816
        %v818 = vsel %vm817, %v810, %v814
        %v819 = vand.u32 2147483647, %v732
        %vm820 = vcmp.eq.f32.partialorder %v819, 8.507059e+37
        %v821 = vand.u32 %v732, 2147483648
        %v822 = vor.u32 1.1754944e-38, %v821
        %v823 = vsel %vm820, %v822, %v818
        %v824 = vmul.f32 1.0, %v823
        %v825 = vrcp.pop %v733
        %v826 = vmul.f32 %v733, %v825
        %v827 = vsub.f32 1.0, %v826
        %v828 = vmul.f32 %v825, %v827
        %v829 = vadd.f32 %v825, %v828
        %vm830 = vweird.f32 %v733
        %vm831 = vweird.f32 %v825
        %vm832 = vmor %vm830, %vm831
        %v833 = vsel %vm832, %v825, %v829
        %v834 = vand.u32 2147483647, %v733
        %vm835 = vcmp.eq.f32.partialorder %v834, 8.507059e+37
        %v836 = vand.u32 %v733, 2147483648
        %v837 = vor.u32 1.1754944e-38, %v836
        %v838 = vsel %vm835, %v837, %v833
        %v839 = vmul.f32 1.0, %v838
        %v840 = vrcp.pop %v734
        %v841 = vmul.f32 %v734, %v840
        %v842 = vsub.f32 1.0, %v841
        %v843 = vmul.f32 %v840, %v842
        %v844 = vadd.f32 %v840, %v843
        %vm845 = vweird.f32 %v734
        %vm846 = vweird.f32 %v840
        %vm847 = vmor %vm845, %vm846
        %v848 = vsel %vm847, %v840, %v844
        %v849 = vand.u32 2147483647, %v734
        %vm850 = vcmp.eq.f32.partialorder %v849, 8.507059e+37
        %v851 = vand.u32 %v734, 2147483648
        %v852 = vor.u32 1.1754944e-38, %v851
        %v853 = vsel %vm850, %v852, %v848
        %v854 = vmul.f32 1.0, %v853
        %856 = vset.pattern.permute.xlu0 0
        %857 = vperm.xlu0 %856, %v749
        %v858 = vpop.permute.xlu0 %857
        %861 = vset.pattern.permute.xlu0 0
        %862 = vperm.xlu0 %861, %v764
        %v863 = vpop.permute.xlu0 %862
        %866 = vset.pattern.permute.xlu0 0
        %867 = vperm.xlu0 %866, %v779
        %v868 = vpop.permute.xlu0 %867
        %871 = vset.pattern.permute.xlu0 0
        %872 = vperm.xlu0 %871, %v794
        %v873 = vpop.permute.xlu0 %872
        %876 = vset.pattern.permute.xlu0 0
        %877 = vperm.xlu0 %876, %v809
        %v878 = vpop.permute.xlu0 %877
        %881 = vset.pattern.permute.xlu0 0
        %882 = vperm.xlu0 %881, %v824
        %v883 = vpop.permute.xlu0 %882
        %886 = vset.pattern.permute.xlu0 0
        %887 = vperm.xlu0 %886, %v839
        %v888 = vpop.permute.xlu0 %887
        %891 = vset.pattern.permute.xlu0 0
        %892 = vperm.xlu0 %891, %v854
        %v893 = vpop.permute.xlu0 %892
        %v895 = vmul.f32 %v379, %v858
        %v896 = vmul.f32 %v380, %v858
        %v897 = vmul.f32 %v381, %v858
        %v898 = vmul.f32 %v382, %v858
        %v899 = vmul.f32 %v383, %v858
        %v900 = vmul.f32 %v384, %v858
        %v901 = vmul.f32 %v385, %v858
        %v902 = vmul.f32 %v386, %v858
        %v903 = vmul.f32 %v387, %v858
        %v904 = vmul.f32 %v388, %v858
        %v905 = vmul.f32 %v389, %v863
        %v906 = vmul.f32 %v390, %v863
        %v907 = vmul.f32 %v391, %v863
        %v908 = vmul.f32 %v392, %v863
        %v909 = vmul.f32 %v393, %v863
        %v910 = vmul.f32 %v394, %v863
        %v911 = vmul.f32 %v395, %v863
        %v912 = vmul.f32 %v396, %v863
        %v913 = vmul.f32 %v397, %v863
        %v914 = vmul.f32 %v398, %v863
        %v915 = vmul.f32 %v399, %v868
        %v916 = vmul.f32 %v400, %v868
        %v917 = vmul.f32 %v401, %v868
        %v918 = vmul.f32 %v402, %v868
        %v919 = vmul.f32 %v403, %v868
        %v920 = vmul.f32 %v404, %v868
        %v921 = vmul.f32 %v405, %v868
        %v922 = vmul.f32 %v406, %v868
        %v923 = vmul.f32 %v407, %v868
        %v924 = vmul.f32 %v408, %v868
        %v925 = vmul.f32 %v409, %v873
        %v926 = vmul.f32 %v410, %v873
        %v927 = vmul.f32 %v411, %v873
        %v928 = vmul.f32 %v412, %v873
        %v929 = vmul.f32 %v413, %v873
        %v930 = vmul.f32 %v414, %v873
        %v931 = vmul.f32 %v415, %v873
        %v932 = vmul.f32 %v416, %v873
        %v933 = vmul.f32 %v417, %v873
        %v934 = vmul.f32 %v418, %v873
        %v935 = vmul.f32 %v419, %v878
        %v936 = vmul.f32 %v420, %v878
        %v937 = vmul.f32 %v421, %v878
        %v938 = vmul.f32 %v422, %v878
        %v939 = vmul.f32 %v423, %v878
        %v940 = vmul.f32 %v424, %v878
        %v941 = vmul.f32 %v425, %v878
        %v942 = vmul.f32 %v426, %v878
        %v943 = vmul.f32 %v427, %v878
        %v944 = vmul.f32 %v428, %v878
        %v945 = vmul.f32 %v429, %v883
        %v946 = vmul.f32 %v430, %v883
        %v947 = vmul.f32 %v431, %v883
        %v948 = vmul.f32 %v432, %v883
        %v949 = vmul.f32 %v433, %v883
        %v950 = vmul.f32 %v434, %v883
        %v951 = vmul.f32 %v435, %v883
        %v952 = vmul.f32 %v436, %v883
        %v953 = vmul.f32 %v437, %v883
        %v954 = vmul.f32 %v438, %v883
        %v955 = vmul.f32 %v439, %v888
        %v956 = vmul.f32 %v440, %v888
        %v957 = vmul.f32 %v441, %v888
        %v958 = vmul.f32 %v442, %v888
        %v959 = vmul.f32 %v443, %v888
        %v960 = vmul.f32 %v444, %v888
        %v961 = vmul.f32 %v445, %v888
        %v962 = vmul.f32 %v446, %v888
        %v963 = vmul.f32 %v447, %v888
        %v964 = vmul.f32 %v448, %v888
        %v965 = vmul.f32 %v449, %v893
        %v966 = vmul.f32 %v450, %v893
        %v967 = vmul.f32 %v451, %v893
        %v968 = vmul.f32 %v452, %v893
        %v969 = vmul.f32 %v453, %v893
        %v970 = vmul.f32 %v454, %v893
        %v971 = vmul.f32 %v455, %v893
        %v972 = vmul.f32 %v456, %v893
        %v973 = vmul.f32 %v457, %v893
        %v974 = vmul.f32 %v458, %v893
        %v975 = vadd.f32 %v895, %v905
        %v976 = vadd.f32 %v975, %v915
        %v977 = vadd.f32 %v976, %v925
        %v978 = vadd.f32 %v977, %v935
        %v979 = vadd.f32 %v978, %v945
        %v980 = vadd.f32 %v979, %v955
        %v981 = vadd.f32 %v980, %v965
        %v982 = vrot.slane %v981, 4
        %v983 = vadd.f32 %v981, %v982
        %v984 = vrot.slane %v983, 2
        %v985 = vadd.f32 %v983, %v984
        %v986 = vrot.slane %v985, 1
        %v987 = vadd.f32 %v985, %v986
        %v988 = vadd.f32 %v896, %v906
        %v989 = vadd.f32 %v988, %v916
        %v990 = vadd.f32 %v989, %v926
        %v991 = vadd.f32 %v990, %v936
        %v992 = vadd.f32 %v991, %v946
        %v993 = vadd.f32 %v992, %v956
        %v994 = vadd.f32 %v993, %v966
        %v995 = vrot.slane %v994, 4
        %v996 = vadd.f32 %v994, %v995
        %v997 = vrot.slane %v996, 2
        %v998 = vadd.f32 %v996, %v997
        %v999 = vrot.slane %v998, 1
        %v1000 = vadd.f32 %v998, %v999
        %v1001 = vadd.f32 %v897, %v907
        %v1002 = vadd.f32 %v1001, %v917
        %v1003 = vadd.f32 %v1002, %v927
        %v1004 = vadd.f32 %v1003, %v937
        %v1005 = vadd.f32 %v1004, %v947
        %v1006 = vadd.f32 %v1005, %v957
        %v1007 = vadd.f32 %v1006, %v967
        %v1008 = vrot.slane %v1007, 4
        %v1009 = vadd.f32 %v1007, %v1008
        %v1010 = vrot.slane %v1009, 2
        %v1011 = vadd.f32 %v1009, %v1010
        %v1012 = vrot.slane %v1011, 1
        %v1013 = vadd.f32 %v1011, %v1012
        %v1014 = vadd.f32 %v898, %v908
        %v1015 = vadd.f32 %v1014, %v918
        %v1016 = vadd.f32 %v1015, %v928
        %v1017 = vadd.f32 %v1016, %v938
        %v1018 = vadd.f32 %v1017, %v948
        %v1019 = vadd.f32 %v1018, %v958
        %v1020 = vadd.f32 %v1019, %v968
        %v1021 = vrot.slane %v1020, 4
        %v1022 = vadd.f32 %v1020, %v1021
        %v1023 = vrot.slane %v1022, 2
        %v1024 = vadd.f32 %v1022, %v1023
        %v1025 = vrot.slane %v1024, 1
        %v1026 = vadd.f32 %v1024, %v1025
        %v1027 = vadd.f32 %v899, %v909
        %v1028 = vadd.f32 %v1027, %v919
        %v1029 = vadd.f32 %v1028, %v929
        %v1030 = vadd.f32 %v1029, %v939
        %v1031 = vadd.f32 %v1030, %v949
        %v1032 = vadd.f32 %v1031, %v959
        %v1033 = vadd.f32 %v1032, %v969
        %v1034 = vrot.slane %v1033, 4
        %v1035 = vadd.f32 %v1033, %v1034
        %v1036 = vrot.slane %v1035, 2
        %v1037 = vadd.f32 %v1035, %v1036
        %v1038 = vrot.slane %v1037, 1
        %v1039 = vadd.f32 %v1037, %v1038
        %v1040 = vadd.f32 %v900, %v910
        %v1041 = vadd.f32 %v1040, %v920
        %v1042 = vadd.f32 %v1041, %v930
        %v1043 = vadd.f32 %v1042, %v940
        %v1044 = vadd.f32 %v1043, %v950
        %v1045 = vadd.f32 %v1044, %v960
        %v1046 = vadd.f32 %v1045, %v970
        %v1047 = vrot.slane %v1046, 4
        %v1048 = vadd.f32 %v1046, %v1047
        %v1049 = vrot.slane %v1048, 2
        %v1050 = vadd.f32 %v1048, %v1049
        %v1051 = vrot.slane %v1050, 1
        %v1052 = vadd.f32 %v1050, %v1051
        %v1053 = vadd.f32 %v901, %v911
        %v1054 = vadd.f32 %v1053, %v921
        %v1055 = vadd.f32 %v1054, %v931
        %v1056 = vadd.f32 %v1055, %v941
        %v1057 = vadd.f32 %v1056, %v951
        %v1058 = vadd.f32 %v1057, %v961
        %v1059 = vadd.f32 %v1058, %v971
        %v1060 = vrot.slane %v1059, 4
        %v1061 = vadd.f32 %v1059, %v1060
        %v1062 = vrot.slane %v1061, 2
        %v1063 = vadd.f32 %v1061, %v1062
        %v1064 = vrot.slane %v1063, 1
        %v1065 = vadd.f32 %v1063, %v1064
        %v1066 = vadd.f32 %v902, %v912
        %v1067 = vadd.f32 %v1066, %v922
        %v1068 = vadd.f32 %v1067, %v932
        %v1069 = vadd.f32 %v1068, %v942
        %v1070 = vadd.f32 %v1069, %v952
        %v1071 = vadd.f32 %v1070, %v962
        %v1072 = vadd.f32 %v1071, %v972
        %v1073 = vrot.slane %v1072, 4
        %v1074 = vadd.f32 %v1072, %v1073
        %v1075 = vrot.slane %v1074, 2
        %v1076 = vadd.f32 %v1074, %v1075
        %v1077 = vrot.slane %v1076, 1
        %v1078 = vadd.f32 %v1076, %v1077
        %v1079 = vadd.f32 %v903, %v913
        %v1080 = vadd.f32 %v1079, %v923
        %v1081 = vadd.f32 %v1080, %v933
        %v1082 = vadd.f32 %v1081, %v943
        %v1083 = vadd.f32 %v1082, %v953
        %v1084 = vadd.f32 %v1083, %v963
        %v1085 = vadd.f32 %v1084, %v973
        %v1086 = vrot.slane %v1085, 4
        %v1087 = vadd.f32 %v1085, %v1086
        %v1088 = vrot.slane %v1087, 2
        %v1089 = vadd.f32 %v1087, %v1088
        %v1090 = vrot.slane %v1089, 1
        %v1091 = vadd.f32 %v1089, %v1090
        %v1092 = vadd.f32 %v904, %v914
        %v1093 = vadd.f32 %v1092, %v924
        %v1094 = vadd.f32 %v1093, %v934
        %v1095 = vadd.f32 %v1094, %v944
        %v1096 = vadd.f32 %v1095, %v954
        %v1097 = vadd.f32 %v1096, %v964
        %v1098 = vadd.f32 %v1097, %v974
        %v1099 = vrot.slane %v1098, 4
        %v1100 = vadd.f32 %v1098, %v1099
        %v1101 = vrot.slane %v1100, 2
        %v1102 = vadd.f32 %v1100, %v1101
        %v1103 = vrot.slane %v1102, 1
        %v1104 = vadd.f32 %v1102, %v1103
        %v1105 = vmul.f32 %v987, 0.015625
        %v1106 = vmul.f32 %v1000, 0.015625
        %v1107 = vmul.f32 %v1013, 0.015625
        %v1108 = vmul.f32 %v1026, 0.015625
        %v1109 = vmul.f32 %v1039, 0.015625
        %v1110 = vmul.f32 %v1052, 0.015625
        %v1111 = vmul.f32 %v1065, 0.015625
        %v1112 = vmul.f32 %v1078, 0.015625
        %v1113 = vmul.f32 %v1091, 0.015625
        %v1114 = vmul.f32 %v1104, 0.015625
        %v1115 = vld [vmem:[#allocation8] sm:$0xff]
        %v1116 = vld [vmem:[#allocation8 + $0x8] sm:$0xff]
        %v1117 = vld [vmem:[#allocation8 + $0x10] sm:$0xff]
        %v1118 = vld [vmem:[#allocation8 + $0x18] sm:$0xff]
        %v1119 = vld [vmem:[#allocation8 + $0x20] sm:$0xff]
        %v1120 = vld [vmem:[#allocation8 + $0x28] sm:$0xff]
        %v1121 = vld [vmem:[#allocation8 + $0x30] sm:$0xff]
        %v1122 = vld [vmem:[#allocation8 + $0x38] sm:$0xff]
        %v1123 = vld [vmem:[#allocation8 + $0x40] sm:$0xff]
        %v1124 = vld [vmem:[#allocation8 + $0x48] sm:$0xff]
        %v1125 = vld [vmem:[#allocation8 + $0x50] sm:$0xff]
        %v1126 = vld [vmem:[#allocation8 + $0x58] sm:$0xff]
        %v1127 = vld [vmem:[#allocation8 + $0x60] sm:$0xff]
        %v1128 = vld [vmem:[#allocation8 + $0x68] sm:$0xff]
        %v1129 = vld [vmem:[#allocation8 + $0x70] sm:$0xff]
        %v1130 = vld [vmem:[#allocation8 + $0x78] sm:$0xff]
        %v1131 = vld [vmem:[#allocation8 + $0x80] sm:$0xff]
        %v1132 = vld [vmem:[#allocation8 + $0x88] sm:$0xff]
        %v1133 = vld [vmem:[#allocation8 + $0x90] sm:$0xff]
        %v1134 = vld [vmem:[#allocation8 + $0x98] sm:$0xff]
        %v1135 = vld [vmem:[#allocation8 + $0xa0] sm:$0xff]
        %v1136 = vld [vmem:[#allocation8 + $0xa8] sm:$0xff]
        %v1137 = vld [vmem:[#allocation8 + $0xb0] sm:$0xff]
        %v1138 = vld [vmem:[#allocation8 + $0xb8] sm:$0xff]
        %v1139 = vld [vmem:[#allocation8 + $0xc0] sm:$0xff]
        %v1140 = vld [vmem:[#allocation8 + $0xc8] sm:$0xff]
        %v1141 = vld [vmem:[#allocation8 + $0xd0] sm:$0xff]
        %v1142 = vld [vmem:[#allocation8 + $0xd8] sm:$0xff]
        %v1143 = vld [vmem:[#allocation8 + $0xe0] sm:$0xff]
        %v1144 = vld [vmem:[#allocation8 + $0xe8] sm:$0xff]
        %v1145 = vld [vmem:[#allocation8 + $0xf0] sm:$0xff]
        %v1146 = vld [vmem:[#allocation8 + $0xf8] sm:$0xff]
        %v1147 = vld [vmem:[#allocation8 + $0x100] sm:$0xff]
        %v1148 = vld [vmem:[#allocation8 + $0x108] sm:$0xff]
        %v1149 = vld [vmem:[#allocation8 + $0x110] sm:$0xff]
        %v1150 = vld [vmem:[#allocation8 + $0x118] sm:$0xff]
        %v1151 = vld [vmem:[#allocation8 + $0x120] sm:$0xff]
        %v1152 = vld [vmem:[#allocation8 + $0x128] sm:$0xff]
        %v1153 = vld [vmem:[#allocation8 + $0x130] sm:$0xff]
        %v1154 = vld [vmem:[#allocation8 + $0x138] sm:$0xff]
        %v1155 = vld [vmem:[#allocation8 + $0x140] sm:$0xff]
        %v1156 = vld [vmem:[#allocation8 + $0x148] sm:$0xff]
        %v1157 = vld [vmem:[#allocation8 + $0x150] sm:$0xff]
        %v1158 = vld [vmem:[#allocation8 + $0x158] sm:$0xff]
        %v1159 = vld [vmem:[#allocation8 + $0x160] sm:$0xff]
        %v1160 = vld [vmem:[#allocation8 + $0x168] sm:$0xff]
        %v1161 = vld [vmem:[#allocation8 + $0x170] sm:$0xff]
        %v1162 = vld [vmem:[#allocation8 + $0x178] sm:$0xff]
        %v1163 = vld [vmem:[#allocation8 + $0x180] sm:$0xff]
        %v1164 = vld [vmem:[#allocation8 + $0x188] sm:$0xff]
        %v1165 = vld [vmem:[#allocation8 + $0x190] sm:$0xff]
        %v1166 = vld [vmem:[#allocation8 + $0x198] sm:$0xff]
        %v1167 = vld [vmem:[#allocation8 + $0x1a0] sm:$0xff]
        %v1168 = vld [vmem:[#allocation8 + $0x1a8] sm:$0xff]
        %v1169 = vld [vmem:[#allocation8 + $0x1b0] sm:$0xff]
        %v1170 = vld [vmem:[#allocation8 + $0x1b8] sm:$0xff]
        %v1171 = vld [vmem:[#allocation8 + $0x1c0] sm:$0xff]
        %v1172 = vld [vmem:[#allocation8 + $0x1c8] sm:$0xff]
        %v1173 = vld [vmem:[#allocation8 + $0x1d0] sm:$0xff]
        %v1174 = vld [vmem:[#allocation8 + $0x1d8] sm:$0xff]
        %v1175 = vld [vmem:[#allocation8 + $0x1e0] sm:$0xff]
        %v1176 = vld [vmem:[#allocation8 + $0x1e8] sm:$0xff]
        %v1177 = vld [vmem:[#allocation8 + $0x1f0] sm:$0xff]
        %v1178 = vld [vmem:[#allocation8 + $0x1f8] sm:$0xff]
        %v1179 = vld [vmem:[#allocation8 + $0x200] sm:$0xff]
        %v1180 = vld [vmem:[#allocation8 + $0x208] sm:$0xff]
        %v1181 = vld [vmem:[#allocation8 + $0x210] sm:$0xff]
        %v1182 = vld [vmem:[#allocation8 + $0x218] sm:$0xff]
        %v1183 = vld [vmem:[#allocation8 + $0x220] sm:$0xff]
        %v1184 = vld [vmem:[#allocation8 + $0x228] sm:$0xff]
        %v1185 = vld [vmem:[#allocation8 + $0x230] sm:$0xff]
        %v1186 = vld [vmem:[#allocation8 + $0x238] sm:$0xff]
        %v1187 = vld [vmem:[#allocation8 + $0x240] sm:$0xff]
        %v1188 = vld [vmem:[#allocation8 + $0x248] sm:$0xff]
        %v1189 = vld [vmem:[#allocation8 + $0x250] sm:$0xff]
        %v1190 = vld [vmem:[#allocation8 + $0x258] sm:$0xff]
        %v1191 = vld [vmem:[#allocation8 + $0x260] sm:$0xff]
        %v1192 = vld [vmem:[#allocation8 + $0x268] sm:$0xff]
        %v1193 = vld [vmem:[#allocation8 + $0x270] sm:$0xff]
        %v1194 = vld [vmem:[#allocation8 + $0x278] sm:$0xff]
        %v1195 = vld [vmem:[#allocation8 + $0x280] sm:$0xff]
        %v1196 = vld [vmem:[#allocation8 + $0x288] sm:$0xff]
        %v1197 = vld [vmem:[#allocation8 + $0x290] sm:$0xff]
        %v1198 = vld [vmem:[#allocation8 + $0x298] sm:$0xff]
        %v1199 = vld [vmem:[#allocation8 + $0x2a0] sm:$0xff]
        %v1200 = vld [vmem:[#allocation8 + $0x2a8] sm:$0xff]
        %v1201 = vld [vmem:[#allocation8 + $0x2b0] sm:$0xff]
        %v1202 = vld [vmem:[#allocation8 + $0x2b8] sm:$0xff]
        %v1203 = vld [vmem:[#allocation8 + $0x2c0] sm:$0xff]
        %v1204 = vld [vmem:[#allocation8 + $0x2c8] sm:$0xff]
        %v1205 = vld [vmem:[#allocation8 + $0x2d0] sm:$0xff]
        %v1206 = vld [vmem:[#allocation8 + $0x2d8] sm:$0xff]
        %v1207 = vld [vmem:[#allocation8 + $0x2e0] sm:$0xff]
        %v1208 = vld [vmem:[#allocation8 + $0x2e8] sm:$0xff]
        %v1209 = vld [vmem:[#allocation8 + $0x2f0] sm:$0xff]
        %v1210 = vld [vmem:[#allocation8 + $0x2f8] sm:$0xff]
        %v1211 = vld [vmem:[#allocation8 + $0x300] sm:$0xff]
        %v1212 = vld [vmem:[#allocation8 + $0x308] sm:$0xff]
        %v1213 = vld [vmem:[#allocation8 + $0x310] sm:$0xff]
        %v1214 = vld [vmem:[#allocation8 + $0x318] sm:$0xff]
        %v1215 = vld [vmem:[#allocation8 + $0x320] sm:$0xff]
        %v1216 = vld [vmem:[#allocation8 + $0x328] sm:$0xff]
        %v1217 = vld [vmem:[#allocation8 + $0x330] sm:$0xff]
        %v1218 = vld [vmem:[#allocation8 + $0x338] sm:$0xff]
        %v1219 = vld [vmem:[#allocation8 + $0x340] sm:$0xff]
        %v1220 = vld [vmem:[#allocation8 + $0x348] sm:$0xff]
        %v1221 = vld [vmem:[#allocation8 + $0x350] sm:$0xff]
        %v1222 = vld [vmem:[#allocation8 + $0x358] sm:$0xff]
        %v1223 = vld [vmem:[#allocation8 + $0x360] sm:$0xff]
        %v1224 = vld [vmem:[#allocation8 + $0x368] sm:$0xff]
        %v1225 = vld [vmem:[#allocation8 + $0x370] sm:$0xff]
        %v1226 = vld [vmem:[#allocation8 + $0x378] sm:$0xff]
        %v1227 = vld [vmem:[#allocation8 + $0x380] sm:$0xff]
        %v1228 = vld [vmem:[#allocation8 + $0x388] sm:$0xff]
        %v1229 = vld [vmem:[#allocation8 + $0x390] sm:$0xff]
        %v1230 = vld [vmem:[#allocation8 + $0x398] sm:$0xff]
        %v1231 = vld [vmem:[#allocation8 + $0x3a0] sm:$0xff]
        %v1232 = vld [vmem:[#allocation8 + $0x3a8] sm:$0xff]
        %v1233 = vld [vmem:[#allocation8 + $0x3b0] sm:$0xff]
        %v1234 = vld [vmem:[#allocation8 + $0x3b8] sm:$0xff]
        %v1235 = vld [vmem:[#allocation8 + $0x3c0] sm:$0xff]
        %v1236 = vld [vmem:[#allocation8 + $0x3c8] sm:$0xff]
        %v1237 = vld [vmem:[#allocation8 + $0x3d0] sm:$0xff]
        %v1238 = vld [vmem:[#allocation8 + $0x3d8] sm:$0xff]
        %v1239 = vld [vmem:[#allocation8 + $0x3e0] sm:$0xff]
        %v1240 = vld [vmem:[#allocation8 + $0x3e8] sm:$0xff]
        %v1241 = vld [vmem:[#allocation8 + $0x3f0] sm:$0xff]
        %v1242 = vld [vmem:[#allocation8 + $0x3f8] sm:$0xff]
        %v1243 = vld [vmem:[#allocation8 + $0x400] sm:$0xff]
        %v1244 = vld [vmem:[#allocation8 + $0x408] sm:$0xff]
        %v1245 = vld [vmem:[#allocation8 + $0x410] sm:$0xff]
        %v1246 = vld [vmem:[#allocation8 + $0x418] sm:$0xff]
        %v1247 = vld [vmem:[#allocation8 + $0x420] sm:$0xff]
        %v1248 = vld [vmem:[#allocation8 + $0x428] sm:$0xff]
        %v1249 = vld [vmem:[#allocation8 + $0x430] sm:$0xff]
        %v1250 = vld [vmem:[#allocation8 + $0x438] sm:$0xff]
        %v1251 = vld [vmem:[#allocation8 + $0x440] sm:$0xff]
        %v1252 = vld [vmem:[#allocation8 + $0x448] sm:$0xff]
        %v1253 = vld [vmem:[#allocation8 + $0x450] sm:$0xff]
        %v1254 = vld [vmem:[#allocation8 + $0x458] sm:$0xff]
        %v1255 = vld [vmem:[#allocation8 + $0x460] sm:$0xff]
        %v1256 = vld [vmem:[#allocation8 + $0x468] sm:$0xff]
        %v1257 = vld [vmem:[#allocation8 + $0x470] sm:$0xff]
        %v1258 = vld [vmem:[#allocation8 + $0x478] sm:$0xff]
        %v1259 = vld [vmem:[#allocation8 + $0x480] sm:$0xff]
        %v1260 = vld [vmem:[#allocation8 + $0x488] sm:$0xff]
        %v1261 = vld [vmem:[#allocation8 + $0x490] sm:$0xff]
        %v1262 = vld [vmem:[#allocation8 + $0x498] sm:$0xff]
        %v1263 = vld [vmem:[#allocation8 + $0x4a0] sm:$0xff]
        %v1264 = vld [vmem:[#allocation8 + $0x4a8] sm:$0xff]
        %v1265 = vld [vmem:[#allocation8 + $0x4b0] sm:$0xff]
        %v1266 = vld [vmem:[#allocation8 + $0x4b8] sm:$0xff]
        %v1267 = vld [vmem:[#allocation8 + $0x4c0] sm:$0xff]
        %v1268 = vld [vmem:[#allocation8 + $0x4c8] sm:$0xff]
        %v1269 = vld [vmem:[#allocation8 + $0x4d0] sm:$0xff]
        %v1270 = vld [vmem:[#allocation8 + $0x4d8] sm:$0xff]
        %v1271 = vld [vmem:[#allocation8 + $0x4e0] sm:$0xff]
        %v1272 = vld [vmem:[#allocation8 + $0x4e8] sm:$0xff]
        %v1273 = vld [vmem:[#allocation8 + $0x4f0] sm:$0xff]
        %v1274 = vld [vmem:[#allocation8 + $0x4f8] sm:$0xff]
        %v1275 = vld [vmem:[#allocation8 + $0x500] sm:$0xff]
        %v1276 = vld [vmem:[#allocation8 + $0x508] sm:$0xff]
        %v1277 = vld [vmem:[#allocation8 + $0x510] sm:$0xff]
        %v1278 = vld [vmem:[#allocation8 + $0x518] sm:$0xff]
        %v1279 = vld [vmem:[#allocation8 + $0x520] sm:$0xff]
        %v1280 = vld [vmem:[#allocation8 + $0x528] sm:$0xff]
        %v1281 = vld [vmem:[#allocation8 + $0x530] sm:$0xff]
        %v1282 = vld [vmem:[#allocation8 + $0x538] sm:$0xff]
        %v1283 = vld [vmem:[#allocation8 + $0x540] sm:$0xff]
        %v1284 = vld [vmem:[#allocation8 + $0x548] sm:$0xff]
        %v1285 = vld [vmem:[#allocation8 + $0x550] sm:$0xff]
        %v1286 = vld [vmem:[#allocation8 + $0x558] sm:$0xff]
        %v1287 = vld [vmem:[#allocation8 + $0x560] sm:$0xff]
        %v1288 = vld [vmem:[#allocation8 + $0x568] sm:$0xff]
        %v1289 = vld [vmem:[#allocation8 + $0x570] sm:$0xff]
        %v1290 = vld [vmem:[#allocation8 + $0x578] sm:$0xff]
        %v1291 = vld [vmem:[#allocation8 + $0x580] sm:$0xff]
        %v1292 = vld [vmem:[#allocation8 + $0x588] sm:$0xff]
        %v1293 = vld [vmem:[#allocation8 + $0x590] sm:$0xff]
        %v1294 = vld [vmem:[#allocation8 + $0x598] sm:$0xff]
        %v1295 = vld [vmem:[#allocation8 + $0x5a0] sm:$0xff]
        %v1296 = vld [vmem:[#allocation8 + $0x5a8] sm:$0xff]
        %v1297 = vld [vmem:[#allocation8 + $0x5b0] sm:$0xff]
        %v1298 = vld [vmem:[#allocation8 + $0x5b8] sm:$0xff]
        %v1299 = vld [vmem:[#allocation8 + $0x5c0] sm:$0xff]
        %v1300 = vld [vmem:[#allocation8 + $0x5c8] sm:$0xff]
        %v1301 = vld [vmem:[#allocation8 + $0x5d0] sm:$0xff]
        %v1302 = vld [vmem:[#allocation8 + $0x5d8] sm:$0xff]
        %v1303 = vld [vmem:[#allocation8 + $0x5e0] sm:$0xff]
        %v1304 = vld [vmem:[#allocation8 + $0x5e8] sm:$0xff]
        %v1305 = vld [vmem:[#allocation8 + $0x5f0] sm:$0xff]
        %v1306 = vld [vmem:[#allocation8 + $0x5f8] sm:$0xff]
        %v1307 = vld [vmem:[#allocation8 + $0x600] sm:$0xff]
        %v1308 = vld [vmem:[#allocation8 + $0x608] sm:$0xff]
        %v1309 = vld [vmem:[#allocation8 + $0x610] sm:$0xff]
        %v1310 = vld [vmem:[#allocation8 + $0x618] sm:$0xff]
        %v1311 = vld [vmem:[#allocation8 + $0x620] sm:$0xff]
        %v1312 = vld [vmem:[#allocation8 + $0x628] sm:$0xff]
        %v1313 = vld [vmem:[#allocation8 + $0x630] sm:$0xff]
        %v1314 = vld [vmem:[#allocation8 + $0x638] sm:$0xff]
        %v1315 = vld [vmem:[#allocation8 + $0x640] sm:$0xff]
        %v1316 = vld [vmem:[#allocation8 + $0x648] sm:$0xff]
        %v1317 = vld [vmem:[#allocation8 + $0x650] sm:$0xff]
        %v1318 = vld [vmem:[#allocation8 + $0x658] sm:$0xff]
        %v1319 = vld [vmem:[#allocation8 + $0x660] sm:$0xff]
        %v1320 = vld [vmem:[#allocation8 + $0x668] sm:$0xff]
        %v1321 = vld [vmem:[#allocation8 + $0x670] sm:$0xff]
        %v1322 = vld [vmem:[#allocation8 + $0x678] sm:$0xff]
        %v1323 = vld [vmem:[#allocation8 + $0x680] sm:$0xff]
        %v1324 = vld [vmem:[#allocation8 + $0x688] sm:$0xff]
        %v1325 = vld [vmem:[#allocation8 + $0x690] sm:$0xff]
        %v1326 = vld [vmem:[#allocation8 + $0x698] sm:$0xff]
        %v1327 = vld [vmem:[#allocation8 + $0x6a0] sm:$0xff]
        %v1328 = vld [vmem:[#allocation8 + $0x6a8] sm:$0xff]
        %v1329 = vld [vmem:[#allocation8 + $0x6b0] sm:$0xff]
        %v1330 = vld [vmem:[#allocation8 + $0x6b8] sm:$0xff]
        %v1331 = vld [vmem:[#allocation8 + $0x6c0] sm:$0xff]
        %v1332 = vld [vmem:[#allocation8 + $0x6c8] sm:$0xff]
        %v1333 = vld [vmem:[#allocation8 + $0x6d0] sm:$0xff]
        %v1334 = vld [vmem:[#allocation8 + $0x6d8] sm:$0xff]
        %v1335 = vld [vmem:[#allocation8 + $0x6e0] sm:$0xff]
        %v1336 = vld [vmem:[#allocation8 + $0x6e8] sm:$0xff]
        %v1337 = vld [vmem:[#allocation8 + $0x6f0] sm:$0xff]
        %v1338 = vld [vmem:[#allocation8 + $0x6f8] sm:$0xff]
        %v1339 = vld [vmem:[#allocation8 + $0x700] sm:$0xff]
        %v1340 = vld [vmem:[#allocation8 + $0x708] sm:$0xff]
        %v1341 = vld [vmem:[#allocation8 + $0x710] sm:$0xff]
        %v1342 = vld [vmem:[#allocation8 + $0x718] sm:$0xff]
        %v1343 = vld [vmem:[#allocation8 + $0x720] sm:$0xff]
        %v1344 = vld [vmem:[#allocation8 + $0x728] sm:$0xff]
        %v1345 = vld [vmem:[#allocation8 + $0x730] sm:$0xff]
        %v1346 = vld [vmem:[#allocation8 + $0x738] sm:$0xff]
        %v1347 = vld [vmem:[#allocation8 + $0x740] sm:$0xff]
        %v1348 = vld [vmem:[#allocation8 + $0x748] sm:$0xff]
        %v1349 = vld [vmem:[#allocation8 + $0x750] sm:$0xff]
        %v1350 = vld [vmem:[#allocation8 + $0x758] sm:$0xff]
        %v1351 = vld [vmem:[#allocation8 + $0x760] sm:$0xff]
        %v1352 = vld [vmem:[#allocation8 + $0x768] sm:$0xff]
        %v1353 = vld [vmem:[#allocation8 + $0x770] sm:$0xff]
        %v1354 = vld [vmem:[#allocation8 + $0x778] sm:$0xff]
        %v1355 = vld [vmem:[#allocation8 + $0x780] sm:$0xff]
        %v1356 = vld [vmem:[#allocation8 + $0x788] sm:$0xff]
        %v1357 = vld [vmem:[#allocation8 + $0x790] sm:$0xff]
        %v1358 = vld [vmem:[#allocation8 + $0x798] sm:$0xff]
        %v1359 = vld [vmem:[#allocation8 + $0x7a0] sm:$0xff]
        %v1360 = vld [vmem:[#allocation8 + $0x7a8] sm:$0xff]
        %v1361 = vld [vmem:[#allocation8 + $0x7b0] sm:$0xff]
        %v1362 = vld [vmem:[#allocation8 + $0x7b8] sm:$0xff]
        %v1363 = vld [vmem:[#allocation8 + $0x7c0] sm:$0xff]
        %v1364 = vld [vmem:[#allocation8 + $0x7c8] sm:$0xff]
        %v1365 = vld [vmem:[#allocation8 + $0x7d0] sm:$0xff]
        %v1366 = vld [vmem:[#allocation8 + $0x7d8] sm:$0xff]
        %v1367 = vld [vmem:[#allocation8 + $0x7e0] sm:$0xff]
        %v1368 = vld [vmem:[#allocation8 + $0x7e8] sm:$0xff]
        %v1369 = vld [vmem:[#allocation8 + $0x7f0] sm:$0xff]
        %v1370 = vld [vmem:[#allocation8 + $0x7f8] sm:$0xff]
        %v1371 = vld [vmem:[#allocation8 + $0x800] sm:$0xff]
        %v1372 = vld [vmem:[#allocation8 + $0x808] sm:$0xff]
        %v1373 = vld [vmem:[#allocation8 + $0x810] sm:$0xff]
        %v1374 = vld [vmem:[#allocation8 + $0x818] sm:$0xff]
        %v1375 = vld [vmem:[#allocation8 + $0x820] sm:$0xff]
        %v1376 = vld [vmem:[#allocation8 + $0x828] sm:$0xff]
        %v1377 = vld [vmem:[#allocation8 + $0x830] sm:$0xff]
        %v1378 = vld [vmem:[#allocation8 + $0x838] sm:$0xff]
        %v1379 = vld [vmem:[#allocation8 + $0x840] sm:$0xff]
        %v1380 = vld [vmem:[#allocation8 + $0x848] sm:$0xff]
        %v1381 = vld [vmem:[#allocation8 + $0x850] sm:$0xff]
        %v1382 = vld [vmem:[#allocation8 + $0x858] sm:$0xff]
        %v1383 = vld [vmem:[#allocation8 + $0x860] sm:$0xff]
        %v1384 = vld [vmem:[#allocation8 + $0x868] sm:$0xff]
        %v1385 = vld [vmem:[#allocation8 + $0x870] sm:$0xff]
        %v1386 = vld [vmem:[#allocation8 + $0x878] sm:$0xff]
        %v1387 = vld [vmem:[#allocation8 + $0x880] sm:$0xff]
        %v1388 = vld [vmem:[#allocation8 + $0x888] sm:$0xff]
        %v1389 = vld [vmem:[#allocation8 + $0x890] sm:$0xff]
        %v1390 = vld [vmem:[#allocation8 + $0x898] sm:$0xff]
        %v1391 = vld [vmem:[#allocation8 + $0x8a0] sm:$0xff]
        %v1392 = vld [vmem:[#allocation8 + $0x8a8] sm:$0xff]
        %v1393 = vld [vmem:[#allocation8 + $0x8b0] sm:$0xff]
        %v1394 = vld [vmem:[#allocation8 + $0x8b8] sm:$0xff]
        %v1395 = vld [vmem:[#allocation8 + $0x8c0] sm:$0xff]
        %v1396 = vld [vmem:[#allocation8 + $0x8c8] sm:$0xff]
        %v1397 = vld [vmem:[#allocation8 + $0x8d0] sm:$0xff]
        %v1398 = vld [vmem:[#allocation8 + $0x8d8] sm:$0xff]
        %v1399 = vld [vmem:[#allocation8 + $0x8e0] sm:$0xff]
        %v1400 = vld [vmem:[#allocation8 + $0x8e8] sm:$0xff]
        %v1401 = vld [vmem:[#allocation8 + $0x8f0] sm:$0xff]
        %v1402 = vld [vmem:[#allocation8 + $0x8f8] sm:$0xff]
        %v1403 = vld [vmem:[#allocation8 + $0x900] sm:$0xff]
        %v1404 = vld [vmem:[#allocation8 + $0x908] sm:$0xff]
        %v1405 = vld [vmem:[#allocation8 + $0x910] sm:$0xff]
        %v1406 = vld [vmem:[#allocation8 + $0x918] sm:$0xff]
        %v1407 = vld [vmem:[#allocation8 + $0x920] sm:$0xff]
        %v1408 = vld [vmem:[#allocation8 + $0x928] sm:$0xff]
        %v1409 = vld [vmem:[#allocation8 + $0x930] sm:$0xff]
        %v1410 = vld [vmem:[#allocation8 + $0x938] sm:$0xff]
        %v1411 = vld [vmem:[#allocation8 + $0x940] sm:$0xff]
        %v1412 = vld [vmem:[#allocation8 + $0x948] sm:$0xff]
        %v1413 = vld [vmem:[#allocation8 + $0x950] sm:$0xff]
        %v1414 = vld [vmem:[#allocation8 + $0x958] sm:$0xff]
        %v1415 = vld [vmem:[#allocation8 + $0x960] sm:$0xff]
        %v1416 = vld [vmem:[#allocation8 + $0x968] sm:$0xff]
        %v1417 = vld [vmem:[#allocation8 + $0x970] sm:$0xff]
        %v1418 = vld [vmem:[#allocation8 + $0x978] sm:$0xff]
        %v1419 = vld [vmem:[#allocation8 + $0x980] sm:$0xff]
        %v1420 = vld [vmem:[#allocation8 + $0x988] sm:$0xff]
        %v1421 = vld [vmem:[#allocation8 + $0x990] sm:$0xff]
        %v1422 = vld [vmem:[#allocation8 + $0x998] sm:$0xff]
        %v1423 = vld [vmem:[#allocation8 + $0x9a0] sm:$0xff]
        %v1424 = vld [vmem:[#allocation8 + $0x9a8] sm:$0xff]
        %v1425 = vld [vmem:[#allocation8 + $0x9b0] sm:$0xff]
        %v1426 = vld [vmem:[#allocation8 + $0x9b8] sm:$0xff]
        %v1427 = vld [vmem:[#allocation8 + $0x9c0] sm:$0xff]
        %v1428 = vld [vmem:[#allocation8 + $0x9c8] sm:$0xff]
        %v1429 = vld [vmem:[#allocation8 + $0x9d0] sm:$0xff]
        %v1430 = vld [vmem:[#allocation8 + $0x9d8] sm:$0xff]
        %v1431 = vld [vmem:[#allocation8 + $0x9e0] sm:$0xff]
        %v1432 = vld [vmem:[#allocation8 + $0x9e8] sm:$0xff]
        %v1433 = vld [vmem:[#allocation8 + $0x9f0] sm:$0xff]
        %v1434 = vld [vmem:[#allocation8 + $0x9f8] sm:$0xff]
        %v1435 = vld [vmem:[#allocation8 + $0xa00] sm:$0xff]
        %v1436 = vld [vmem:[#allocation8 + $0xa08] sm:$0xff]
        %v1437 = vld [vmem:[#allocation8 + $0xa10] sm:$0xff]
        %v1438 = vld [vmem:[#allocation8 + $0xa18] sm:$0xff]
        %v1439 = vld [vmem:[#allocation8 + $0xa20] sm:$0xff]
        %v1440 = vld [vmem:[#allocation8 + $0xa28] sm:$0xff]
        %v1441 = vld [vmem:[#allocation8 + $0xa30] sm:$0xff]
        %v1442 = vld [vmem:[#allocation8 + $0xa38] sm:$0xff]
        %v1443 = vld [vmem:[#allocation8 + $0xa40] sm:$0xff]
        %v1444 = vld [vmem:[#allocation8 + $0xa48] sm:$0xff]
        %v1445 = vld [vmem:[#allocation8 + $0xa50] sm:$0xff]
        %v1446 = vld [vmem:[#allocation8 + $0xa58] sm:$0xff]
        %v1447 = vld [vmem:[#allocation8 + $0xa60] sm:$0xff]
        %v1448 = vld [vmem:[#allocation8 + $0xa68] sm:$0xff]
        %v1449 = vld [vmem:[#allocation8 + $0xa70] sm:$0xff]
        %v1450 = vld [vmem:[#allocation8 + $0xa78] sm:$0xff]
        %v1451 = vld [vmem:[#allocation8 + $0xa80] sm:$0xff]
        %v1452 = vld [vmem:[#allocation8 + $0xa88] sm:$0xff]
        %v1453 = vld [vmem:[#allocation8 + $0xa90] sm:$0xff]
        %v1454 = vld [vmem:[#allocation8 + $0xa98] sm:$0xff]
        %v1455 = vld [vmem:[#allocation8 + $0xaa0] sm:$0xff]
        %v1456 = vld [vmem:[#allocation8 + $0xaa8] sm:$0xff]
        %v1457 = vld [vmem:[#allocation8 + $0xab0] sm:$0xff]
        %v1458 = vld [vmem:[#allocation8 + $0xab8] sm:$0xff]
        %v1459 = vld [vmem:[#allocation8 + $0xac0] sm:$0xff]
        %v1460 = vld [vmem:[#allocation8 + $0xac8] sm:$0xff]
        %v1461 = vld [vmem:[#allocation8 + $0xad0] sm:$0xff]
        %v1462 = vld [vmem:[#allocation8 + $0xad8] sm:$0xff]
        %v1463 = vld [vmem:[#allocation8 + $0xae0] sm:$0xff]
        %v1464 = vld [vmem:[#allocation8 + $0xae8] sm:$0xff]
        %v1465 = vld [vmem:[#allocation8 + $0xaf0] sm:$0xff]
        %v1466 = vld [vmem:[#allocation8 + $0xaf8] sm:$0xff]
        %v1467 = vld [vmem:[#allocation8 + $0xb00] sm:$0xff]
        %v1468 = vld [vmem:[#allocation8 + $0xb08] sm:$0xff]
        %v1469 = vld [vmem:[#allocation8 + $0xb10] sm:$0xff]
        %v1470 = vld [vmem:[#allocation8 + $0xb18] sm:$0xff]
        %v1471 = vld [vmem:[#allocation8 + $0xb20] sm:$0xff]
        %v1472 = vld [vmem:[#allocation8 + $0xb28] sm:$0xff]
        %v1473 = vld [vmem:[#allocation8 + $0xb30] sm:$0xff]
        %v1474 = vld [vmem:[#allocation8 + $0xb38] sm:$0xff]
        %v1475 = vld [vmem:[#allocation8 + $0xb40] sm:$0xff]
        %v1476 = vld [vmem:[#allocation8 + $0xb48] sm:$0xff]
        %v1477 = vld [vmem:[#allocation8 + $0xb50] sm:$0xff]
        %v1478 = vld [vmem:[#allocation8 + $0xb58] sm:$0xff]
        %v1479 = vld [vmem:[#allocation8 + $0xb60] sm:$0xff]
        %v1480 = vld [vmem:[#allocation8 + $0xb68] sm:$0xff]
        %v1481 = vld [vmem:[#allocation8 + $0xb70] sm:$0xff]
        %v1482 = vld [vmem:[#allocation8 + $0xb78] sm:$0xff]
        %v1483 = vld [vmem:[#allocation8 + $0xb80] sm:$0xff]
        %v1484 = vld [vmem:[#allocation8 + $0xb88] sm:$0xff]
        %v1485 = vld [vmem:[#allocation8 + $0xb90] sm:$0xff]
        %v1486 = vld [vmem:[#allocation8 + $0xb98] sm:$0xff]
        %v1487 = vld [vmem:[#allocation8 + $0xba0] sm:$0xff]
        %v1488 = vld [vmem:[#allocation8 + $0xba8] sm:$0xff]
        %v1489 = vld [vmem:[#allocation8 + $0xbb0] sm:$0xff]
        %v1490 = vld [vmem:[#allocation8 + $0xbb8] sm:$0xff]
        %v1491 = vld [vmem:[#allocation8 + $0xbc0] sm:$0xff]
        %v1492 = vld [vmem:[#allocation8 + $0xbc8] sm:$0xff]
        %v1493 = vld [vmem:[#allocation8 + $0xbd0] sm:$0xff]
        %v1494 = vld [vmem:[#allocation8 + $0xbd8] sm:$0xff]
        %v1495 = vld [vmem:[#allocation8 + $0xbe0] sm:$0xff]
        %v1496 = vld [vmem:[#allocation8 + $0xbe8] sm:$0xff]
        %v1497 = vld [vmem:[#allocation8 + $0xbf0] sm:$0xff]
        %v1498 = vld [vmem:[#allocation8 + $0xbf8] sm:$0xff]
        %v1499 = vld [vmem:[#allocation8 + $0xc00] sm:$0xff]
        %v1500 = vld [vmem:[#allocation8 + $0xc08] sm:$0xff]
        %v1501 = vld [vmem:[#allocation8 + $0xc10] sm:$0xff]
        %v1502 = vld [vmem:[#allocation8 + $0xc18] sm:$0xff]
        %v1503 = vld [vmem:[#allocation8 + $0xc20] sm:$0xff]
        %v1504 = vld [vmem:[#allocation8 + $0xc28] sm:$0xff]
        %v1505 = vld [vmem:[#allocation8 + $0xc30] sm:$0xff]
        %v1506 = vld [vmem:[#allocation8 + $0xc38] sm:$0xff]
        %v1507 = vld [vmem:[#allocation8 + $0xc40] sm:$0xff]
        %v1508 = vld [vmem:[#allocation8 + $0xc48] sm:$0xff]
        %v1509 = vld [vmem:[#allocation8 + $0xc50] sm:$0xff]
        %v1510 = vld [vmem:[#allocation8 + $0xc58] sm:$0xff]
        %v1511 = vld [vmem:[#allocation8 + $0xc60] sm:$0xff]
        %v1512 = vld [vmem:[#allocation8 + $0xc68] sm:$0xff]
        %v1513 = vld [vmem:[#allocation8 + $0xc70] sm:$0xff]
        %v1514 = vld [vmem:[#allocation8 + $0xc78] sm:$0xff]
        %v1515 = vld [vmem:[#allocation8 + $0xc80] sm:$0xff]
        %v1516 = vld [vmem:[#allocation8 + $0xc88] sm:$0xff]
        %v1517 = vld [vmem:[#allocation8 + $0xc90] sm:$0xff]
        %v1518 = vld [vmem:[#allocation8 + $0xc98] sm:$0xff]
        %v1519 = vld [vmem:[#allocation8 + $0xca0] sm:$0xff]
        %v1520 = vld [vmem:[#allocation8 + $0xca8] sm:$0xff]
        %v1521 = vld [vmem:[#allocation8 + $0xcb0] sm:$0xff]
        %v1522 = vld [vmem:[#allocation8 + $0xcb8] sm:$0xff]
        %v1523 = vld [vmem:[#allocation8 + $0xcc0] sm:$0xff]
        %v1524 = vld [vmem:[#allocation8 + $0xcc8] sm:$0xff]
        %v1525 = vld [vmem:[#allocation8 + $0xcd0] sm:$0xff]
        %v1526 = vld [vmem:[#allocation8 + $0xcd8] sm:$0xff]
        %v1527 = vld [vmem:[#allocation8 + $0xce0] sm:$0xff]
        %v1528 = vld [vmem:[#allocation8 + $0xce8] sm:$0xff]
        %v1529 = vld [vmem:[#allocation8 + $0xcf0] sm:$0xff]
        %v1530 = vld [vmem:[#allocation8 + $0xcf8] sm:$0xff]
        %v1531 = vld [vmem:[#allocation8 + $0xd00] sm:$0xff]
        %v1532 = vld [vmem:[#allocation8 + $0xd08] sm:$0xff]
        %v1533 = vld [vmem:[#allocation8 + $0xd10] sm:$0xff]
        %v1534 = vld [vmem:[#allocation8 + $0xd18] sm:$0xff]
        %v1535 = vld [vmem:[#allocation8 + $0xd20] sm:$0xff]
        %v1536 = vld [vmem:[#allocation8 + $0xd28] sm:$0xff]
        %v1537 = vld [vmem:[#allocation8 + $0xd30] sm:$0xff]
        %v1538 = vld [vmem:[#allocation8 + $0xd38] sm:$0xff]
        %v1539 = vld [vmem:[#allocation8 + $0xd40] sm:$0xff]
        %v1540 = vld [vmem:[#allocation8 + $0xd48] sm:$0xff]
        %v1541 = vld [vmem:[#allocation8 + $0xd50] sm:$0xff]
        %v1542 = vld [vmem:[#allocation8 + $0xd58] sm:$0xff]
        %v1543 = vld [vmem:[#allocation8 + $0xd60] sm:$0xff]
        %v1544 = vld [vmem:[#allocation8 + $0xd68] sm:$0xff]
        %v1545 = vld [vmem:[#allocation8 + $0xd70] sm:$0xff]
        %v1546 = vld [vmem:[#allocation8 + $0xd78] sm:$0xff]
        %v1547 = vld [vmem:[#allocation8 + $0xd80] sm:$0xff]
        %v1548 = vld [vmem:[#allocation8 + $0xd88] sm:$0xff]
        %v1549 = vld [vmem:[#allocation8 + $0xd90] sm:$0xff]
        %v1550 = vld [vmem:[#allocation8 + $0xd98] sm:$0xff]
        %v1551 = vld [vmem:[#allocation8 + $0xda0] sm:$0xff]
        %v1552 = vld [vmem:[#allocation8 + $0xda8] sm:$0xff]
        %v1553 = vld [vmem:[#allocation8 + $0xdb0] sm:$0xff]
        %v1554 = vld [vmem:[#allocation8 + $0xdb8] sm:$0xff]
        %v1555 = vld [vmem:[#allocation8 + $0xdc0] sm:$0xff]
        %v1556 = vld [vmem:[#allocation8 + $0xdc8] sm:$0xff]
        %v1557 = vld [vmem:[#allocation8 + $0xdd0] sm:$0xff]
        %v1558 = vld [vmem:[#allocation8 + $0xdd8] sm:$0xff]
        %v1559 = vld [vmem:[#allocation8 + $0xde0] sm:$0xff]
        %v1560 = vld [vmem:[#allocation8 + $0xde8] sm:$0xff]
        %v1561 = vld [vmem:[#allocation8 + $0xdf0] sm:$0xff]
        %v1562 = vld [vmem:[#allocation8 + $0xdf8] sm:$0xff]
        %v1563 = vld [vmem:[#allocation8 + $0xe00] sm:$0xff]
        %v1564 = vld [vmem:[#allocation8 + $0xe08] sm:$0xff]
        %v1565 = vld [vmem:[#allocation8 + $0xe10] sm:$0xff]
        %v1566 = vld [vmem:[#allocation8 + $0xe18] sm:$0xff]
        %v1567 = vld [vmem:[#allocation8 + $0xe20] sm:$0xff]
        %v1568 = vld [vmem:[#allocation8 + $0xe28] sm:$0xff]
        %v1569 = vld [vmem:[#allocation8 + $0xe30] sm:$0xff]
        %v1570 = vld [vmem:[#allocation8 + $0xe38] sm:$0xff]
        %v1571 = vld [vmem:[#allocation8 + $0xe40] sm:$0xff]
        %v1572 = vld [vmem:[#allocation8 + $0xe48] sm:$0xff]
        %v1573 = vld [vmem:[#allocation8 + $0xe50] sm:$0xff]
        %v1574 = vld [vmem:[#allocation8 + $0xe58] sm:$0xff]
        %v1575 = vld [vmem:[#allocation8 + $0xe60] sm:$0xff]
        %v1576 = vld [vmem:[#allocation8 + $0xe68] sm:$0xff]
        %v1577 = vld [vmem:[#allocation8 + $0xe70] sm:$0xff]
        %v1578 = vld [vmem:[#allocation8 + $0xe78] sm:$0xff]
        %v1579 = vld [vmem:[#allocation8 + $0xe80] sm:$0xff]
        %v1580 = vld [vmem:[#allocation8 + $0xe88] sm:$0xff]
        %v1581 = vld [vmem:[#allocation8 + $0xe90] sm:$0xff]
        %v1582 = vld [vmem:[#allocation8 + $0xe98] sm:$0xff]
        %v1583 = vld [vmem:[#allocation8 + $0xea0] sm:$0xff]
        %v1584 = vld [vmem:[#allocation8 + $0xea8] sm:$0xff]
        %v1585 = vld [vmem:[#allocation8 + $0xeb0] sm:$0xff]
        %v1586 = vld [vmem:[#allocation8 + $0xeb8] sm:$0xff]
        %v1587 = vld [vmem:[#allocation8 + $0xec0] sm:$0xff]
        %v1588 = vld [vmem:[#allocation8 + $0xec8] sm:$0xff]
        %v1589 = vld [vmem:[#allocation8 + $0xed0] sm:$0xff]
        %v1590 = vld [vmem:[#allocation8 + $0xed8] sm:$0xff]
        %v1591 = vld [vmem:[#allocation8 + $0xee0] sm:$0xff]
        %v1592 = vld [vmem:[#allocation8 + $0xee8] sm:$0xff]
        %v1593 = vld [vmem:[#allocation8 + $0xef0] sm:$0xff]
        %v1594 = vld [vmem:[#allocation8 + $0xef8] sm:$0xff]
        %v1595 = vld [vmem:[#allocation8 + $0xf00] sm:$0xff]
        %v1596 = vld [vmem:[#allocation8 + $0xf08] sm:$0xff]
        %v1597 = vld [vmem:[#allocation8 + $0xf10] sm:$0xff]
        %v1598 = vld [vmem:[#allocation8 + $0xf18] sm:$0xff]
        %v1599 = vld [vmem:[#allocation8 + $0xf20] sm:$0xff]
        %v1600 = vld [vmem:[#allocation8 + $0xf28] sm:$0xff]
        %v1601 = vld [vmem:[#allocation8 + $0xf30] sm:$0xff]
        %v1602 = vld [vmem:[#allocation8 + $0xf38] sm:$0xff]
        %v1603 = vld [vmem:[#allocation8 + $0xf40] sm:$0xff]
        %v1604 = vld [vmem:[#allocation8 + $0xf48] sm:$0xff]
        %v1605 = vld [vmem:[#allocation8 + $0xf50] sm:$0xff]
        %v1606 = vld [vmem:[#allocation8 + $0xf58] sm:$0xff]
        %v1607 = vld [vmem:[#allocation8 + $0xf60] sm:$0xff]
        %v1608 = vld [vmem:[#allocation8 + $0xf68] sm:$0xff]
        %v1609 = vld [vmem:[#allocation8 + $0xf70] sm:$0xff]
        %v1610 = vld [vmem:[#allocation8 + $0xf78] sm:$0xff]
        %v1611 = vld [vmem:[#allocation8 + $0xf80] sm:$0xff]
        %v1612 = vld [vmem:[#allocation8 + $0xf88] sm:$0xff]
        %v1613 = vld [vmem:[#allocation8 + $0xf90] sm:$0xff]
        %v1614 = vld [vmem:[#allocation8 + $0xf98] sm:$0xff]
        %v1615 = vld [vmem:[#allocation8 + $0xfa0] sm:$0xff]
        %v1616 = vld [vmem:[#allocation8 + $0xfa8] sm:$0xff]
        %v1617 = vld [vmem:[#allocation8 + $0xfb0] sm:$0xff]
        %v1618 = vld [vmem:[#allocation8 + $0xfb8] sm:$0xff]
        %v1619 = vld [vmem:[#allocation8 + $0xfc0] sm:$0xff]
        %v1620 = vld [vmem:[#allocation8 + $0xfc8] sm:$0xff]
        %v1621 = vld [vmem:[#allocation8 + $0xfd0] sm:$0xff]
        %v1622 = vld [vmem:[#allocation8 + $0xfd8] sm:$0xff]
        %v1623 = vld [vmem:[#allocation8 + $0xfe0] sm:$0xff]
        %v1624 = vld [vmem:[#allocation8 + $0xfe8] sm:$0xff]
        %v1625 = vld [vmem:[#allocation8 + $0xff0] sm:$0xff]
        %v1626 = vld [vmem:[#allocation8 + $0xff8] sm:$0xff]
        %v1627 = vld [vmem:[#allocation8 + $0x1000] sm:$0xff]
        %v1628 = vld [vmem:[#allocation8 + $0x1008] sm:$0xff]
        %v1629 = vld [vmem:[#allocation8 + $0x1010] sm:$0xff]
        %v1630 = vld [vmem:[#allocation8 + $0x1018] sm:$0xff]
        %v1631 = vld [vmem:[#allocation8 + $0x1020] sm:$0xff]
        %v1632 = vld [vmem:[#allocation8 + $0x1028] sm:$0xff]
        %v1633 = vld [vmem:[#allocation8 + $0x1030] sm:$0xff]
        %v1634 = vld [vmem:[#allocation8 + $0x1038] sm:$0xff]
        %v1635 = vld [vmem:[#allocation8 + $0x1040] sm:$0xff]
        %v1636 = vld [vmem:[#allocation8 + $0x1048] sm:$0xff]
        %v1637 = vld [vmem:[#allocation8 + $0x1050] sm:$0xff]
        %v1638 = vld [vmem:[#allocation8 + $0x1058] sm:$0xff]
        %v1639 = vld [vmem:[#allocation8 + $0x1060] sm:$0xff]
        %v1640 = vld [vmem:[#allocation8 + $0x1068] sm:$0xff]
        %v1641 = vld [vmem:[#allocation8 + $0x1070] sm:$0xff]
        %v1642 = vld [vmem:[#allocation8 + $0x1078] sm:$0xff]
        %v1643 = vld [vmem:[#allocation8 + $0x1080] sm:$0xff]
        %v1644 = vld [vmem:[#allocation8 + $0x1088] sm:$0xff]
        %v1645 = vld [vmem:[#allocation8 + $0x1090] sm:$0xff]
        %v1646 = vld [vmem:[#allocation8 + $0x1098] sm:$0xff]
        %v1647 = vld [vmem:[#allocation8 + $0x10a0] sm:$0xff]
        %v1648 = vld [vmem:[#allocation8 + $0x10a8] sm:$0xff]
        %v1649 = vld [vmem:[#allocation8 + $0x10b0] sm:$0xff]
        %v1650 = vld [vmem:[#allocation8 + $0x10b8] sm:$0xff]
        %v1651 = vld [vmem:[#allocation8 + $0x10c0] sm:$0xff]
        %v1652 = vld [vmem:[#allocation8 + $0x10c8] sm:$0xff]
        %v1653 = vld [vmem:[#allocation8 + $0x10d0] sm:$0xff]
        %v1654 = vld [vmem:[#allocation8 + $0x10d8] sm:$0xff]
        %v1655 = vld [vmem:[#allocation8 + $0x10e0] sm:$0xff]
        %v1656 = vld [vmem:[#allocation8 + $0x10e8] sm:$0xff]
        %v1657 = vld [vmem:[#allocation8 + $0x10f0] sm:$0xff]
        %v1658 = vld [vmem:[#allocation8 + $0x10f8] sm:$0xff]
        %v1659 = vld [vmem:[#allocation8 + $0x1100] sm:$0xff]
        %v1660 = vld [vmem:[#allocation8 + $0x1108] sm:$0xff]
        %v1661 = vld [vmem:[#allocation8 + $0x1110] sm:$0xff]
        %v1662 = vld [vmem:[#allocation8 + $0x1118] sm:$0xff]
        %v1663 = vld [vmem:[#allocation8 + $0x1120] sm:$0xff]
        %v1664 = vld [vmem:[#allocation8 + $0x1128] sm:$0xff]
        %v1665 = vld [vmem:[#allocation8 + $0x1130] sm:$0xff]
        %v1666 = vld [vmem:[#allocation8 + $0x1138] sm:$0xff]
        %v1667 = vld [vmem:[#allocation8 + $0x1140] sm:$0xff]
        %v1668 = vld [vmem:[#allocation8 + $0x1148] sm:$0xff]
        %v1669 = vld [vmem:[#allocation8 + $0x1150] sm:$0xff]
        %v1670 = vld [vmem:[#allocation8 + $0x1158] sm:$0xff]
        %v1671 = vld [vmem:[#allocation8 + $0x1160] sm:$0xff]
        %v1672 = vld [vmem:[#allocation8 + $0x1168] sm:$0xff]
        %v1673 = vld [vmem:[#allocation8 + $0x1170] sm:$0xff]
        %v1674 = vld [vmem:[#allocation8 + $0x1178] sm:$0xff]
        %v1675 = vld [vmem:[#allocation8 + $0x1180] sm:$0xff]
        %v1676 = vld [vmem:[#allocation8 + $0x1188] sm:$0xff]
        %v1677 = vld [vmem:[#allocation8 + $0x1190] sm:$0xff]
        %v1678 = vld [vmem:[#allocation8 + $0x1198] sm:$0xff]
        %v1679 = vld [vmem:[#allocation8 + $0x11a0] sm:$0xff]
        %v1680 = vld [vmem:[#allocation8 + $0x11a8] sm:$0xff]
        %v1681 = vld [vmem:[#allocation8 + $0x11b0] sm:$0xff]
        %v1682 = vld [vmem:[#allocation8 + $0x11b8] sm:$0xff]
        %v1683 = vld [vmem:[#allocation8 + $0x11c0] sm:$0xff]
        %v1684 = vld [vmem:[#allocation8 + $0x11c8] sm:$0xff]
        %v1685 = vld [vmem:[#allocation8 + $0x11d0] sm:$0xff]
        %v1686 = vld [vmem:[#allocation8 + $0x11d8] sm:$0xff]
        %v1687 = vld [vmem:[#allocation8 + $0x11e0] sm:$0xff]
        %v1688 = vld [vmem:[#allocation8 + $0x11e8] sm:$0xff]
        %v1689 = vld [vmem:[#allocation8 + $0x11f0] sm:$0xff]
        %v1690 = vld [vmem:[#allocation8 + $0x11f8] sm:$0xff]
        %v1691 = vld [vmem:[#allocation8 + $0x1200] sm:$0xff]
        %v1692 = vld [vmem:[#allocation8 + $0x1208] sm:$0xff]
        %v1693 = vld [vmem:[#allocation8 + $0x1210] sm:$0xff]
        %v1694 = vld [vmem:[#allocation8 + $0x1218] sm:$0xff]
        %v1695 = vld [vmem:[#allocation8 + $0x1220] sm:$0xff]
        %v1696 = vld [vmem:[#allocation8 + $0x1228] sm:$0xff]
        %v1697 = vld [vmem:[#allocation8 + $0x1230] sm:$0xff]
        %v1698 = vld [vmem:[#allocation8 + $0x1238] sm:$0xff]
        %v1699 = vld [vmem:[#allocation8 + $0x1240] sm:$0xff]
        %v1700 = vld [vmem:[#allocation8 + $0x1248] sm:$0xff]
        %v1701 = vld [vmem:[#allocation8 + $0x1250] sm:$0xff]
        %v1702 = vld [vmem:[#allocation8 + $0x1258] sm:$0xff]
        %v1703 = vld [vmem:[#allocation8 + $0x1260] sm:$0xff]
        %v1704 = vld [vmem:[#allocation8 + $0x1268] sm:$0xff]
        %v1705 = vld [vmem:[#allocation8 + $0x1270] sm:$0xff]
        %v1706 = vld [vmem:[#allocation8 + $0x1278] sm:$0xff]
        %v1707 = vld [vmem:[#allocation8 + $0x1280] sm:$0xff]
        %v1708 = vld [vmem:[#allocation8 + $0x1288] sm:$0xff]
        %v1709 = vld [vmem:[#allocation8 + $0x1290] sm:$0xff]
        %v1710 = vld [vmem:[#allocation8 + $0x1298] sm:$0xff]
        %v1711 = vld [vmem:[#allocation8 + $0x12a0] sm:$0xff]
        %v1712 = vld [vmem:[#allocation8 + $0x12a8] sm:$0xff]
        %v1713 = vld [vmem:[#allocation8 + $0x12b0] sm:$0xff]
        %v1714 = vld [vmem:[#allocation8 + $0x12b8] sm:$0xff]
        %v1715 = vld [vmem:[#allocation8 + $0x12c0] sm:$0xff]
        %v1716 = vld [vmem:[#allocation8 + $0x12c8] sm:$0xff]
        %v1717 = vld [vmem:[#allocation8 + $0x12d0] sm:$0xff]
        %v1718 = vld [vmem:[#allocation8 + $0x12d8] sm:$0xff]
        %v1719 = vld [vmem:[#allocation8 + $0x12e0] sm:$0xff]
        %v1720 = vld [vmem:[#allocation8 + $0x12e8] sm:$0xff]
        %v1721 = vld [vmem:[#allocation8 + $0x12f0] sm:$0xff]
        %v1722 = vld [vmem:[#allocation8 + $0x12f8] sm:$0xff]
        %v1723 = vld [vmem:[#allocation8 + $0x1300] sm:$0xff]
        %v1724 = vld [vmem:[#allocation8 + $0x1308] sm:$0xff]
        %v1725 = vld [vmem:[#allocation8 + $0x1310] sm:$0xff]
        %v1726 = vld [vmem:[#allocation8 + $0x1318] sm:$0xff]
        %v1727 = vld [vmem:[#allocation8 + $0x1320] sm:$0xff]
        %v1728 = vld [vmem:[#allocation8 + $0x1328] sm:$0xff]
        %v1729 = vld [vmem:[#allocation8 + $0x1330] sm:$0xff]
        %v1730 = vld [vmem:[#allocation8 + $0x1338] sm:$0xff]
        %v1731 = vld [vmem:[#allocation8 + $0x1340] sm:$0xff]
        %v1732 = vld [vmem:[#allocation8 + $0x1348] sm:$0xff]
        %v1733 = vld [vmem:[#allocation8 + $0x1350] sm:$0xff]
        %v1734 = vld [vmem:[#allocation8 + $0x1358] sm:$0xff]
        %v1735 = vld [vmem:[#allocation8 + $0x1360] sm:$0xff]
        %v1736 = vld [vmem:[#allocation8 + $0x1368] sm:$0xff]
        %v1737 = vld [vmem:[#allocation8 + $0x1370] sm:$0xff]
        %v1738 = vld [vmem:[#allocation8 + $0x1378] sm:$0xff]
        %v1739 = vld [vmem:[#allocation8 + $0x1380] sm:$0xff]
        %v1740 = vld [vmem:[#allocation8 + $0x1388] sm:$0xff]
        %v1741 = vld [vmem:[#allocation8 + $0x1390] sm:$0xff]
        %v1742 = vld [vmem:[#allocation8 + $0x1398] sm:$0xff]
        %v1743 = vld [vmem:[#allocation8 + $0x13a0] sm:$0xff]
        %v1744 = vld [vmem:[#allocation8 + $0x13a8] sm:$0xff]
        %v1745 = vld [vmem:[#allocation8 + $0x13b0] sm:$0xff]
        %v1746 = vld [vmem:[#allocation8 + $0x13b8] sm:$0xff]
        %v1747 = vld [vmem:[#allocation8 + $0x13c0] sm:$0xff]
        %v1748 = vld [vmem:[#allocation8 + $0x13c8] sm:$0xff]
        %v1749 = vld [vmem:[#allocation8 + $0x13d0] sm:$0xff]
        %v1750 = vld [vmem:[#allocation8 + $0x13d8] sm:$0xff]
        %v1751 = vld [vmem:[#allocation8 + $0x13e0] sm:$0xff]
        %v1752 = vld [vmem:[#allocation8 + $0x13e8] sm:$0xff]
        %v1753 = vld [vmem:[#allocation8 + $0x13f0] sm:$0xff]
        %v1754 = vld [vmem:[#allocation8 + $0x13f8] sm:$0xff]
        %v1755 = vld [vmem:[#allocation8 + $0x1400] sm:$0xff]
        %v1756 = vld [vmem:[#allocation8 + $0x1408] sm:$0xff]
        %v1757 = vld [vmem:[#allocation8 + $0x1410] sm:$0xff]
        %v1758 = vld [vmem:[#allocation8 + $0x1418] sm:$0xff]
        %v1759 = vld [vmem:[#allocation8 + $0x1420] sm:$0xff]
        %v1760 = vld [vmem:[#allocation8 + $0x1428] sm:$0xff]
        %v1761 = vld [vmem:[#allocation8 + $0x1430] sm:$0xff]
        %v1762 = vld [vmem:[#allocation8 + $0x1438] sm:$0xff]
        %v1763 = vld [vmem:[#allocation8 + $0x1440] sm:$0xff]
        %v1764 = vld [vmem:[#allocation8 + $0x1448] sm:$0xff]
        %v1765 = vld [vmem:[#allocation8 + $0x1450] sm:$0xff]
        %v1766 = vld [vmem:[#allocation8 + $0x1458] sm:$0xff]
        %v1767 = vld [vmem:[#allocation8 + $0x1460] sm:$0xff]
        %v1768 = vld [vmem:[#allocation8 + $0x1468] sm:$0xff]
        %v1769 = vld [vmem:[#allocation8 + $0x1470] sm:$0xff]
        %v1770 = vld [vmem:[#allocation8 + $0x1478] sm:$0xff]
        %v1771 = vld [vmem:[#allocation8 + $0x1480] sm:$0xff]
        %v1772 = vld [vmem:[#allocation8 + $0x1488] sm:$0xff]
        %v1773 = vld [vmem:[#allocation8 + $0x1490] sm:$0xff]
        %v1774 = vld [vmem:[#allocation8 + $0x1498] sm:$0xff]
        %v1775 = vld [vmem:[#allocation8 + $0x14a0] sm:$0xff]
        %v1776 = vld [vmem:[#allocation8 + $0x14a8] sm:$0xff]
        %v1777 = vld [vmem:[#allocation8 + $0x14b0] sm:$0xff]
        %v1778 = vld [vmem:[#allocation8 + $0x14b8] sm:$0xff]
        %v1779 = vld [vmem:[#allocation8 + $0x14c0] sm:$0xff]
        %v1780 = vld [vmem:[#allocation8 + $0x14c8] sm:$0xff]
        %v1781 = vld [vmem:[#allocation8 + $0x14d0] sm:$0xff]
        %v1782 = vld [vmem:[#allocation8 + $0x14d8] sm:$0xff]
        %v1783 = vld [vmem:[#allocation8 + $0x14e0] sm:$0xff]
        %v1784 = vld [vmem:[#allocation8 + $0x14e8] sm:$0xff]
        %v1785 = vld [vmem:[#allocation8 + $0x14f0] sm:$0xff]
        %v1786 = vld [vmem:[#allocation8 + $0x14f8] sm:$0xff]
        %v1787 = vld [vmem:[#allocation8 + $0x1500] sm:$0xff]
        %v1788 = vld [vmem:[#allocation8 + $0x1508] sm:$0xff]
        %v1789 = vld [vmem:[#allocation8 + $0x1510] sm:$0xff]
        %v1790 = vld [vmem:[#allocation8 + $0x1518] sm:$0xff]
        %v1791 = vld [vmem:[#allocation8 + $0x1520] sm:$0xff]
        %v1792 = vld [vmem:[#allocation8 + $0x1528] sm:$0xff]
        %v1793 = vld [vmem:[#allocation8 + $0x1530] sm:$0xff]
        %v1794 = vld [vmem:[#allocation8 + $0x1538] sm:$0xff]
        %v1795 = vld [vmem:[#allocation8 + $0x1540] sm:$0xff]
        %v1796 = vld [vmem:[#allocation8 + $0x1548] sm:$0xff]
        %v1797 = vld [vmem:[#allocation8 + $0x1550] sm:$0xff]
        %v1798 = vld [vmem:[#allocation8 + $0x1558] sm:$0xff]
        %v1799 = vld [vmem:[#allocation8 + $0x1560] sm:$0xff]
        %v1800 = vld [vmem:[#allocation8 + $0x1568] sm:$0xff]
        %v1801 = vld [vmem:[#allocation8 + $0x1570] sm:$0xff]
        %v1802 = vld [vmem:[#allocation8 + $0x1578] sm:$0xff]
        %v1803 = vld [vmem:[#allocation8 + $0x1580] sm:$0xff]
        %v1804 = vld [vmem:[#allocation8 + $0x1588] sm:$0xff]
        %v1805 = vld [vmem:[#allocation8 + $0x1590] sm:$0xff]
        %v1806 = vld [vmem:[#allocation8 + $0x1598] sm:$0xff]
        %v1807 = vld [vmem:[#allocation8 + $0x15a0] sm:$0xff]
        %v1808 = vld [vmem:[#allocation8 + $0x15a8] sm:$0xff]
        %v1809 = vld [vmem:[#allocation8 + $0x15b0] sm:$0xff]
        %v1810 = vld [vmem:[#allocation8 + $0x15b8] sm:$0xff]
        %v1811 = vld [vmem:[#allocation8 + $0x15c0] sm:$0xff]
        %v1812 = vld [vmem:[#allocation8 + $0x15c8] sm:$0xff]
        %v1813 = vld [vmem:[#allocation8 + $0x15d0] sm:$0xff]
        %v1814 = vld [vmem:[#allocation8 + $0x15d8] sm:$0xff]
        %v1815 = vld [vmem:[#allocation8 + $0x15e0] sm:$0xff]
        %v1816 = vld [vmem:[#allocation8 + $0x15e8] sm:$0xff]
        %v1817 = vld [vmem:[#allocation8 + $0x15f0] sm:$0xff]
        %v1818 = vld [vmem:[#allocation8 + $0x15f8] sm:$0xff]
        %v1819 = vld [vmem:[#allocation8 + $0x1600] sm:$0xff]
        %v1820 = vld [vmem:[#allocation8 + $0x1608] sm:$0xff]
        %v1821 = vld [vmem:[#allocation8 + $0x1610] sm:$0xff]
        %v1822 = vld [vmem:[#allocation8 + $0x1618] sm:$0xff]
        %v1823 = vld [vmem:[#allocation8 + $0x1620] sm:$0xff]
        %v1824 = vld [vmem:[#allocation8 + $0x1628] sm:$0xff]
        %v1825 = vld [vmem:[#allocation8 + $0x1630] sm:$0xff]
        %v1826 = vld [vmem:[#allocation8 + $0x1638] sm:$0xff]
        %v1827 = vld [vmem:[#allocation8 + $0x1640] sm:$0xff]
        %v1828 = vld [vmem:[#allocation8 + $0x1648] sm:$0xff]
        %v1829 = vld [vmem:[#allocation8 + $0x1650] sm:$0xff]
        %v1830 = vld [vmem:[#allocation8 + $0x1658] sm:$0xff]
        %v1831 = vld [vmem:[#allocation8 + $0x1660] sm:$0xff]
        %v1832 = vld [vmem:[#allocation8 + $0x1668] sm:$0xff]
        %v1833 = vld [vmem:[#allocation8 + $0x1670] sm:$0xff]
        %v1834 = vld [vmem:[#allocation8 + $0x1678] sm:$0xff]
        %v1835 = vld [vmem:[#allocation8 + $0x1680] sm:$0xff]
        %v1836 = vld [vmem:[#allocation8 + $0x1688] sm:$0xff]
        %v1837 = vld [vmem:[#allocation8 + $0x1690] sm:$0xff]
        %v1838 = vld [vmem:[#allocation8 + $0x1698] sm:$0xff]
        %v1839 = vld [vmem:[#allocation8 + $0x16a0] sm:$0xff]
        %v1840 = vld [vmem:[#allocation8 + $0x16a8] sm:$0xff]
        %v1841 = vld [vmem:[#allocation8 + $0x16b0] sm:$0xff]
        %v1842 = vld [vmem:[#allocation8 + $0x16b8] sm:$0xff]
        %v1843 = vld [vmem:[#allocation8 + $0x16c0] sm:$0xff]
        %v1844 = vld [vmem:[#allocation8 + $0x16c8] sm:$0xff]
        %v1845 = vld [vmem:[#allocation8 + $0x16d0] sm:$0xff]
        %v1846 = vld [vmem:[#allocation8 + $0x16d8] sm:$0xff]
        %v1847 = vld [vmem:[#allocation8 + $0x16e0] sm:$0xff]
        %v1848 = vld [vmem:[#allocation8 + $0x16e8] sm:$0xff]
        %v1849 = vld [vmem:[#allocation8 + $0x16f0] sm:$0xff]
        %v1850 = vld [vmem:[#allocation8 + $0x16f8] sm:$0xff]
        %v1851 = vld [vmem:[#allocation8 + $0x1700] sm:$0xff]
        %v1852 = vld [vmem:[#allocation8 + $0x1708] sm:$0xff]
        %v1853 = vld [vmem:[#allocation8 + $0x1710] sm:$0xff]
        %v1854 = vld [vmem:[#allocation8 + $0x1718] sm:$0xff]
        %v1855 = vld [vmem:[#allocation8 + $0x1720] sm:$0xff]
        %v1856 = vld [vmem:[#allocation8 + $0x1728] sm:$0xff]
        %v1857 = vld [vmem:[#allocation8 + $0x1730] sm:$0xff]
        %v1858 = vld [vmem:[#allocation8 + $0x1738] sm:$0xff]
        %v1859 = vld [vmem:[#allocation8 + $0x1740] sm:$0xff]
        %v1860 = vld [vmem:[#allocation8 + $0x1748] sm:$0xff]
        %v1861 = vld [vmem:[#allocation8 + $0x1750] sm:$0xff]
        %v1862 = vld [vmem:[#allocation8 + $0x1758] sm:$0xff]
        %v1863 = vld [vmem:[#allocation8 + $0x1760] sm:$0xff]
        %v1864 = vld [vmem:[#allocation8 + $0x1768] sm:$0xff]
        %v1865 = vld [vmem:[#allocation8 + $0x1770] sm:$0xff]
        %v1866 = vld [vmem:[#allocation8 + $0x1778] sm:$0xff]
        %v1867 = vld [vmem:[#allocation8 + $0x1780] sm:$0xff]
        %v1868 = vld [vmem:[#allocation8 + $0x1788] sm:$0xff]
        %v1869 = vld [vmem:[#allocation8 + $0x1790] sm:$0xff]
        %v1870 = vld [vmem:[#allocation8 + $0x1798] sm:$0xff]
        %v1871 = vld [vmem:[#allocation8 + $0x17a0] sm:$0xff]
        %v1872 = vld [vmem:[#allocation8 + $0x17a8] sm:$0xff]
        %v1873 = vld [vmem:[#allocation8 + $0x17b0] sm:$0xff]
        %v1874 = vld [vmem:[#allocation8 + $0x17b8] sm:$0xff]
        %v1875 = vld [vmem:[#allocation8 + $0x17c0] sm:$0xff]
        %v1876 = vld [vmem:[#allocation8 + $0x17c8] sm:$0xff]
        %v1877 = vld [vmem:[#allocation8 + $0x17d0] sm:$0xff]
        %v1878 = vld [vmem:[#allocation8 + $0x17d8] sm:$0xff]
        %v1879 = vld [vmem:[#allocation8 + $0x17e0] sm:$0xff]
        %v1880 = vld [vmem:[#allocation8 + $0x17e8] sm:$0xff]
        %v1881 = vld [vmem:[#allocation8 + $0x17f0] sm:$0xff]
        %v1882 = vld [vmem:[#allocation8 + $0x17f8] sm:$0xff]
        %v1883 = vld [vmem:[#allocation8 + $0x1800] sm:$0xff]
        %v1884 = vld [vmem:[#allocation8 + $0x1808] sm:$0xff]
        %v1885 = vld [vmem:[#allocation8 + $0x1810] sm:$0xff]
        %v1886 = vld [vmem:[#allocation8 + $0x1818] sm:$0xff]
        %v1887 = vld [vmem:[#allocation8 + $0x1820] sm:$0xff]
        %v1888 = vld [vmem:[#allocation8 + $0x1828] sm:$0xff]
        %v1889 = vld [vmem:[#allocation8 + $0x1830] sm:$0xff]
        %v1890 = vld [vmem:[#allocation8 + $0x1838] sm:$0xff]
        %v1891 = vld [vmem:[#allocation8 + $0x1840] sm:$0xff]
        %v1892 = vld [vmem:[#allocation8 + $0x1848] sm:$0xff]
        %v1893 = vld [vmem:[#allocation8 + $0x1850] sm:$0xff]
        %v1894 = vld [vmem:[#allocation8 + $0x1858] sm:$0xff]
        %v1895 = vld [vmem:[#allocation8 + $0x1860] sm:$0xff]
        %v1896 = vld [vmem:[#allocation8 + $0x1868] sm:$0xff]
        %v1897 = vld [vmem:[#allocation8 + $0x1870] sm:$0xff]
        %v1898 = vld [vmem:[#allocation8 + $0x1878] sm:$0xff]
        %v1899 = vld [vmem:[#allocation8 + $0x1880] sm:$0xff]
        %v1900 = vld [vmem:[#allocation8 + $0x1888] sm:$0xff]
        %v1901 = vld [vmem:[#allocation8 + $0x1890] sm:$0xff]
        %v1902 = vld [vmem:[#allocation8 + $0x1898] sm:$0xff]
        %v1903 = vld [vmem:[#allocation8 + $0x18a0] sm:$0xff]
        %v1904 = vld [vmem:[#allocation8 + $0x18a8] sm:$0xff]
        %v1905 = vld [vmem:[#allocation8 + $0x18b0] sm:$0xff]
        %v1906 = vld [vmem:[#allocation8 + $0x18b8] sm:$0xff]
        %v1907 = vld [vmem:[#allocation8 + $0x18c0] sm:$0xff]
        %v1908 = vld [vmem:[#allocation8 + $0x18c8] sm:$0xff]
        %v1909 = vld [vmem:[#allocation8 + $0x18d0] sm:$0xff]
        %v1910 = vld [vmem:[#allocation8 + $0x18d8] sm:$0xff]
        %v1911 = vld [vmem:[#allocation8 + $0x18e0] sm:$0xff]
        %v1912 = vld [vmem:[#allocation8 + $0x18e8] sm:$0xff]
        %v1913 = vld [vmem:[#allocation8 + $0x18f0] sm:$0xff]
        %v1914 = vld [vmem:[#allocation8 + $0x18f8] sm:$0xff]
        %v1915 = vld [vmem:[#allocation9] sm:$0x1f]
        %v1917 = vperm.slane %v1915, 0
        %v1918 = vperm.slane %v1915, 1
        %v1919 = vperm.slane %v1915, 2
        %v1920 = vperm.slane %v1915, 3
        %v1921 = vperm.slane %v1915, 4
        %1927 = vmatpush.msra.mxu0 %v1190
        %1928 = vmatpush.msra.mxu0 %v1185
        %1929 = vmatpush.msra.mxu0 %v1180
        %1930 = vmatpush.msra.mxu0 %v1175
        %1931 = vmatpush.msra.mxu0 %v1170
        %1932 = vmatpush.msra.mxu0 %v1165
        %1933 = vmatpush.msra.mxu0 %v1160
        %1934 = vmatpush.msra.mxu0 %v1155
        %1935 = vmatpush.msra.mxu0 %v1150
        %1936 = vmatpush.msra.mxu0 %v1145
        %1937 = vmatpush.msra.mxu0 %v1140
        %1938 = vmatpush.msra.mxu0 %v1135
        %1939 = vmatpush.msra.mxu0 %v1130
        %1940 = vmatpush.msra.mxu0 %v1125
        %1941 = vmatpush.msra.mxu0 %v1120
        %1942 = vmatpush.msra.mxu0 %v1115
        %1943 = vmatmul.f32.gmra.mxu0 %v1105
        %v1944 = vpop.f32.mrf.mxu0
        %v1945 = vadd.f32 %v1917, %v1944
        %1946 = vdwg.mxu0
        %1947 = vmatpush.msra.mxu0 %v1270
        %1948 = vmatpush.msra.mxu0 %v1265
        %1949 = vmatpush.msra.mxu0 %v1260
        %1950 = vmatpush.msra.mxu0 %v1255
        %1951 = vmatpush.msra.mxu0 %v1250
        %1952 = vmatpush.msra.mxu0 %v1245
        %1953 = vmatpush.msra.mxu0 %v1240
        %1954 = vmatpush.msra.mxu0 %v1235
        %1955 = vmatpush.msra.mxu0 %v1230
        %1956 = vmatpush.msra.mxu0 %v1225
        %1957 = vmatpush.msra.mxu0 %v1220
        %1958 = vmatpush.msra.mxu0 %v1215
        %1959 = vmatpush.msra.mxu0 %v1210
        %1960 = vmatpush.msra.mxu0 %v1205
        %1961 = vmatpush.msra.mxu0 %v1200
        %1962 = vmatpush.msra.mxu0 %v1195
        %1963 = vmatmul.f32.gmra.mxu0 %v1106
        %v1964 = vpop.f32.mrf.mxu0
        %v1965 = vadd.f32 %v1945, %v1964
        %1966 = vdwg.mxu0
        %1967 = vmatpush.msra.mxu0 %v1350
        %1968 = vmatpush.msra.mxu0 %v1345
        %1969 = vmatpush.msra.mxu0 %v1340
        %1970 = vmatpush.msra.mxu0 %v1335
        %1971 = vmatpush.msra.mxu0 %v1330
        %1972 = vmatpush.msra.mxu0 %v1325
        %1973 = vmatpush.msra.mxu0 %v1320
        %1974 = vmatpush.msra.mxu0 %v1315
        %1975 = vmatpush.msra.mxu0 %v1310
        %1976 = vmatpush.msra.mxu0 %v1305
        %1977 = vmatpush.msra.mxu0 %v1300
        %1978 = vmatpush.msra.mxu0 %v1295
        %1979 = vmatpush.msra.mxu0 %v1290
        %1980 = vmatpush.msra.mxu0 %v1285
        %1981 = vmatpush.msra.mxu0 %v1280
        %1982 = vmatpush.msra.mxu0 %v1275
        %1983 = vmatmul.f32.gmra.mxu0 %v1107
        %v1984 = vpop.f32.mrf.mxu0
        %v1985 = vadd.f32 %v1965, %v1984
        %1986 = vdwg.mxu0
        %1987 = vmatpush.msra.mxu0 %v1430
        %1988 = vmatpush.msra.mxu0 %v1425
        %1989 = vmatpush.msra.mxu0 %v1420
        %1990 = vmatpush.msra.mxu0 %v1415
        %1991 = vmatpush.msra.mxu0 %v1410
        %1992 = vmatpush.msra.mxu0 %v1405
        %1993 = vmatpush.msra.mxu0 %v1400
        %1994 = vmatpush.msra.mxu0 %v1395
        %1995 = vmatpush.msra.mxu0 %v1390
        %1996 = vmatpush.msra.mxu0 %v1385
        %1997 = vmatpush.msra.mxu0 %v1380
        %1998 = vmatpush.msra.mxu0 %v1375
        %1999 = vmatpush.msra.mxu0 %v1370
        %2000 = vmatpush.msra.mxu0 %v1365
        %2001 = vmatpush.msra.mxu0 %v1360
        %2002 = vmatpush.msra.mxu0 %v1355
        %2003 = vmatmul.f32.gmra.mxu0 %v1108
        %v2004 = vpop.f32.mrf.mxu0
        %v2005 = vadd.f32 %v1985, %v2004
        %2006 = vdwg.mxu0
        %2007 = vmatpush.msra.mxu0 %v1510
        %2008 = vmatpush.msra.mxu0 %v1505
        %2009 = vmatpush.msra.mxu0 %v1500
        %2010 = vmatpush.msra.mxu0 %v1495
        %2011 = vmatpush.msra.mxu0 %v1490
        %2012 = vmatpush.msra.mxu0 %v1485
        %2013 = vmatpush.msra.mxu0 %v1480
        %2014 = vmatpush.msra.mxu0 %v1475
        %2015 = vmatpush.msra.mxu0 %v1470
        %2016 = vmatpush.msra.mxu0 %v1465
        %2017 = vmatpush.msra.mxu0 %v1460
        %2018 = vmatpush.msra.mxu0 %v1455
        %2019 = vmatpush.msra.mxu0 %v1450
        %2020 = vmatpush.msra.mxu0 %v1445
        %2021 = vmatpush.msra.mxu0 %v1440
        %2022 = vmatpush.msra.mxu0 %v1435
        %2023 = vmatmul.f32.gmra.mxu0 %v1109
        %v2024 = vpop.f32.mrf.mxu0
        %v2025 = vadd.f32 %v2005, %v2024
        %2026 = vdwg.mxu0
        %2027 = vmatpush.msra.mxu0 %v1590
        %2028 = vmatpush.msra.mxu0 %v1585
        %2029 = vmatpush.msra.mxu0 %v1580
        %2030 = vmatpush.msra.mxu0 %v1575
        %2031 = vmatpush.msra.mxu0 %v1570
        %2032 = vmatpush.msra.mxu0 %v1565
        %2033 = vmatpush.msra.mxu0 %v1560
        %2034 = vmatpush.msra.mxu0 %v1555
        %2035 = vmatpush.msra.mxu0 %v1550
        %2036 = vmatpush.msra.mxu0 %v1545
        %2037 = vmatpush.msra.mxu0 %v1540
        %2038 = vmatpush.msra.mxu0 %v1535
        %2039 = vmatpush.msra.mxu0 %v1530
        %2040 = vmatpush.msra.mxu0 %v1525
        %2041 = vmatpush.msra.mxu0 %v1520
        %2042 = vmatpush.msra.mxu0 %v1515
        %2043 = vmatmul.f32.gmra.mxu0 %v1110
        %v2044 = vpop.f32.mrf.mxu0
        %v2045 = vadd.f32 %v2025, %v2044
        %2046 = vdwg.mxu0
        %2047 = vmatpush.msra.mxu0 %v1670
        %2048 = vmatpush.msra.mxu0 %v1665
        %2049 = vmatpush.msra.mxu0 %v1660
        %2050 = vmatpush.msra.mxu0 %v1655
        %2051 = vmatpush.msra.mxu0 %v1650
        %2052 = vmatpush.msra.mxu0 %v1645
        %2053 = vmatpush.msra.mxu0 %v1640
        %2054 = vmatpush.msra.mxu0 %v1635
        %2055 = vmatpush.msra.mxu0 %v1630
        %2056 = vmatpush.msra.mxu0 %v1625
        %2057 = vmatpush.msra.mxu0 %v1620
        %2058 = vmatpush.msra.mxu0 %v1615
        %2059 = vmatpush.msra.mxu0 %v1610
        %2060 = vmatpush.msra.mxu0 %v1605
        %2061 = vmatpush.msra.mxu0 %v1600
        %2062 = vmatpush.msra.mxu0 %v1595
        %2063 = vmatmul.f32.gmra.mxu0 %v1111
        %v2064 = vpop.f32.mrf.mxu0
        %v2065 = vadd.f32 %v2045, %v2064
        %2066 = vdwg.mxu0
        %2067 = vmatpush.msra.mxu0 %v1750
        %2068 = vmatpush.msra.mxu0 %v1745
        %2069 = vmatpush.msra.mxu0 %v1740
        %2070 = vmatpush.msra.mxu0 %v1735
        %2071 = vmatpush.msra.mxu0 %v1730
        %2072 = vmatpush.msra.mxu0 %v1725
        %2073 = vmatpush.msra.mxu0 %v1720
        %2074 = vmatpush.msra.mxu0 %v1715
        %2075 = vmatpush.msra.mxu0 %v1710
        %2076 = vmatpush.msra.mxu0 %v1705
        %2077 = vmatpush.msra.mxu0 %v1700
        %2078 = vmatpush.msra.mxu0 %v1695
        %2079 = vmatpush.msra.mxu0 %v1690
        %2080 = vmatpush.msra.mxu0 %v1685
        %2081 = vmatpush.msra.mxu0 %v1680
        %2082 = vmatpush.msra.mxu0 %v1675
        %2083 = vmatmul.f32.gmra.mxu0 %v1112
        %v2084 = vpop.f32.mrf.mxu0
        %v2085 = vadd.f32 %v2065, %v2084
        %2086 = vdwg.mxu0
        %2087 = vmatpush.msra.mxu0 %v1830
        %2088 = vmatpush.msra.mxu0 %v1825
        %2089 = vmatpush.msra.mxu0 %v1820
        %2090 = vmatpush.msra.mxu0 %v1815
        %2091 = vmatpush.msra.mxu0 %v1810
        %2092 = vmatpush.msra.mxu0 %v1805
        %2093 = vmatpush.msra.mxu0 %v1800
        %2094 = vmatpush.msra.mxu0 %v1795
        %2095 = vmatpush.msra.mxu0 %v1790
        %2096 = vmatpush.msra.mxu0 %v1785
        %2097 = vmatpush.msra.mxu0 %v1780
        %2098 = vmatpush.msra.mxu0 %v1775
        %2099 = vmatpush.msra.mxu0 %v1770
        %2100 = vmatpush.msra.mxu0 %v1765
        %2101 = vmatpush.msra.mxu0 %v1760
        %2102 = vmatpush.msra.mxu0 %v1755
        %2103 = vmatmul.f32.gmra.mxu0 %v1113
        %v2104 = vpop.f32.mrf.mxu0
        %v2105 = vadd.f32 %v2085, %v2104
        %2106 = vdwg.mxu0
        %2107 = vmatpush.msra.mxu0 %v1910
        %2108 = vmatpush.msra.mxu0 %v1905
        %2109 = vmatpush.msra.mxu0 %v1900
        %2110 = vmatpush.msra.mxu0 %v1895
        %2111 = vmatpush.msra.mxu0 %v1890
        %2112 = vmatpush.msra.mxu0 %v1885
        %2113 = vmatpush.msra.mxu0 %v1880
        %2114 = vmatpush.msra.mxu0 %v1875
        %2115 = vmatpush.msra.mxu0 %v1870
        %2116 = vmatpush.msra.mxu0 %v1865
        %2117 = vmatpush.msra.mxu0 %v1860
        %2118 = vmatpush.msra.mxu0 %v1855
        %2119 = vmatpush.msra.mxu0 %v1850
        %2120 = vmatpush.msra.mxu0 %v1845
        %2121 = vmatpush.msra.mxu0 %v1840
        %2122 = vmatpush.msra.mxu0 %v1835
        %2123 = vmatmul.f32.gmra.mxu0 %v1114
        %v2124 = vpop.f32.mrf.mxu0
        %v2125 = vadd.f32 %v2105, %v2124
        %2126 = vdwg.mxu0
        %2127 = vmatpush.msra.mxu0 %v1191
        %2128 = vmatpush.msra.mxu0 %v1186
        %2129 = vmatpush.msra.mxu0 %v1181
        %2130 = vmatpush.msra.mxu0 %v1176
        %2131 = vmatpush.msra.mxu0 %v1171
        %2132 = vmatpush.msra.mxu0 %v1166
        %2133 = vmatpush.msra.mxu0 %v1161
        %2134 = vmatpush.msra.mxu0 %v1156
        %2135 = vmatpush.msra.mxu0 %v1151
        %2136 = vmatpush.msra.mxu0 %v1146
        %2137 = vmatpush.msra.mxu0 %v1141
        %2138 = vmatpush.msra.mxu0 %v1136
        %2139 = vmatpush.msra.mxu0 %v1131
        %2140 = vmatpush.msra.mxu0 %v1126
        %2141 = vmatpush.msra.mxu0 %v1121
        %2142 = vmatpush.msra.mxu0 %v1116
        %2143 = vmatmul.f32.gmra.mxu0 %v1105
        %v2144 = vpop.f32.mrf.mxu0
        %v2145 = vadd.f32 %v1918, %v2144
        %2146 = vdwg.mxu0
        %2147 = vmatpush.msra.mxu0 %v1271
        %2148 = vmatpush.msra.mxu0 %v1266
        %2149 = vmatpush.msra.mxu0 %v1261
        %2150 = vmatpush.msra.mxu0 %v1256
        %2151 = vmatpush.msra.mxu0 %v1251
        %2152 = vmatpush.msra.mxu0 %v1246
        %2153 = vmatpush.msra.mxu0 %v1241
        %2154 = vmatpush.msra.mxu0 %v1236
        %2155 = vmatpush.msra.mxu0 %v1231
        %2156 = vmatpush.msra.mxu0 %v1226
        %2157 = vmatpush.msra.mxu0 %v1221
        %2158 = vmatpush.msra.mxu0 %v1216
        %2159 = vmatpush.msra.mxu0 %v1211
        %2160 = vmatpush.msra.mxu0 %v1206
        %2161 = vmatpush.msra.mxu0 %v1201
        %2162 = vmatpush.msra.mxu0 %v1196
        %2163 = vmatmul.f32.gmra.mxu0 %v1106
        %v2164 = vpop.f32.mrf.mxu0
        %v2165 = vadd.f32 %v2145, %v2164
        %2166 = vdwg.mxu0
        %2167 = vmatpush.msra.mxu0 %v1351
        %2168 = vmatpush.msra.mxu0 %v1346
        %2169 = vmatpush.msra.mxu0 %v1341
        %2170 = vmatpush.msra.mxu0 %v1336
        %2171 = vmatpush.msra.mxu0 %v1331
        %2172 = vmatpush.msra.mxu0 %v1326
        %2173 = vmatpush.msra.mxu0 %v1321
        %2174 = vmatpush.msra.mxu0 %v1316
        %2175 = vmatpush.msra.mxu0 %v1311
        %2176 = vmatpush.msra.mxu0 %v1306
        %2177 = vmatpush.msra.mxu0 %v1301
        %2178 = vmatpush.msra.mxu0 %v1296
        %2179 = vmatpush.msra.mxu0 %v1291
        %2180 = vmatpush.msra.mxu0 %v1286
        %2181 = vmatpush.msra.mxu0 %v1281
        %2182 = vmatpush.msra.mxu0 %v1276
        %2183 = vmatmul.f32.gmra.mxu0 %v1107
        %v2184 = vpop.f32.mrf.mxu0
        %v2185 = vadd.f32 %v2165, %v2184
        %2186 = vdwg.mxu0
        %2187 = vmatpush.msra.mxu0 %v1431
        %2188 = vmatpush.msra.mxu0 %v1426
        %2189 = vmatpush.msra.mxu0 %v1421
        %2190 = vmatpush.msra.mxu0 %v1416
        %2191 = vmatpush.msra.mxu0 %v1411
        %2192 = vmatpush.msra.mxu0 %v1406
        %2193 = vmatpush.msra.mxu0 %v1401
        %2194 = vmatpush.msra.mxu0 %v1396
        %2195 = vmatpush.msra.mxu0 %v1391
        %2196 = vmatpush.msra.mxu0 %v1386
        %2197 = vmatpush.msra.mxu0 %v1381
        %2198 = vmatpush.msra.mxu0 %v1376
        %2199 = vmatpush.msra.mxu0 %v1371
        %2200 = vmatpush.msra.mxu0 %v1366
        %2201 = vmatpush.msra.mxu0 %v1361
        %2202 = vmatpush.msra.mxu0 %v1356
        %2203 = vmatmul.f32.gmra.mxu0 %v1108
        %v2204 = vpop.f32.mrf.mxu0
        %v2205 = vadd.f32 %v2185, %v2204
        %2206 = vdwg.mxu0
        %2207 = vmatpush.msra.mxu0 %v1511
        %2208 = vmatpush.msra.mxu0 %v1506
        %2209 = vmatpush.msra.mxu0 %v1501
        %2210 = vmatpush.msra.mxu0 %v1496
        %2211 = vmatpush.msra.mxu0 %v1491
        %2212 = vmatpush.msra.mxu0 %v1486
        %2213 = vmatpush.msra.mxu0 %v1481
        %2214 = vmatpush.msra.mxu0 %v1476
        %2215 = vmatpush.msra.mxu0 %v1471
        %2216 = vmatpush.msra.mxu0 %v1466
        %2217 = vmatpush.msra.mxu0 %v1461
        %2218 = vmatpush.msra.mxu0 %v1456
        %2219 = vmatpush.msra.mxu0 %v1451
        %2220 = vmatpush.msra.mxu0 %v1446
        %2221 = vmatpush.msra.mxu0 %v1441
        %2222 = vmatpush.msra.mxu0 %v1436
        %2223 = vmatmul.f32.gmra.mxu0 %v1109
        %v2224 = vpop.f32.mrf.mxu0
        %v2225 = vadd.f32 %v2205, %v2224
        %2226 = vdwg.mxu0
        %2227 = vmatpush.msra.mxu0 %v1591
        %2228 = vmatpush.msra.mxu0 %v1586
        %2229 = vmatpush.msra.mxu0 %v1581
        %2230 = vmatpush.msra.mxu0 %v1576
        %2231 = vmatpush.msra.mxu0 %v1571
        %2232 = vmatpush.msra.mxu0 %v1566
        %2233 = vmatpush.msra.mxu0 %v1561
        %2234 = vmatpush.msra.mxu0 %v1556
        %2235 = vmatpush.msra.mxu0 %v1551
        %2236 = vmatpush.msra.mxu0 %v1546
        %2237 = vmatpush.msra.mxu0 %v1541
        %2238 = vmatpush.msra.mxu0 %v1536
        %2239 = vmatpush.msra.mxu0 %v1531
        %2240 = vmatpush.msra.mxu0 %v1526
        %2241 = vmatpush.msra.mxu0 %v1521
        %2242 = vmatpush.msra.mxu0 %v1516
        %2243 = vmatmul.f32.gmra.mxu0 %v1110
        %v2244 = vpop.f32.mrf.mxu0
        %v2245 = vadd.f32 %v2225, %v2244
        %2246 = vdwg.mxu0
        %2247 = vmatpush.msra.mxu0 %v1671
        %2248 = vmatpush.msra.mxu0 %v1666
        %2249 = vmatpush.msra.mxu0 %v1661
        %2250 = vmatpush.msra.mxu0 %v1656
        %2251 = vmatpush.msra.mxu0 %v1651
        %2252 = vmatpush.msra.mxu0 %v1646
        %2253 = vmatpush.msra.mxu0 %v1641
        %2254 = vmatpush.msra.mxu0 %v1636
        %2255 = vmatpush.msra.mxu0 %v1631
        %2256 = vmatpush.msra.mxu0 %v1626
        %2257 = vmatpush.msra.mxu0 %v1621
        %2258 = vmatpush.msra.mxu0 %v1616
        %2259 = vmatpush.msra.mxu0 %v1611
        %2260 = vmatpush.msra.mxu0 %v1606
        %2261 = vmatpush.msra.mxu0 %v1601
        %2262 = vmatpush.msra.mxu0 %v1596
        %2263 = vmatmul.f32.gmra.mxu0 %v1111
        %v2264 = vpop.f32.mrf.mxu0
        %v2265 = vadd.f32 %v2245, %v2264
        %2266 = vdwg.mxu0
        %2267 = vmatpush.msra.mxu0 %v1751
        %2268 = vmatpush.msra.mxu0 %v1746
        %2269 = vmatpush.msra.mxu0 %v1741
        %2270 = vmatpush.msra.mxu0 %v1736
        %2271 = vmatpush.msra.mxu0 %v1731
        %2272 = vmatpush.msra.mxu0 %v1726
        %2273 = vmatpush.msra.mxu0 %v1721
        %2274 = vmatpush.msra.mxu0 %v1716
        %2275 = vmatpush.msra.mxu0 %v1711
        %2276 = vmatpush.msra.mxu0 %v1706
        %2277 = vmatpush.msra.mxu0 %v1701
        %2278 = vmatpush.msra.mxu0 %v1696
        %2279 = vmatpush.msra.mxu0 %v1691
        %2280 = vmatpush.msra.mxu0 %v1686
        %2281 = vmatpush.msra.mxu0 %v1681
        %2282 = vmatpush.msra.mxu0 %v1676
        %2283 = vmatmul.f32.gmra.mxu0 %v1112
        %v2284 = vpop.f32.mrf.mxu0
        %v2285 = vadd.f32 %v2265, %v2284
        %2286 = vdwg.mxu0
        %2287 = vmatpush.msra.mxu0 %v1831
        %2288 = vmatpush.msra.mxu0 %v1826
        %2289 = vmatpush.msra.mxu0 %v1821
        %2290 = vmatpush.msra.mxu0 %v1816
        %2291 = vmatpush.msra.mxu0 %v1811
        %2292 = vmatpush.msra.mxu0 %v1806
        %2293 = vmatpush.msra.mxu0 %v1801
        %2294 = vmatpush.msra.mxu0 %v1796
        %2295 = vmatpush.msra.mxu0 %v1791
        %2296 = vmatpush.msra.mxu0 %v1786
        %2297 = vmatpush.msra.mxu0 %v1781
        %2298 = vmatpush.msra.mxu0 %v1776
        %2299 = vmatpush.msra.mxu0 %v1771
        %2300 = vmatpush.msra.mxu0 %v1766
        %2301 = vmatpush.msra.mxu0 %v1761
        %2302 = vmatpush.msra.mxu0 %v1756
        %2303 = vmatmul.f32.gmra.mxu0 %v1113
        %v2304 = vpop.f32.mrf.mxu0
        %v2305 = vadd.f32 %v2285, %v2304
        %2306 = vdwg.mxu0
        %2307 = vmatpush.msra.mxu0 %v1911
        %2308 = vmatpush.msra.mxu0 %v1906
        %2309 = vmatpush.msra.mxu0 %v1901
        %2310 = vmatpush.msra.mxu0 %v1896
        %2311 = vmatpush.msra.mxu0 %v1891
        %2312 = vmatpush.msra.mxu0 %v1886
        %2313 = vmatpush.msra.mxu0 %v1881
        %2314 = vmatpush.msra.mxu0 %v1876
        %2315 = vmatpush.msra.mxu0 %v1871
        %2316 = vmatpush.msra.mxu0 %v1866
        %2317 = vmatpush.msra.mxu0 %v1861
        %2318 = vmatpush.msra.mxu0 %v1856
        %2319 = vmatpush.msra.mxu0 %v1851
        %2320 = vmatpush.msra.mxu0 %v1846
        %2321 = vmatpush.msra.mxu0 %v1841
        %2322 = vmatpush.msra.mxu0 %v1836
        %2323 = vmatmul.f32.gmra.mxu0 %v1114
        %v2324 = vpop.f32.mrf.mxu0
        %v2325 = vadd.f32 %v2305, %v2324
        %2326 = vdwg.mxu0
        %2327 = vmatpush.msra.mxu0 %v1192
        %2328 = vmatpush.msra.mxu0 %v1187
        %2329 = vmatpush.msra.mxu0 %v1182
        %2330 = vmatpush.msra.mxu0 %v1177
        %2331 = vmatpush.msra.mxu0 %v1172
        %2332 = vmatpush.msra.mxu0 %v1167
        %2333 = vmatpush.msra.mxu0 %v1162
        %2334 = vmatpush.msra.mxu0 %v1157
        %2335 = vmatpush.msra.mxu0 %v1152
        %2336 = vmatpush.msra.mxu0 %v1147
        %2337 = vmatpush.msra.mxu0 %v1142
        %2338 = vmatpush.msra.mxu0 %v1137
        %2339 = vmatpush.msra.mxu0 %v1132
        %2340 = vmatpush.msra.mxu0 %v1127
        %2341 = vmatpush.msra.mxu0 %v1122
        %2342 = vmatpush.msra.mxu0 %v1117
        %2343 = vmatmul.f32.gmra.mxu0 %v1105
        %v2344 = vpop.f32.mrf.mxu0
        %v2345 = vadd.f32 %v1919, %v2344
        %2346 = vdwg.mxu0
        %2347 = vmatpush.msra.mxu0 %v1272
        %2348 = vmatpush.msra.mxu0 %v1267
        %2349 = vmatpush.msra.mxu0 %v1262
        %2350 = vmatpush.msra.mxu0 %v1257
        %2351 = vmatpush.msra.mxu0 %v1252
        %2352 = vmatpush.msra.mxu0 %v1247
        %2353 = vmatpush.msra.mxu0 %v1242
        %2354 = vmatpush.msra.mxu0 %v1237
        %2355 = vmatpush.msra.mxu0 %v1232
        %2356 = vmatpush.msra.mxu0 %v1227
        %2357 = vmatpush.msra.mxu0 %v1222
        %2358 = vmatpush.msra.mxu0 %v1217
        %2359 = vmatpush.msra.mxu0 %v1212
        %2360 = vmatpush.msra.mxu0 %v1207
        %2361 = vmatpush.msra.mxu0 %v1202
        %2362 = vmatpush.msra.mxu0 %v1197
        %2363 = vmatmul.f32.gmra.mxu0 %v1106
        %v2364 = vpop.f32.mrf.mxu0
        %v2365 = vadd.f32 %v2345, %v2364
        %2366 = vdwg.mxu0
        %2367 = vmatpush.msra.mxu0 %v1352
        %2368 = vmatpush.msra.mxu0 %v1347
        %2369 = vmatpush.msra.mxu0 %v1342
        %2370 = vmatpush.msra.mxu0 %v1337
        %2371 = vmatpush.msra.mxu0 %v1332
        %2372 = vmatpush.msra.mxu0 %v1327
        %2373 = vmatpush.msra.mxu0 %v1322
        %2374 = vmatpush.msra.mxu0 %v1317
        %2375 = vmatpush.msra.mxu0 %v1312
        %2376 = vmatpush.msra.mxu0 %v1307
        %2377 = vmatpush.msra.mxu0 %v1302
        %2378 = vmatpush.msra.mxu0 %v1297
        %2379 = vmatpush.msra.mxu0 %v1292
        %2380 = vmatpush.msra.mxu0 %v1287
        %2381 = vmatpush.msra.mxu0 %v1282
        %2382 = vmatpush.msra.mxu0 %v1277
        %2383 = vmatmul.f32.gmra.mxu0 %v1107
        %v2384 = vpop.f32.mrf.mxu0
        %v2385 = vadd.f32 %v2365, %v2384
        %2386 = vdwg.mxu0
        %2387 = vmatpush.msra.mxu0 %v1432
        %2388 = vmatpush.msra.mxu0 %v1427
        %2389 = vmatpush.msra.mxu0 %v1422
        %2390 = vmatpush.msra.mxu0 %v1417
        %2391 = vmatpush.msra.mxu0 %v1412
        %2392 = vmatpush.msra.mxu0 %v1407
        %2393 = vmatpush.msra.mxu0 %v1402
        %2394 = vmatpush.msra.mxu0 %v1397
        %2395 = vmatpush.msra.mxu0 %v1392
        %2396 = vmatpush.msra.mxu0 %v1387
        %2397 = vmatpush.msra.mxu0 %v1382
        %2398 = vmatpush.msra.mxu0 %v1377
        %2399 = vmatpush.msra.mxu0 %v1372
        %2400 = vmatpush.msra.mxu0 %v1367
        %2401 = vmatpush.msra.mxu0 %v1362
        %2402 = vmatpush.msra.mxu0 %v1357
        %2403 = vmatmul.f32.gmra.mxu0 %v1108
        %v2404 = vpop.f32.mrf.mxu0
        %v2405 = vadd.f32 %v2385, %v2404
        %2406 = vdwg.mxu0
        %2407 = vmatpush.msra.mxu0 %v1512
        %2408 = vmatpush.msra.mxu0 %v1507
        %2409 = vmatpush.msra.mxu0 %v1502
        %2410 = vmatpush.msra.mxu0 %v1497
        %2411 = vmatpush.msra.mxu0 %v1492
        %2412 = vmatpush.msra.mxu0 %v1487
        %2413 = vmatpush.msra.mxu0 %v1482
        %2414 = vmatpush.msra.mxu0 %v1477
        %2415 = vmatpush.msra.mxu0 %v1472
        %2416 = vmatpush.msra.mxu0 %v1467
        %2417 = vmatpush.msra.mxu0 %v1462
        %2418 = vmatpush.msra.mxu0 %v1457
        %2419 = vmatpush.msra.mxu0 %v1452
        %2420 = vmatpush.msra.mxu0 %v1447
        %2421 = vmatpush.msra.mxu0 %v1442
        %2422 = vmatpush.msra.mxu0 %v1437
        %2423 = vmatmul.f32.gmra.mxu0 %v1109
        %v2424 = vpop.f32.mrf.mxu0
        %v2425 = vadd.f32 %v2405, %v2424
        %2426 = vdwg.mxu0
        %2427 = vmatpush.msra.mxu0 %v1592
        %2428 = vmatpush.msra.mxu0 %v1587
        %2429 = vmatpush.msra.mxu0 %v1582
        %2430 = vmatpush.msra.mxu0 %v1577
        %2431 = vmatpush.msra.mxu0 %v1572
        %2432 = vmatpush.msra.mxu0 %v1567
        %2433 = vmatpush.msra.mxu0 %v1562
        %2434 = vmatpush.msra.mxu0 %v1557
        %2435 = vmatpush.msra.mxu0 %v1552
        %2436 = vmatpush.msra.mxu0 %v1547
        %2437 = vmatpush.msra.mxu0 %v1542
        %2438 = vmatpush.msra.mxu0 %v1537
        %2439 = vmatpush.msra.mxu0 %v1532
        %2440 = vmatpush.msra.mxu0 %v1527
        %2441 = vmatpush.msra.mxu0 %v1522
        %2442 = vmatpush.msra.mxu0 %v1517
        %2443 = vmatmul.f32.gmra.mxu0 %v1110
        %v2444 = vpop.f32.mrf.mxu0
        %v2445 = vadd.f32 %v2425, %v2444
        %2446 = vdwg.mxu0
        %2447 = vmatpush.msra.mxu0 %v1672
        %2448 = vmatpush.msra.mxu0 %v1667
        %2449 = vmatpush.msra.mxu0 %v1662
        %2450 = vmatpush.msra.mxu0 %v1657
        %2451 = vmatpush.msra.mxu0 %v1652
        %2452 = vmatpush.msra.mxu0 %v1647
        %2453 = vmatpush.msra.mxu0 %v1642
        %2454 = vmatpush.msra.mxu0 %v1637
        %2455 = vmatpush.msra.mxu0 %v1632
        %2456 = vmatpush.msra.mxu0 %v1627
        %2457 = vmatpush.msra.mxu0 %v1622
        %2458 = vmatpush.msra.mxu0 %v1617
        %2459 = vmatpush.msra.mxu0 %v1612
        %2460 = vmatpush.msra.mxu0 %v1607
        %2461 = vmatpush.msra.mxu0 %v1602
        %2462 = vmatpush.msra.mxu0 %v1597
        %2463 = vmatmul.f32.gmra.mxu0 %v1111
        %v2464 = vpop.f32.mrf.mxu0
        %v2465 = vadd.f32 %v2445, %v2464
        %2466 = vdwg.mxu0
        %2467 = vmatpush.msra.mxu0 %v1752
        %2468 = vmatpush.msra.mxu0 %v1747
        %2469 = vmatpush.msra.mxu0 %v1742
        %2470 = vmatpush.msra.mxu0 %v1737
        %2471 = vmatpush.msra.mxu0 %v1732
        %2472 = vmatpush.msra.mxu0 %v1727
        %2473 = vmatpush.msra.mxu0 %v1722
        %2474 = vmatpush.msra.mxu0 %v1717
        %2475 = vmatpush.msra.mxu0 %v1712
        %2476 = vmatpush.msra.mxu0 %v1707
        %2477 = vmatpush.msra.mxu0 %v1702
        %2478 = vmatpush.msra.mxu0 %v1697
        %2479 = vmatpush.msra.mxu0 %v1692
        %2480 = vmatpush.msra.mxu0 %v1687
        %2481 = vmatpush.msra.mxu0 %v1682
        %2482 = vmatpush.msra.mxu0 %v1677
        %2483 = vmatmul.f32.gmra.mxu0 %v1112
        %v2484 = vpop.f32.mrf.mxu0
        %v2485 = vadd.f32 %v2465, %v2484
        %2486 = vdwg.mxu0
        %2487 = vmatpush.msra.mxu0 %v1832
        %2488 = vmatpush.msra.mxu0 %v1827
        %2489 = vmatpush.msra.mxu0 %v1822
        %2490 = vmatpush.msra.mxu0 %v1817
        %2491 = vmatpush.msra.mxu0 %v1812
        %2492 = vmatpush.msra.mxu0 %v1807
        %2493 = vmatpush.msra.mxu0 %v1802
        %2494 = vmatpush.msra.mxu0 %v1797
        %2495 = vmatpush.msra.mxu0 %v1792
        %2496 = vmatpush.msra.mxu0 %v1787
        %2497 = vmatpush.msra.mxu0 %v1782
        %2498 = vmatpush.msra.mxu0 %v1777
        %2499 = vmatpush.msra.mxu0 %v1772
        %2500 = vmatpush.msra.mxu0 %v1767
        %2501 = vmatpush.msra.mxu0 %v1762
        %2502 = vmatpush.msra.mxu0 %v1757
        %2503 = vmatmul.f32.gmra.mxu0 %v1113
        %v2504 = vpop.f32.mrf.mxu0
        %v2505 = vadd.f32 %v2485, %v2504
        %2506 = vdwg.mxu0
        %2507 = vmatpush.msra.mxu0 %v1912
        %2508 = vmatpush.msra.mxu0 %v1907
        %2509 = vmatpush.msra.mxu0 %v1902
        %2510 = vmatpush.msra.mxu0 %v1897
        %2511 = vmatpush.msra.mxu0 %v1892
        %2512 = vmatpush.msra.mxu0 %v1887
        %2513 = vmatpush.msra.mxu0 %v1882
        %2514 = vmatpush.msra.mxu0 %v1877
        %2515 = vmatpush.msra.mxu0 %v1872
        %2516 = vmatpush.msra.mxu0 %v1867
        %2517 = vmatpush.msra.mxu0 %v1862
        %2518 = vmatpush.msra.mxu0 %v1857
        %2519 = vmatpush.msra.mxu0 %v1852
        %2520 = vmatpush.msra.mxu0 %v1847
        %2521 = vmatpush.msra.mxu0 %v1842
        %2522 = vmatpush.msra.mxu0 %v1837
        %2523 = vmatmul.f32.gmra.mxu0 %v1114
        %v2524 = vpop.f32.mrf.mxu0
        %v2525 = vadd.f32 %v2505, %v2524
        %2526 = vdwg.mxu0
        %2527 = vmatpush.msra.mxu0 %v1193
        %2528 = vmatpush.msra.mxu0 %v1188
        %2529 = vmatpush.msra.mxu0 %v1183
        %2530 = vmatpush.msra.mxu0 %v1178
        %2531 = vmatpush.msra.mxu0 %v1173
        %2532 = vmatpush.msra.mxu0 %v1168
        %2533 = vmatpush.msra.mxu0 %v1163
        %2534 = vmatpush.msra.mxu0 %v1158
        %2535 = vmatpush.msra.mxu0 %v1153
        %2536 = vmatpush.msra.mxu0 %v1148
        %2537 = vmatpush.msra.mxu0 %v1143
        %2538 = vmatpush.msra.mxu0 %v1138
        %2539 = vmatpush.msra.mxu0 %v1133
        %2540 = vmatpush.msra.mxu0 %v1128
        %2541 = vmatpush.msra.mxu0 %v1123
        %2542 = vmatpush.msra.mxu0 %v1118
        %2543 = vmatmul.f32.gmra.mxu0 %v1105
        %v2544 = vpop.f32.mrf.mxu0
        %v2545 = vadd.f32 %v1920, %v2544
        %2546 = vdwg.mxu0
        %2547 = vmatpush.msra.mxu0 %v1273
        %2548 = vmatpush.msra.mxu0 %v1268
        %2549 = vmatpush.msra.mxu0 %v1263
        %2550 = vmatpush.msra.mxu0 %v1258
        %2551 = vmatpush.msra.mxu0 %v1253
        %2552 = vmatpush.msra.mxu0 %v1248
        %2553 = vmatpush.msra.mxu0 %v1243
        %2554 = vmatpush.msra.mxu0 %v1238
        %2555 = vmatpush.msra.mxu0 %v1233
        %2556 = vmatpush.msra.mxu0 %v1228
        %2557 = vmatpush.msra.mxu0 %v1223
        %2558 = vmatpush.msra.mxu0 %v1218
        %2559 = vmatpush.msra.mxu0 %v1213
        %2560 = vmatpush.msra.mxu0 %v1208
        %2561 = vmatpush.msra.mxu0 %v1203
        %2562 = vmatpush.msra.mxu0 %v1198
        %2563 = vmatmul.f32.gmra.mxu0 %v1106
        %v2564 = vpop.f32.mrf.mxu0
        %v2565 = vadd.f32 %v2545, %v2564
        %2566 = vdwg.mxu0
        %2567 = vmatpush.msra.mxu0 %v1353
        %2568 = vmatpush.msra.mxu0 %v1348
        %2569 = vmatpush.msra.mxu0 %v1343
        %2570 = vmatpush.msra.mxu0 %v1338
        %2571 = vmatpush.msra.mxu0 %v1333
        %2572 = vmatpush.msra.mxu0 %v1328
        %2573 = vmatpush.msra.mxu0 %v1323
        %2574 = vmatpush.msra.mxu0 %v1318
        %2575 = vmatpush.msra.mxu0 %v1313
        %2576 = vmatpush.msra.mxu0 %v1308
        %2577 = vmatpush.msra.mxu0 %v1303
        %2578 = vmatpush.msra.mxu0 %v1298
        %2579 = vmatpush.msra.mxu0 %v1293
        %2580 = vmatpush.msra.mxu0 %v1288
        %2581 = vmatpush.msra.mxu0 %v1283
        %2582 = vmatpush.msra.mxu0 %v1278
        %2583 = vmatmul.f32.gmra.mxu0 %v1107
        %v2584 = vpop.f32.mrf.mxu0
        %v2585 = vadd.f32 %v2565, %v2584
        %2586 = vdwg.mxu0
        %2587 = vmatpush.msra.mxu0 %v1433
        %2588 = vmatpush.msra.mxu0 %v1428
        %2589 = vmatpush.msra.mxu0 %v1423
        %2590 = vmatpush.msra.mxu0 %v1418
        %2591 = vmatpush.msra.mxu0 %v1413
        %2592 = vmatpush.msra.mxu0 %v1408
        %2593 = vmatpush.msra.mxu0 %v1403
        %2594 = vmatpush.msra.mxu0 %v1398
        %2595 = vmatpush.msra.mxu0 %v1393
        %2596 = vmatpush.msra.mxu0 %v1388
        %2597 = vmatpush.msra.mxu0 %v1383
        %2598 = vmatpush.msra.mxu0 %v1378
        %2599 = vmatpush.msra.mxu0 %v1373
        %2600 = vmatpush.msra.mxu0 %v1368
        %2601 = vmatpush.msra.mxu0 %v1363
        %2602 = vmatpush.msra.mxu0 %v1358
        %2603 = vmatmul.f32.gmra.mxu0 %v1108
        %v2604 = vpop.f32.mrf.mxu0
        %v2605 = vadd.f32 %v2585, %v2604
        %2606 = vdwg.mxu0
        %2607 = vmatpush.msra.mxu0 %v1513
        %2608 = vmatpush.msra.mxu0 %v1508
        %2609 = vmatpush.msra.mxu0 %v1503
        %2610 = vmatpush.msra.mxu0 %v1498
        %2611 = vmatpush.msra.mxu0 %v1493
        %2612 = vmatpush.msra.mxu0 %v1488
        %2613 = vmatpush.msra.mxu0 %v1483
        %2614 = vmatpush.msra.mxu0 %v1478
        %2615 = vmatpush.msra.mxu0 %v1473
        %2616 = vmatpush.msra.mxu0 %v1468
        %2617 = vmatpush.msra.mxu0 %v1463
        %2618 = vmatpush.msra.mxu0 %v1458
        %2619 = vmatpush.msra.mxu0 %v1453
        %2620 = vmatpush.msra.mxu0 %v1448
        %2621 = vmatpush.msra.mxu0 %v1443
        %2622 = vmatpush.msra.mxu0 %v1438
        %2623 = vmatmul.f32.gmra.mxu0 %v1109
        %v2624 = vpop.f32.mrf.mxu0
        %v2625 = vadd.f32 %v2605, %v2624
        %2626 = vdwg.mxu0
        %2627 = vmatpush.msra.mxu0 %v1593
        %2628 = vmatpush.msra.mxu0 %v1588
        %2629 = vmatpush.msra.mxu0 %v1583
        %2630 = vmatpush.msra.mxu0 %v1578
        %2631 = vmatpush.msra.mxu0 %v1573
        %2632 = vmatpush.msra.mxu0 %v1568
        %2633 = vmatpush.msra.mxu0 %v1563
        %2634 = vmatpush.msra.mxu0 %v1558
        %2635 = vmatpush.msra.mxu0 %v1553
        %2636 = vmatpush.msra.mxu0 %v1548
        %2637 = vmatpush.msra.mxu0 %v1543
        %2638 = vmatpush.msra.mxu0 %v1538
        %2639 = vmatpush.msra.mxu0 %v1533
        %2640 = vmatpush.msra.mxu0 %v1528
        %2641 = vmatpush.msra.mxu0 %v1523
        %2642 = vmatpush.msra.mxu0 %v1518
        %2643 = vmatmul.f32.gmra.mxu0 %v1110
        %v2644 = vpop.f32.mrf.mxu0
        %v2645 = vadd.f32 %v2625, %v2644
        %2646 = vdwg.mxu0
        %2647 = vmatpush.msra.mxu0 %v1673
        %2648 = vmatpush.msra.mxu0 %v1668
        %2649 = vmatpush.msra.mxu0 %v1663
        %2650 = vmatpush.msra.mxu0 %v1658
        %2651 = vmatpush.msra.mxu0 %v1653
        %2652 = vmatpush.msra.mxu0 %v1648
        %2653 = vmatpush.msra.mxu0 %v1643
        %2654 = vmatpush.msra.mxu0 %v1638
        %2655 = vmatpush.msra.mxu0 %v1633
        %2656 = vmatpush.msra.mxu0 %v1628
        %2657 = vmatpush.msra.mxu0 %v1623
        %2658 = vmatpush.msra.mxu0 %v1618
        %2659 = vmatpush.msra.mxu0 %v1613
        %2660 = vmatpush.msra.mxu0 %v1608
        %2661 = vmatpush.msra.mxu0 %v1603
        %2662 = vmatpush.msra.mxu0 %v1598
        %2663 = vmatmul.f32.gmra.mxu0 %v1111
        %v2664 = vpop.f32.mrf.mxu0
        %v2665 = vadd.f32 %v2645, %v2664
        %2666 = vdwg.mxu0
        %2667 = vmatpush.msra.mxu0 %v1753
        %2668 = vmatpush.msra.mxu0 %v1748
        %2669 = vmatpush.msra.mxu0 %v1743
        %2670 = vmatpush.msra.mxu0 %v1738
        %2671 = vmatpush.msra.mxu0 %v1733
        %2672 = vmatpush.msra.mxu0 %v1728
        %2673 = vmatpush.msra.mxu0 %v1723
        %2674 = vmatpush.msra.mxu0 %v1718
        %2675 = vmatpush.msra.mxu0 %v1713
        %2676 = vmatpush.msra.mxu0 %v1708
        %2677 = vmatpush.msra.mxu0 %v1703
        %2678 = vmatpush.msra.mxu0 %v1698
        %2679 = vmatpush.msra.mxu0 %v1693
        %2680 = vmatpush.msra.mxu0 %v1688
        %2681 = vmatpush.msra.mxu0 %v1683
        %2682 = vmatpush.msra.mxu0 %v1678
        %2683 = vmatmul.f32.gmra.mxu0 %v1112
        %v2684 = vpop.f32.mrf.mxu0
        %v2685 = vadd.f32 %v2665, %v2684
        %2686 = vdwg.mxu0
        %2687 = vmatpush.msra.mxu0 %v1833
        %2688 = vmatpush.msra.mxu0 %v1828
        %2689 = vmatpush.msra.mxu0 %v1823
        %2690 = vmatpush.msra.mxu0 %v1818
        %2691 = vmatpush.msra.mxu0 %v1813
        %2692 = vmatpush.msra.mxu0 %v1808
        %2693 = vmatpush.msra.mxu0 %v1803
        %2694 = vmatpush.msra.mxu0 %v1798
        %2695 = vmatpush.msra.mxu0 %v1793
        %2696 = vmatpush.msra.mxu0 %v1788
        %2697 = vmatpush.msra.mxu0 %v1783
        %2698 = vmatpush.msra.mxu0 %v1778
        %2699 = vmatpush.msra.mxu0 %v1773
        %2700 = vmatpush.msra.mxu0 %v1768
        %2701 = vmatpush.msra.mxu0 %v1763
        %2702 = vmatpush.msra.mxu0 %v1758
        %2703 = vmatmul.f32.gmra.mxu0 %v1113
        %v2704 = vpop.f32.mrf.mxu0
        %v2705 = vadd.f32 %v2685, %v2704
        %2706 = vdwg.mxu0
        %2707 = vmatpush.msra.mxu0 %v1913
        %2708 = vmatpush.msra.mxu0 %v1908
        %2709 = vmatpush.msra.mxu0 %v1903
        %2710 = vmatpush.msra.mxu0 %v1898
        %2711 = vmatpush.msra.mxu0 %v1893
        %2712 = vmatpush.msra.mxu0 %v1888
        %2713 = vmatpush.msra.mxu0 %v1883
        %2714 = vmatpush.msra.mxu0 %v1878
        %2715 = vmatpush.msra.mxu0 %v1873
        %2716 = vmatpush.msra.mxu0 %v1868
        %2717 = vmatpush.msra.mxu0 %v1863
        %2718 = vmatpush.msra.mxu0 %v1858
        %2719 = vmatpush.msra.mxu0 %v1853
        %2720 = vmatpush.msra.mxu0 %v1848
        %2721 = vmatpush.msra.mxu0 %v1843
        %2722 = vmatpush.msra.mxu0 %v1838
        %2723 = vmatmul.f32.gmra.mxu0 %v1114
        %v2724 = vpop.f32.mrf.mxu0
        %v2725 = vadd.f32 %v2705, %v2724
        %2726 = vdwg.mxu0
        %2727 = vmatpush.msra.mxu0 %v1194
        %2728 = vmatpush.msra.mxu0 %v1189
        %2729 = vmatpush.msra.mxu0 %v1184
        %2730 = vmatpush.msra.mxu0 %v1179
        %2731 = vmatpush.msra.mxu0 %v1174
        %2732 = vmatpush.msra.mxu0 %v1169
        %2733 = vmatpush.msra.mxu0 %v1164
        %2734 = vmatpush.msra.mxu0 %v1159
        %2735 = vmatpush.msra.mxu0 %v1154
        %2736 = vmatpush.msra.mxu0 %v1149
        %2737 = vmatpush.msra.mxu0 %v1144
        %2738 = vmatpush.msra.mxu0 %v1139
        %2739 = vmatpush.msra.mxu0 %v1134
        %2740 = vmatpush.msra.mxu0 %v1129
        %2741 = vmatpush.msra.mxu0 %v1124
        %2742 = vmatpush.msra.mxu0 %v1119
        %2743 = vmatmul.f32.gmra.mxu0 %v1105
        %v2744 = vpop.f32.mrf.mxu0
        %v2745 = vadd.f32 %v1921, %v2744
        %2746 = vdwg.mxu0
        %2747 = vmatpush.msra.mxu0 %v1274
        %2748 = vmatpush.msra.mxu0 %v1269
        %2749 = vmatpush.msra.mxu0 %v1264
        %2750 = vmatpush.msra.mxu0 %v1259
        %2751 = vmatpush.msra.mxu0 %v1254
        %2752 = vmatpush.msra.mxu0 %v1249
        %2753 = vmatpush.msra.mxu0 %v1244
        %2754 = vmatpush.msra.mxu0 %v1239
        %2755 = vmatpush.msra.mxu0 %v1234
        %2756 = vmatpush.msra.mxu0 %v1229
        %2757 = vmatpush.msra.mxu0 %v1224
        %2758 = vmatpush.msra.mxu0 %v1219
        %2759 = vmatpush.msra.mxu0 %v1214
        %2760 = vmatpush.msra.mxu0 %v1209
        %2761 = vmatpush.msra.mxu0 %v1204
        %2762 = vmatpush.msra.mxu0 %v1199
        %2763 = vmatmul.f32.gmra.mxu0 %v1106
        %v2764 = vpop.f32.mrf.mxu0
        %v2765 = vadd.f32 %v2745, %v2764
        %2766 = vdwg.mxu0
        %2767 = vmatpush.msra.mxu0 %v1354
        %2768 = vmatpush.msra.mxu0 %v1349
        %2769 = vmatpush.msra.mxu0 %v1344
        %2770 = vmatpush.msra.mxu0 %v1339
        %2771 = vmatpush.msra.mxu0 %v1334
        %2772 = vmatpush.msra.mxu0 %v1329
        %2773 = vmatpush.msra.mxu0 %v1324
        %2774 = vmatpush.msra.mxu0 %v1319
        %2775 = vmatpush.msra.mxu0 %v1314
        %2776 = vmatpush.msra.mxu0 %v1309
        %2777 = vmatpush.msra.mxu0 %v1304
        %2778 = vmatpush.msra.mxu0 %v1299
        %2779 = vmatpush.msra.mxu0 %v1294
        %2780 = vmatpush.msra.mxu0 %v1289
        %2781 = vmatpush.msra.mxu0 %v1284
        %2782 = vmatpush.msra.mxu0 %v1279
        %2783 = vmatmul.f32.gmra.mxu0 %v1107
        %v2784 = vpop.f32.mrf.mxu0
        %v2785 = vadd.f32 %v2765, %v2784
        %2786 = vdwg.mxu0
        %2787 = vmatpush.msra.mxu0 %v1434
        %2788 = vmatpush.msra.mxu0 %v1429
        %2789 = vmatpush.msra.mxu0 %v1424
        %2790 = vmatpush.msra.mxu0 %v1419
        %2791 = vmatpush.msra.mxu0 %v1414
        %2792 = vmatpush.msra.mxu0 %v1409
        %2793 = vmatpush.msra.mxu0 %v1404
        %2794 = vmatpush.msra.mxu0 %v1399
        %2795 = vmatpush.msra.mxu0 %v1394
        %2796 = vmatpush.msra.mxu0 %v1389
        %2797 = vmatpush.msra.mxu0 %v1384
        %2798 = vmatpush.msra.mxu0 %v1379
        %2799 = vmatpush.msra.mxu0 %v1374
        %2800 = vmatpush.msra.mxu0 %v1369
        %2801 = vmatpush.msra.mxu0 %v1364
        %2802 = vmatpush.msra.mxu0 %v1359
        %2803 = vmatmul.f32.gmra.mxu0 %v1108
        %v2804 = vpop.f32.mrf.mxu0
        %v2805 = vadd.f32 %v2785, %v2804
        %2806 = vdwg.mxu0
        %2807 = vmatpush.msra.mxu0 %v1514
        %2808 = vmatpush.msra.mxu0 %v1509
        %2809 = vmatpush.msra.mxu0 %v1504
        %2810 = vmatpush.msra.mxu0 %v1499
        %2811 = vmatpush.msra.mxu0 %v1494
        %2812 = vmatpush.msra.mxu0 %v1489
        %2813 = vmatpush.msra.mxu0 %v1484
        %2814 = vmatpush.msra.mxu0 %v1479
        %2815 = vmatpush.msra.mxu0 %v1474
        %2816 = vmatpush.msra.mxu0 %v1469
        %2817 = vmatpush.msra.mxu0 %v1464
        %2818 = vmatpush.msra.mxu0 %v1459
        %2819 = vmatpush.msra.mxu0 %v1454
        %2820 = vmatpush.msra.mxu0 %v1449
        %2821 = vmatpush.msra.mxu0 %v1444
        %2822 = vmatpush.msra.mxu0 %v1439
        %2823 = vmatmul.f32.gmra.mxu0 %v1109
        %v2824 = vpop.f32.mrf.mxu0
        %v2825 = vadd.f32 %v2805, %v2824
        %2826 = vdwg.mxu0
        %2827 = vmatpush.msra.mxu0 %v1594
        %2828 = vmatpush.msra.mxu0 %v1589
        %2829 = vmatpush.msra.mxu0 %v1584
        %2830 = vmatpush.msra.mxu0 %v1579
        %2831 = vmatpush.msra.mxu0 %v1574
        %2832 = vmatpush.msra.mxu0 %v1569
        %2833 = vmatpush.msra.mxu0 %v1564
        %2834 = vmatpush.msra.mxu0 %v1559
        %2835 = vmatpush.msra.mxu0 %v1554
        %2836 = vmatpush.msra.mxu0 %v1549
        %2837 = vmatpush.msra.mxu0 %v1544
        %2838 = vmatpush.msra.mxu0 %v1539
        %2839 = vmatpush.msra.mxu0 %v1534
        %2840 = vmatpush.msra.mxu0 %v1529
        %2841 = vmatpush.msra.mxu0 %v1524
        %2842 = vmatpush.msra.mxu0 %v1519
        %2843 = vmatmul.f32.gmra.mxu0 %v1110
        %v2844 = vpop.f32.mrf.mxu0
        %v2845 = vadd.f32 %v2825, %v2844
        %2846 = vdwg.mxu0
        %2847 = vmatpush.msra.mxu0 %v1674
        %2848 = vmatpush.msra.mxu0 %v1669
        %2849 = vmatpush.msra.mxu0 %v1664
        %2850 = vmatpush.msra.mxu0 %v1659
        %2851 = vmatpush.msra.mxu0 %v1654
        %2852 = vmatpush.msra.mxu0 %v1649
        %2853 = vmatpush.msra.mxu0 %v1644
        %2854 = vmatpush.msra.mxu0 %v1639
        %2855 = vmatpush.msra.mxu0 %v1634
        %2856 = vmatpush.msra.mxu0 %v1629
        %2857 = vmatpush.msra.mxu0 %v1624
        %2858 = vmatpush.msra.mxu0 %v1619
        %2859 = vmatpush.msra.mxu0 %v1614
        %2860 = vmatpush.msra.mxu0 %v1609
        %2861 = vmatpush.msra.mxu0 %v1604
        %2862 = vmatpush.msra.mxu0 %v1599
        %2863 = vmatmul.f32.gmra.mxu0 %v1111
        %v2864 = vpop.f32.mrf.mxu0
        %v2865 = vadd.f32 %v2845, %v2864
        %2866 = vdwg.mxu0
        %2867 = vmatpush.msra.mxu0 %v1754
        %2868 = vmatpush.msra.mxu0 %v1749
        %2869 = vmatpush.msra.mxu0 %v1744
        %2870 = vmatpush.msra.mxu0 %v1739
        %2871 = vmatpush.msra.mxu0 %v1734
        %2872 = vmatpush.msra.mxu0 %v1729
        %2873 = vmatpush.msra.mxu0 %v1724
        %2874 = vmatpush.msra.mxu0 %v1719
        %2875 = vmatpush.msra.mxu0 %v1714
        %2876 = vmatpush.msra.mxu0 %v1709
        %2877 = vmatpush.msra.mxu0 %v1704
        %2878 = vmatpush.msra.mxu0 %v1699
        %2879 = vmatpush.msra.mxu0 %v1694
        %2880 = vmatpush.msra.mxu0 %v1689
        %2881 = vmatpush.msra.mxu0 %v1684
        %2882 = vmatpush.msra.mxu0 %v1679
        %2883 = vmatmul.f32.gmra.mxu0 %v1112
        %v2884 = vpop.f32.mrf.mxu0
        %v2885 = vadd.f32 %v2865, %v2884
        %2886 = vdwg.mxu0
        %2887 = vmatpush.msra.mxu0 %v1834
        %2888 = vmatpush.msra.mxu0 %v1829
        %2889 = vmatpush.msra.mxu0 %v1824
        %2890 = vmatpush.msra.mxu0 %v1819
        %2891 = vmatpush.msra.mxu0 %v1814
        %2892 = vmatpush.msra.mxu0 %v1809
        %2893 = vmatpush.msra.mxu0 %v1804
        %2894 = vmatpush.msra.mxu0 %v1799
        %2895 = vmatpush.msra.mxu0 %v1794
        %2896 = vmatpush.msra.mxu0 %v1789
        %2897 = vmatpush.msra.mxu0 %v1784
        %2898 = vmatpush.msra.mxu0 %v1779
        %2899 = vmatpush.msra.mxu0 %v1774
        %2900 = vmatpush.msra.mxu0 %v1769
        %2901 = vmatpush.msra.mxu0 %v1764
        %2902 = vmatpush.msra.mxu0 %v1759
        %2903 = vmatmul.f32.gmra.mxu0 %v1113
        %v2904 = vpop.f32.mrf.mxu0
        %v2905 = vadd.f32 %v2885, %v2904
        %2906 = vdwg.mxu0
        %2907 = vmatpush.msra.mxu0 %v1914
        %2908 = vmatpush.msra.mxu0 %v1909
        %2909 = vmatpush.msra.mxu0 %v1904
        %2910 = vmatpush.msra.mxu0 %v1899
        %2911 = vmatpush.msra.mxu0 %v1894
        %2912 = vmatpush.msra.mxu0 %v1889
        %2913 = vmatpush.msra.mxu0 %v1884
        %2914 = vmatpush.msra.mxu0 %v1879
        %2915 = vmatpush.msra.mxu0 %v1874
        %2916 = vmatpush.msra.mxu0 %v1869
        %2917 = vmatpush.msra.mxu0 %v1864
        %2918 = vmatpush.msra.mxu0 %v1859
        %2919 = vmatpush.msra.mxu0 %v1854
        %2920 = vmatpush.msra.mxu0 %v1849
        %2921 = vmatpush.msra.mxu0 %v1844
        %2922 = vmatpush.msra.mxu0 %v1839
        %2923 = vmatmul.f32.gmra.mxu0 %v1114
        %v2924 = vpop.f32.mrf.mxu0
        %v2925 = vadd.f32 %v2905, %v2924
        %2926 = vdwg.mxu0
        %v2927 = vmax.f32 %v2125, 0.0
        %v2928 = vmax.f32 %v2325, 0.0
        %v2929 = vmax.f32 %v2525, 0.0
        %v2930 = vmax.f32 %v2725, 0.0
        %v2931 = vmax.f32 %v2925, 0.0
        %v2932 = vld [vmem:[#allocation11] sm:$0xff]
        %v2933 = vld [vmem:[#allocation11 + $0x8] sm:$0xff]
        %v2934 = vld [vmem:[#allocation11 + $0x10] sm:$0xff]
        %v2935 = vld [vmem:[#allocation11 + $0x18] sm:$0xff]
        %v2936 = vld [vmem:[#allocation11 + $0x20] sm:$0xff]
        %v2937 = vld [vmem:[#allocation11 + $0x28] sm:$0xff]
        %v2938 = vld [vmem:[#allocation11 + $0x30] sm:$0xff]
        %v2939 = vld [vmem:[#allocation11 + $0x38] sm:$0xff]
        %v2940 = vld [vmem:[#allocation11 + $0x40] sm:$0xff]
        %v2941 = vld [vmem:[#allocation11 + $0x48] sm:$0xff]
        %v2942 = vld [vmem:[#allocation11 + $0x50] sm:$0xff]
        %v2943 = vld [vmem:[#allocation11 + $0x58] sm:$0xff]
        %v2944 = vld [vmem:[#allocation11 + $0x60] sm:$0xff]
        %v2945 = vld [vmem:[#allocation11 + $0x68] sm:$0xff]
        %v2946 = vld [vmem:[#allocation11 + $0x70] sm:$0xff]
        %v2947 = vld [vmem:[#allocation11 + $0x78] sm:$0xff]
        %v2948 = vld [vmem:[#allocation11 + $0x80] sm:$0xff]
        %v2949 = vld [vmem:[#allocation11 + $0x88] sm:$0xff]
        %v2950 = vld [vmem:[#allocation11 + $0x90] sm:$0xff]
        %v2951 = vld [vmem:[#allocation11 + $0x98] sm:$0xff]
        %v2952 = vld [vmem:[#allocation11 + $0xa0] sm:$0xff]
        %v2953 = vld [vmem:[#allocation11 + $0xa8] sm:$0xff]
        %v2954 = vld [vmem:[#allocation11 + $0xb0] sm:$0xff]
        %v2955 = vld [vmem:[#allocation11 + $0xb8] sm:$0xff]
        %v2956 = vld [vmem:[#allocation11 + $0xc0] sm:$0xff]
        %v2957 = vld [vmem:[#allocation11 + $0xc8] sm:$0xff]
        %v2958 = vld [vmem:[#allocation11 + $0xd0] sm:$0xff]
        %v2959 = vld [vmem:[#allocation11 + $0xd8] sm:$0xff]
        %v2960 = vld [vmem:[#allocation11 + $0xe0] sm:$0xff]
        %v2961 = vld [vmem:[#allocation11 + $0xe8] sm:$0xff]
        %v2962 = vld [vmem:[#allocation11 + $0xf0] sm:$0xff]
        %v2963 = vld [vmem:[#allocation11 + $0xf8] sm:$0xff]
        %v2964 = vld [vmem:[#allocation11 + $0x100] sm:$0xff]
        %v2965 = vld [vmem:[#allocation11 + $0x108] sm:$0xff]
        %v2966 = vld [vmem:[#allocation11 + $0x110] sm:$0xff]
        %v2967 = vld [vmem:[#allocation11 + $0x118] sm:$0xff]
        %v2968 = vld [vmem:[#allocation11 + $0x120] sm:$0xff]
        %v2969 = vld [vmem:[#allocation11 + $0x128] sm:$0xff]
        %v2970 = vld [vmem:[#allocation11 + $0x130] sm:$0xff]
        %v2971 = vld [vmem:[#allocation11 + $0x138] sm:$0xff]
        %v2972 = vld [vmem:[#allocation11 + $0x140] sm:$0xff]
        %v2973 = vld [vmem:[#allocation11 + $0x148] sm:$0xff]
        %v2974 = vld [vmem:[#allocation11 + $0x150] sm:$0xff]
        %v2975 = vld [vmem:[#allocation11 + $0x158] sm:$0xff]
        %v2976 = vld [vmem:[#allocation11 + $0x160] sm:$0xff]
        %v2977 = vld [vmem:[#allocation11 + $0x168] sm:$0xff]
        %v2978 = vld [vmem:[#allocation11 + $0x170] sm:$0xff]
        %v2979 = vld [vmem:[#allocation11 + $0x178] sm:$0xff]
        %v2980 = vld [vmem:[#allocation11 + $0x180] sm:$0xff]
        %v2981 = vld [vmem:[#allocation11 + $0x188] sm:$0xff]
        %v2982 = vld [vmem:[#allocation11 + $0x190] sm:$0xff]
        %v2983 = vld [vmem:[#allocation11 + $0x198] sm:$0xff]
        %v2984 = vld [vmem:[#allocation11 + $0x1a0] sm:$0xff]
        %v2985 = vld [vmem:[#allocation11 + $0x1a8] sm:$0xff]
        %v2986 = vld [vmem:[#allocation11 + $0x1b0] sm:$0xff]
        %v2987 = vld [vmem:[#allocation11 + $0x1b8] sm:$0xff]
        %v2988 = vld [vmem:[#allocation11 + $0x1c0] sm:$0xff]
        %v2989 = vld [vmem:[#allocation11 + $0x1c8] sm:$0xff]
        %v2990 = vld [vmem:[#allocation11 + $0x1d0] sm:$0xff]
        %v2991 = vld [vmem:[#allocation11 + $0x1d8] sm:$0xff]
        %v2992 = vld [vmem:[#allocation11 + $0x1e0] sm:$0xff]
        %v2993 = vld [vmem:[#allocation11 + $0x1e8] sm:$0xff]
        %v2994 = vld [vmem:[#allocation11 + $0x1f0] sm:$0xff]
        %v2995 = vld [vmem:[#allocation11 + $0x1f8] sm:$0xff]
        %v2996 = vld [vmem:[#allocation11 + $0x200] sm:$0xff]
        %v2997 = vld [vmem:[#allocation11 + $0x208] sm:$0xff]
        %v2998 = vld [vmem:[#allocation11 + $0x210] sm:$0xff]
        %v2999 = vld [vmem:[#allocation11 + $0x218] sm:$0xff]
        %v3000 = vld [vmem:[#allocation11 + $0x220] sm:$0xff]
        %v3001 = vld [vmem:[#allocation11 + $0x228] sm:$0xff]
        %v3002 = vld [vmem:[#allocation11 + $0x230] sm:$0xff]
        %v3003 = vld [vmem:[#allocation11 + $0x238] sm:$0xff]
        %v3004 = vld [vmem:[#allocation11 + $0x240] sm:$0xff]
        %v3005 = vld [vmem:[#allocation11 + $0x248] sm:$0xff]
        %v3006 = vld [vmem:[#allocation11 + $0x250] sm:$0xff]
        %v3007 = vld [vmem:[#allocation11 + $0x258] sm:$0xff]
        %v3008 = vld [vmem:[#allocation11 + $0x260] sm:$0xff]
        %v3009 = vld [vmem:[#allocation11 + $0x268] sm:$0xff]
        %v3010 = vld [vmem:[#allocation11 + $0x270] sm:$0xff]
        %v3011 = vld [vmem:[#allocation11 + $0x278] sm:$0xff]
        %v3012 = vld [vmem:[#allocation12] sm:$0x1]
        %3013 = vmatpush.msra.mxu0 %v2947
        %3014 = vmatpush.msra.mxu0 %v2946
        %3015 = vmatpush.msra.mxu0 %v2945
        %3016 = vmatpush.msra.mxu0 %v2944
        %3017 = vmatpush.msra.mxu0 %v2943
        %3018 = vmatpush.msra.mxu0 %v2942
        %3019 = vmatpush.msra.mxu0 %v2941
        %3020 = vmatpush.msra.mxu0 %v2940
        %3021 = vmatpush.msra.mxu0 %v2939
        %3022 = vmatpush.msra.mxu0 %v2938
        %3023 = vmatpush.msra.mxu0 %v2937
        %3024 = vmatpush.msra.mxu0 %v2936
        %3025 = vmatpush.msra.mxu0 %v2935
        %3026 = vmatpush.msra.mxu0 %v2934
        %3027 = vmatpush.msra.mxu0 %v2933
        %3028 = vmatpush.msra.mxu0 %v2932
        %3029 = vmatmul.f32.gmra.mxu0 %v2927
        %v3030 = vpop.f32.mrf.mxu0
        %v3031 = vadd.f32 %v3012, %v3030
        %3032 = vdwg.mxu0
        %3033 = vmatpush.msra.mxu0 %v2963
        %3034 = vmatpush.msra.mxu0 %v2962
        %3035 = vmatpush.msra.mxu0 %v2961
        %3036 = vmatpush.msra.mxu0 %v2960
        %3037 = vmatpush.msra.mxu0 %v2959
        %3038 = vmatpush.msra.mxu0 %v2958
        %3039 = vmatpush.msra.mxu0 %v2957
        %3040 = vmatpush.msra.mxu0 %v2956
        %3041 = vmatpush.msra.mxu0 %v2955
        %3042 = vmatpush.msra.mxu0 %v2954
        %3043 = vmatpush.msra.mxu0 %v2953
        %3044 = vmatpush.msra.mxu0 %v2952
        %3045 = vmatpush.msra.mxu0 %v2951
        %3046 = vmatpush.msra.mxu0 %v2950
        %3047 = vmatpush.msra.mxu0 %v2949
        %3048 = vmatpush.msra.mxu0 %v2948
        %3049 = vmatmul.f32.gmra.mxu0 %v2928
        %v3050 = vpop.f32.mrf.mxu0
        %v3051 = vadd.f32 %v3031, %v3050
        %3052 = vdwg.mxu0
        %3053 = vmatpush.msra.mxu0 %v2979
        %3054 = vmatpush.msra.mxu0 %v2978
        %3055 = vmatpush.msra.mxu0 %v2977
        %3056 = vmatpush.msra.mxu0 %v2976
        %3057 = vmatpush.msra.mxu0 %v2975
        %3058 = vmatpush.msra.mxu0 %v2974
        %3059 = vmatpush.msra.mxu0 %v2973
        %3060 = vmatpush.msra.mxu0 %v2972
        %3061 = vmatpush.msra.mxu0 %v2971
        %3062 = vmatpush.msra.mxu0 %v2970
        %3063 = vmatpush.msra.mxu0 %v2969
        %3064 = vmatpush.msra.mxu0 %v2968
        %3065 = vmatpush.msra.mxu0 %v2967
        %3066 = vmatpush.msra.mxu0 %v2966
        %3067 = vmatpush.msra.mxu0 %v2965
        %3068 = vmatpush.msra.mxu0 %v2964
        %3069 = vmatmul.f32.gmra.mxu0 %v2929
        %v3070 = vpop.f32.mrf.mxu0
        %v3071 = vadd.f32 %v3051, %v3070
        %3072 = vdwg.mxu0
        %3073 = vmatpush.msra.mxu0 %v2995
        %3074 = vmatpush.msra.mxu0 %v2994
        %3075 = vmatpush.msra.mxu0 %v2993
        %3076 = vmatpush.msra.mxu0 %v2992
        %3077 = vmatpush.msra.mxu0 %v2991
        %3078 = vmatpush.msra.mxu0 %v2990
        %3079 = vmatpush.msra.mxu0 %v2989
        %3080 = vmatpush.msra.mxu0 %v2988
        %3081 = vmatpush.msra.mxu0 %v2987
        %3082 = vmatpush.msra.mxu0 %v2986
        %3083 = vmatpush.msra.mxu0 %v2985
        %3084 = vmatpush.msra.mxu0 %v2984
        %3085 = vmatpush.msra.mxu0 %v2983
        %3086 = vmatpush.msra.mxu0 %v2982
        %3087 = vmatpush.msra.mxu0 %v2981
        %3088 = vmatpush.msra.mxu0 %v2980
        %3089 = vmatmul.f32.gmra.mxu0 %v2930
        %v3090 = vpop.f32.mrf.mxu0
        %v3091 = vadd.f32 %v3071, %v3090
        %3092 = vdwg.mxu0
        %3093 = vmatpush.msra.mxu0 %v3011
        %3094 = vmatpush.msra.mxu0 %v3010
        %3095 = vmatpush.msra.mxu0 %v3009
        %3096 = vmatpush.msra.mxu0 %v3008
        %3097 = vmatpush.msra.mxu0 %v3007
        %3098 = vmatpush.msra.mxu0 %v3006
        %3099 = vmatpush.msra.mxu0 %v3005
        %3100 = vmatpush.msra.mxu0 %v3004
        %3101 = vmatpush.msra.mxu0 %v3003
        %3102 = vmatpush.msra.mxu0 %v3002
        %3103 = vmatpush.msra.mxu0 %v3001
        %3104 = vmatpush.msra.mxu0 %v3000
        %3105 = vmatpush.msra.mxu0 %v2999
        %3106 = vmatpush.msra.mxu0 %v2998
        %3107 = vmatpush.msra.mxu0 %v2997
        %3108 = vmatpush.msra.mxu0 %v2996
        %3109 = vmatmul.f32.gmra.mxu0 %v2931
        %v3110 = vpop.f32.mrf.mxu0
        %v3111 = vadd.f32 %v3091, %v3110
        %3112 = vdwg.mxu0
        %3113 = vst [vmem:[%s378] sm:$0x1] %v3111
        %s3114 = sand.u32 %s189, 1
        %s3115 = scalar_lea.sflag [#allocation5], %s3114
        %s3116 = sand.u32 %s189, 1
        %s3117 = scalar_lea.vmem [#allocation14], %s3116
        // Predicated region
        $region73: #{tpu_custom_call.1} parent=47 // pred_check
          %p3118 = pneg %p199
        $region74: #{tpu_custom_call.1} parent=47 // pred_check_branch
          %3120 = sbr.rel (%p3118) target = $region76
        $region75: #{tpu_custom_call.1} parent=47 // pred_region
          %3122 = vsyncadd %s3115, 0
          %s3123 = scalar_lea.hbm %s7, %s29
          %s3125 = sshll.u32 %s3117, 4
          %s3126 = int_to_ptr.vmem [resolvable:$true] %s3125
          %s3127 = sshll.u32 %s3123, 4
          %s3128 = int_to_ptr.hbm [resolvable:$true] %s3127
          %3130 = dma.vmem_to_hbm [thread:$0]  %s3126, 16, %s3128, %s3115
        $region76: #{tpu_custom_call.1} parent=47 // pred_fallthru
          _
      $region48: #{tpu_custom_call.1} parent=5 // pred_fallthru
        _
      %p3131 = scmp.le.s32.totalorder 2, %s24
      // Predicated region
      $region77: #{tpu_custom_call.1} parent=5 // pred_check
        %p3132 = pneg %p3131
      $region78: #{tpu_custom_call.1} parent=5 // pred_check_branch
        %3134 = sbr.rel (%p3132) target = $region80
      $region79: #{tpu_custom_call.1} parent=5 // pred_region
        %s3135 = ssub.s32 %s24, 2
        // Predicated region
        $region81: #{tpu_custom_call.1} parent=79 // pred_check
          %p3136 = pneg %p205
        $region82: #{tpu_custom_call.1} parent=79 // pred_check_branch
          %3138 = sbr.rel (%p3136) target = $region84
        $region83: #{tpu_custom_call.1} parent=79 // pred_region
          %s3139 = sand.u32 %s190, 1
          %s3140 = scalar_lea.sflag [#allocation5], %s3139
          %s3141 = sand.u32 %s190, 1
          %s3142 = scalar_lea.vmem [#allocation14], %s3141
          %3144 = dma.done %s3140, 16
        $region84: #{tpu_custom_call.1} parent=79 // pred_fallthru
          _
      $region80: #{tpu_custom_call.1} parent=5 // pred_fallthru
        _
    $region6: #{tpu_custom_call.1} parent=1 // loop_footer
      %s28 = sadd.s32 1, %s24
    $region7: #{tpu_custom_call.1} parent=1 // loop_footer_branch
      %23 = sbr.rel target = $region3
    $region8: #{tpu_custom_call.1} parent=1 // loop_exit
      _
    %3145 = vsyncpa [#allocation4], 1
    %s3146 = scalar_lea.sflag [#allocation4], 1
    %3147 = vsyncpa %s3146, 1
    %3148 = vsyncpa [#allocation7], 1
    %3149 = vsyncpa [#allocation10], 1
    %3150 = vsyncpa [#allocation13], 1
    %3151 = vsyncpa [#allocation5], 1
    %s3152 = scalar_lea.sflag [#allocation5], 1
    %3153 = vsyncpa %s3152, 1

</llo_original>
